<compile_context>
chip_gen: v5e
topology: v5e:2x2
jax: 0.10.0
libtpu: 0.0.40
codegen_flags: <defaults>
</compile_context>

<pallas_src>
import functools

import jax
import jax.numpy as jnp
from jax import lax
from jax.experimental import pallas as pl
from jax.experimental.pallas import tpu as pltpu


def _relu(x):
    return jnp.maximum(x, 0.0)


def dfus_kernel(x_ref, w1_ref, wk_ref, w2_ref, wf1_ref, wf2_ref,
                out_ref, pad_ref, *, H, W, OFF):
    # x_ref : (1, H*W, Cin)        out_ref: (1, H*W, 32)
    # w1    : (Cin, 128)           wk     : (9, 128, 64)  fused up|down 3x3 taps
    # w2    : (64, 32) block-diag  wf1    : (64, 32)      wf2: (32, 32)
    # pad_ref (scratch): (2*OFF + H*W, 128) f32 flattened, H-padded feature map
    HW = H * W
    pad_rows = pad_ref.shape[0]

    x = x_ref[0]                                              # (HW, Cin)

    # conv1 (1x1) + ReLU -> (HW, 128)
    feat = _relu(jnp.dot(x, w1_ref[...], preferred_element_type=jnp.float32))

    # Zero only the thin top/bottom halo slabs; the interior is fully
    # overwritten every grid step.
    pad_ref[pl.ds(0, OFF), :] = jnp.zeros((OFF, 128), jnp.float32)
    pad_ref[pl.ds(OFF + HW, pad_rows - OFF - HW), :] = jnp.zeros(
        (pad_rows - OFF - HW, 128), jnp.float32)
    pad_ref[pl.ds(OFF, HW), :] = feat

    # Width position of each flattened pixel, for masking the dw = 0 / 2 taps.
    wpos = lax.broadcasted_iota(jnp.int32, (HW, 1), 0) % W

    # 3x3 convs (padding=1), up & down paths fused into one 128 -> 64 conv.
    # Each tap is a contiguous sublane slice of the padded scratch; the +-1
    # column shift is corrected by zeroing the invalid rows of the narrow
    # (HW, 64) per-dw accumulator.
    acc = jnp.zeros((HW, 64), jnp.float32)
    for dw in range(3):
        acc_dw = jnp.zeros((HW, 64), jnp.float32)
        for dh in range(3):
            start = OFF + (dh - 1) * W + (dw - 1)
            slab = pad_ref[pl.ds(start, HW), :]               # (HW, 128)
            acc_dw = acc_dw + jnp.dot(slab, wk_ref[dh * 3 + dw],
                                      preferred_element_type=jnp.float32)
        if dw == 0:       # reads column w-1: invalid at w == 0
            acc_dw = jnp.where(wpos == 0, 0.0, acc_dw)
        elif dw == 2:     # reads column w+1: invalid at w == W-1
            acc_dw = jnp.where(wpos == W - 1, 0.0, acc_dw)
        acc = acc + acc_dw
    ud1 = _relu(acc)                                          # (HW, 64) = [up1 | down1]

    # conv_up2 / conv_down2 fused via the block-diagonal (64, 32) weight.
    ud2 = _relu(jnp.dot(ud1, w2_ref[...],
                        preferred_element_type=jnp.float32))  # (HW, 32) = [up2 | down2]

    # conv_fution (96 -> 32) without the channel concat: wf was split in the
    # wrapper into the [up1|down1] rows and the [up2|down2] rows.
    fus = _relu(jnp.dot(ud1, wf1_ref[...], preferred_element_type=jnp.float32)
                + jnp.dot(ud2, wf2_ref[...], preferred_element_type=jnp.float32))

    out_ref[0] = fus                                          # (HW, 32)


@jax.jit
def dfus_block_forward(x_nchw, w1, wu1, wu2, wd1, wd2, wf):
    """x_nchw: (B, dim, H, W) float32 -> (B, dim+32, H, W) float32."""
    B, C, H, W = x_nchw.shape
    HW = H * W
    OFF = ((W + 1 + 7) // 8) * 8          # halo rows: >= W+1 and sublane aligned
    pad_rows = 2 * OFF + HW

    # Channels-last with pixels flattened onto sublanes.
    x = jnp.transpose(x_nchw.reshape(B, C, HW), (0, 2, 1))    # (B, HW, C)

    # --- weight folding (cheap, fused by XLA) ---
    wk = jnp.concatenate([wu1, wd1], axis=-1).reshape(9, 128, 64)
    w2 = jnp.zeros((64, 32), jnp.float32)
    w2 = w2.at[0:32, 0:16].set(wu2).at[32:64, 16:32].set(wd2)
    wf1 = jnp.concatenate([wf[0:32], wf[48:80]], axis=0)      # rows for up1|down1
    wf2 = jnp.concatenate([wf[32:48], wf[80:96]], axis=0)     # rows for up2|down2

    flops = 2 * B * HW * (C * 128 + 9 * 128 * 64 + 64 * 32 + 64 * 32 + 32 * 32)
    bytes_accessed = 4 * (B * HW * C + B * HW * 32
                          + wk.size + w1.size + w2.size + wf1.size + wf2.size)

    kern = functools.partial(dfus_kernel, H=H, W=W, OFF=OFF)

    fus = pl.pallas_call(
        kern,
        out_shape=jax.ShapeDtypeStruct((B, HW, 32), jnp.float32),
        grid_spec=pltpu.PrefetchScalarGridSpec(
            num_scalar_prefetch=0,
            grid=(B,),
            in_specs=[
                pl.BlockSpec((1, HW, C), lambda b: (b, 0, 0)),
                pl.BlockSpec(w1.shape, lambda b: (0, 0)),
                pl.BlockSpec(wk.shape, lambda b: (0, 0, 0)),
                pl.BlockSpec(w2.shape, lambda b: (0, 0)),
                pl.BlockSpec(wf1.shape, lambda b: (0, 0)),
                pl.BlockSpec(wf2.shape, lambda b: (0, 0)),
            ],
            out_specs=pl.BlockSpec((1, HW, 32), lambda b: (b, 0, 0)),
            scratch_shapes=[pltpu.VMEM((pad_rows, 128), jnp.float32)],
        ),
        compiler_params=pltpu.CompilerParams(
            dimension_semantics=("parallel",)),
        cost_estimate=pl.CostEstimate(flops=flops, transcendentals=0,
                                      bytes_accessed=bytes_accessed),
    )(x, w1, wk, w2, wf1, wf2)

    # Cheap XLA epilogue: back to NCHW and concat with the input passthrough.
    fus_nchw = jnp.transpose(fus, (0, 2, 1)).reshape(B, 32, H, W)
    return jnp.concatenate([x_nchw, fus_nchw], axis=1)


def _reference_forward(x_nchw, w1, wu1, wu2, wd1, wd2, wf):
    """Pure-JAX reference (lax.conv) matching the PyTorch semantics."""
    x = jnp.transpose(x_nchw, (0, 2, 3, 1))                   # NHWC
    dn = ("NHWC", "HWIO", "NHWC")

    def conv1x1(t, w):  # w: (Cin, Cout)
        return lax.conv_general_dilated(t, w[None, None], (1, 1), "VALID",
                                        dimension_numbers=dn)

    def conv3x3(t, w):  # w: (3, 3, Cin, Cout)
        return lax.conv_general_dilated(t, w, (1, 1), "SAME",
                                        dimension_numbers=dn)

    feat = jax.nn.relu(conv1x1(x, w1))
    up1 = jax.nn.relu(conv3x3(feat, wu1))
    up2 = jax.nn.relu(conv1x1(up1, wu2))
    dn1 = jax.nn.relu(conv3x3(feat, wd1))
    dn2 = jax.nn.relu(conv1x1(dn1, wd2))
    fus = jax.nn.relu(conv1x1(jnp.concatenate([up1, up2, dn1, dn2], -1), wf))
    out = jnp.concatenate([x, fus], -1)
    return jnp.transpose(out, (0, 3, 1, 2))


if __name__ == "__main__":
    key = jax.random.PRNGKey(0)
    B, dim, H, W = 2, 4, 16, 16

    keys = jax.random.split(key, 7)
    x = jax.random.normal(keys[0], (B, dim, H, W), jnp.float32)

    # Deterministic synthetic weights (channels-last / HWIO convention).
    w1 = jax.random.normal(keys[1], (dim, 128), jnp.float32) * 0.1        # conv1
    wu1 = jax.random.normal(keys[2], (3, 3, 128, 32), jnp.float32) * 0.05  # conv_up1
    wu2 = jax.random.normal(keys[3], (32, 16), jnp.float32) * 0.1          # conv_up2
    wd1 = jax.random.normal(keys[4], (3, 3, 128, 32), jnp.float32) * 0.05  # conv_down1
    wd2 = jax.random.normal(keys[5], (32, 16), jnp.float32) * 0.1          # conv_down2
    wf = jax.random.normal(keys[6], (96, 32), jnp.float32) * 0.1           # conv_fution

    out = jax.block_until_ready(dfus_block_forward(x, w1, wu1, wu2, wd1, wd2, wf))
    assert out.shape == (B, dim + 32, H, W), out.shape

    ref = jax.block_until_ready(_reference_forward(x, w1, wu1, wu2, wd1, wd2, wf))
    max_err = float(jnp.max(jnp.abs(out - ref)))
    assert jnp.allclose(out, ref, atol=1e-3, rtol=1e-3), max_err

    print("KERNEL_OK")
</pallas_src>

<mosaic_0001>
module attributes {stable_mosaic.version = 11 : i64} {
  func.func @dfus_kernel(%arg0: i32, %arg1: memref<1x256x4xf32, #tpu.memory_space<vmem>>, %arg2: memref<4x128xf32, #tpu.memory_space<vmem>>, %arg3: memref<9x128x64xf32, #tpu.memory_space<vmem>>, %arg4: memref<64x32xf32, #tpu.memory_space<vmem>>, %arg5: memref<64x32xf32, #tpu.memory_space<vmem>>, %arg6: memref<32x32xf32, #tpu.memory_space<vmem>>, %arg7: memref<1x256x32xf32, #tpu.memory_space<vmem>>, %arg8: memref<304x128xf32, #tpu.memory_space<vmem>>) attributes {dimension_semantics = [#tpu.dimension_semantics<parallel>], iteration_bounds = array<i64: 2>, scalar_prefetch = 0 : i64, scratch_operands = 1 : i64, tpu.core_type = #tpu.core_type<tc>, window_params = [{transform_indices = @transform_0, window_bounds = array<i64: 1, 256, 4>}, {pipeline_mode = #tpu.pipeline_mode<synchronous>, transform_indices = @transform_1, window_bounds = array<i64: 4, 128>}, {pipeline_mode = #tpu.pipeline_mode<synchronous>, transform_indices = @transform_2, window_bounds = array<i64: 9, 128, 64>}, {pipeline_mode = #tpu.pipeline_mode<synchronous>, transform_indices = @transform_3, window_bounds = array<i64: 64, 32>}, {pipeline_mode = #tpu.pipeline_mode<synchronous>, transform_indices = @transform_4, window_bounds = array<i64: 64, 32>}, {pipeline_mode = #tpu.pipeline_mode<synchronous>, transform_indices = @transform_5, window_bounds = array<i64: 32, 32>}, {transform_indices = @transform_6, window_bounds = array<i64: 1, 256, 32>}]} {
    %c0 = arith.constant 0 : index
    %c0_0 = arith.constant 0 : index
    %c0_1 = arith.constant 0 : index
    %0 = vector.load %arg1[%c0, %c0_0, %c0_1] : memref<1x256x4xf32, #tpu.memory_space<vmem>>, vector<1x256x4xf32>
    %1 = vector.shape_cast %0 : vector<1x256x4xf32> to vector<256x4xf32>
    %c0_2 = arith.constant 0 : index
    %c0_3 = arith.constant 0 : index
    %2 = vector.load %arg2[%c0_2, %c0_3] : memref<4x128xf32, #tpu.memory_space<vmem>>, vector<4x128xf32>
    %cst = arith.constant dense<0.000000e+00> : vector<256x128xf32>
    %3 = tpu.matmul %1, %2, %cst {dimension_numbers = #tpu.dot_dimension_numbers<[1], [0], [0], [1], [0, 0, 1, 1], [], []>} : vector<256x4xf32>, vector<4x128xf32>, vector<256x128xf32> -> vector<256x128xf32>
    %cst_4 = arith.constant 0.000000e+00 : f32
    %4 = vector.broadcast %cst_4 : f32 to vector<256x128xf32>
    %5 = arith.maximumf %3, %4 : vector<256x128xf32>
    %cst_5 = arith.constant 0.000000e+00 : f32
    %6 = vector.broadcast %cst_5 : f32 to vector<24x128xf32>
    %c0_6 = arith.constant 0 : index
    %c0_7 = arith.constant 0 : index
    %7 = vector.load %arg8[%c0_6, %c0_7] : memref<304x128xf32, #tpu.memory_space<vmem>>, vector<24x128xf32>
    tpu.vector_store %arg8[%c0_6, %c0_7], %6 {strides = array<i32>} : memref<304x128xf32, #tpu.memory_space<vmem>>, vector<24x128xf32>,
    %cst_8 = arith.constant 0.000000e+00 : f32
    %8 = vector.broadcast %cst_8 : f32 to vector<24x128xf32>
    %c280 = arith.constant 280 : index
    %c0_9 = arith.constant 0 : index
    %9 = vector.load %arg8[%c280, %c0_9] : memref<304x128xf32, #tpu.memory_space<vmem>>, vector<24x128xf32>
    tpu.vector_store %arg8[%c280, %c0_9], %8 {strides = array<i32>} : memref<304x128xf32, #tpu.memory_space<vmem>>, vector<24x128xf32>,
    %c24 = arith.constant 24 : index
    %c0_10 = arith.constant 0 : index
    %10 = vector.load %arg8[%c24, %c0_10] : memref<304x128xf32, #tpu.memory_space<vmem>>, vector<256x128xf32>
    tpu.vector_store %arg8[%c24, %c0_10], %5 {strides = array<i32>} : memref<304x128xf32, #tpu.memory_space<vmem>>, vector<256x128xf32>,
    %11 = tpu.iota {dimensions = array<i32: 0>} : vector<256x1xi32>
    %c16_i32 = arith.constant 16 : i32
    %c0_i32 = arith.constant 0 : i32
    %12 = arith.cmpi eq, %c16_i32, %c0_i32 : i32
    %c1_i32 = arith.constant 1 : i32
    %13 = arith.select %12, %c1_i32, %c16_i32 : i32
    %14 = vector.broadcast %13 : i32 to vector<256x1xi32>
    %15 = arith.remsi %11, %14 : vector<256x1xi32>
    %c0_i32_11 = arith.constant 0 : i32
    %16 = vector.broadcast %c0_i32_11 : i32 to vector<256x1xi32>
    %17 = arith.cmpi ne, %15, %16 : vector<256x1xi32>
    %c0_i32_12 = arith.constant 0 : i32
    %18 = vector.broadcast %c0_i32_12 : i32 to vector<256x1xi32>
    %19 = arith.cmpi slt, %15, %18 : vector<256x1xi32>
    %c0_i32_13 = arith.constant 0 : i32
    %20 = arith.cmpi slt, %13, %c0_i32_13 : i32
    %21 = vector.broadcast %20 : i1 to vector<256x1xi1>
    %22 = vector.broadcast %21 : vector<256x1xi1> to vector<256x1xi1>
    %23 = arith.xori %19, %22 : vector<256x1xi1>
    %24 = arith.andi %23, %17 : vector<256x1xi1>
    %25 = vector.broadcast %13 : i32 to vector<256x1xi32>
    %26 = arith.addi %15, %25 : vector<256x1xi32>
    %27 = arith.select %24, %26, %15 : vector<256x1xi1>, vector<256x1xi32>
    %cst_14 = arith.constant 0.000000e+00 : f32
    %28 = vector.broadcast %cst_14 : f32 to vector<256x64xf32>
    %cst_15 = arith.constant 0.000000e+00 : f32
    %29 = vector.broadcast %cst_15 : f32 to vector<256x64xf32>
    %c7 = arith.constant 7 : index
    %c0_16 = arith.constant 0 : index
    %30 = vector.load %arg8[%c7, %c0_16] : memref<304x128xf32, #tpu.memory_space<vmem>>, vector<256x128xf32>
    %c0_17 = arith.constant 0 : index
    %c0_18 = arith.constant 0 : index
    %c0_19 = arith.constant 0 : index
    %31 = vector.load %arg3[%c0_17, %c0_18, %c0_19] : memref<9x128x64xf32, #tpu.memory_space<vmem>>, vector<1x128x64xf32>
    %32 = vector.shape_cast %31 : vector<1x128x64xf32> to vector<128x64xf32>
    %cst_20 = arith.constant dense<0.000000e+00> : vector<256x64xf32>
    %33 = tpu.matmul %30, %32, %cst_20 {dimension_numbers = #tpu.dot_dimension_numbers<[1], [0], [0], [1], [0, 0, 1, 1], [], []>} : vector<256x128xf32>, vector<128x64xf32>, vector<256x64xf32> -> vector<256x64xf32>
    %34 = arith.addf %29, %33 : vector<256x64xf32>
    %c23 = arith.constant 23 : index
    %c0_21 = arith.constant 0 : index
    %35 = vector.load %arg8[%c23, %c0_21] : memref<304x128xf32, #tpu.memory_space<vmem>>, vector<256x128xf32>
    %c3 = arith.constant 3 : index
    %c0_22 = arith.constant 0 : index
    %c0_23 = arith.constant 0 : index
    %36 = vector.load %arg3[%c3, %c0_22, %c0_23] : memref<9x128x64xf32, #tpu.memory_space<vmem>>, vector<1x128x64xf32>
    %37 = vector.shape_cast %36 : vector<1x128x64xf32> to vector<128x64xf32>
    %cst_24 = arith.constant dense<0.000000e+00> : vector<256x64xf32>
    %38 = tpu.matmul %35, %37, %cst_24 {dimension_numbers = #tpu.dot_dimension_numbers<[1], [0], [0], [1], [0, 0, 1, 1], [], []>} : vector<256x128xf32>, vector<128x64xf32>, vector<256x64xf32> -> vector<256x64xf32>
    %39 = arith.addf %34, %38 : vector<256x64xf32>
    %c39 = arith.constant 39 : index
    %c0_25 = arith.constant 0 : index
    %40 = vector.load %arg8[%c39, %c0_25] : memref<304x128xf32, #tpu.memory_space<vmem>>, vector<256x128xf32>
    %c6 = arith.constant 6 : index
    %c0_26 = arith.constant 0 : index
    %c0_27 = arith.constant 0 : index
    %41 = vector.load %arg3[%c6, %c0_26, %c0_27] : memref<9x128x64xf32, #tpu.memory_space<vmem>>, vector<1x128x64xf32>
    %42 = vector.shape_cast %41 : vector<1x128x64xf32> to vector<128x64xf32>
    %cst_28 = arith.constant dense<0.000000e+00> : vector<256x64xf32>
    %43 = tpu.matmul %40, %42, %cst_28 {dimension_numbers = #tpu.dot_dimension_numbers<[1], [0], [0], [1], [0, 0, 1, 1], [], []>} : vector<256x128xf32>, vector<128x64xf32>, vector<256x64xf32> -> vector<256x64xf32>
    %44 = arith.addf %39, %43 : vector<256x64xf32>
    %c0_i32_29 = arith.constant 0 : i32
    %45 = vector.broadcast %c0_i32_29 : i32 to vector<256x1xi32>
    %46 = arith.cmpi eq, %27, %45 : vector<256x1xi32>
    %cst_30 = arith.constant 0.000000e+00 : f32
    %47 = vector.shape_cast %46 : vector<256x1xi1> to vector<256x1xi1>
    %48 = vector.broadcast %47 : vector<256x1xi1> to vector<256x64xi1>
    %49 = vector.broadcast %cst_30 : f32 to vector<256x64xf32>
    %50 = arith.select %48, %49, %44 : vector<256x64xi1>, vector<256x64xf32>
    %51 = arith.addf %28, %50 : vector<256x64xf32>
    %cst_31 = arith.constant 0.000000e+00 : f32
    %52 = vector.broadcast %cst_31 : f32 to vector<256x64xf32>
    %c8 = arith.constant 8 : index
    %c0_32 = arith.constant 0 : index
    %53 = vector.load %arg8[%c8, %c0_32] : memref<304x128xf32, #tpu.memory_space<vmem>>, vector<256x128xf32>
    %c1 = arith.constant 1 : index
    %c0_33 = arith.constant 0 : index
    %c0_34 = arith.constant 0 : index
    %54 = vector.load %arg3[%c1, %c0_33, %c0_34] : memref<9x128x64xf32, #tpu.memory_space<vmem>>, vector<1x128x64xf32>
    %55 = vector.shape_cast %54 : vector<1x128x64xf32> to vector<128x64xf32>
    %cst_35 = arith.constant dense<0.000000e+00> : vector<256x64xf32>
    %56 = tpu.matmul %53, %55, %cst_35 {dimension_numbers = #tpu.dot_dimension_numbers<[1], [0], [0], [1], [0, 0, 1, 1], [], []>} : vector<256x128xf32>, vector<128x64xf32>, vector<256x64xf32> -> vector<256x64xf32>
    %57 = arith.addf %52, %56 : vector<256x64xf32>
    %c24_36 = arith.constant 24 : index
    %c0_37 = arith.constant 0 : index
    %58 = vector.load %arg8[%c24_36, %c0_37] : memref<304x128xf32, #tpu.memory_space<vmem>>, vector<256x128xf32>
    %c4 = arith.constant 4 : index
    %c0_38 = arith.constant 0 : index
    %c0_39 = arith.constant 0 : index
    %59 = vector.load %arg3[%c4, %c0_38, %c0_39] : memref<9x128x64xf32, #tpu.memory_space<vmem>>, vector<1x128x64xf32>
    %60 = vector.shape_cast %59 : vector<1x128x64xf32> to vector<128x64xf32>
    %cst_40 = arith.constant dense<0.000000e+00> : vector<256x64xf32>
    %61 = tpu.matmul %58, %60, %cst_40 {dimension_numbers = #tpu.dot_dimension_numbers<[1], [0], [0], [1], [0, 0, 1, 1], [], []>} : vector<256x128xf32>, vector<128x64xf32>, vector<256x64xf32> -> vector<256x64xf32>
    %62 = arith.addf %57, %61 : vector<256x64xf32>
    %c40 = arith.constant 40 : index
    %c0_41 = arith.constant 0 : index
    %63 = vector.load %arg8[%c40, %c0_41] : memref<304x128xf32, #tpu.memory_space<vmem>>, vector<256x128xf32>
    %c7_42 = arith.constant 7 : index
    %c0_43 = arith.constant 0 : index
    %c0_44 = arith.constant 0 : index
    %64 = vector.load %arg3[%c7_42, %c0_43, %c0_44] : memref<9x128x64xf32, #tpu.memory_space<vmem>>, vector<1x128x64xf32>
    %65 = vector.shape_cast %64 : vector<1x128x64xf32> to vector<128x64xf32>
    %cst_45 = arith.constant dense<0.000000e+00> : vector<256x64xf32>
    %66 = tpu.matmul %63, %65, %cst_45 {dimension_numbers = #tpu.dot_dimension_numbers<[1], [0], [0], [1], [0, 0, 1, 1], [], []>} : vector<256x128xf32>, vector<128x64xf32>, vector<256x64xf32> -> vector<256x64xf32>
    %67 = arith.addf %62, %66 : vector<256x64xf32>
    %68 = arith.addf %51, %67 : vector<256x64xf32>
    %cst_46 = arith.constant 0.000000e+00 : f32
    %69 = vector.broadcast %cst_46 : f32 to vector<256x64xf32>
    %c9 = arith.constant 9 : index
    %c0_47 = arith.constant 0 : index
    %70 = vector.load %arg8[%c9, %c0_47] : memref<304x128xf32, #tpu.memory_space<vmem>>, vector<256x128xf32>
    %c2 = arith.constant 2 : index
    %c0_48 = arith.constant 0 : index
    %c0_49 = arith.constant 0 : index
    %71 = vector.load %arg3[%c2, %c0_48, %c0_49] : memref<9x128x64xf32, #tpu.memory_space<vmem>>, vector<1x128x64xf32>
    %72 = vector.shape_cast %71 : vector<1x128x64xf32> to vector<128x64xf32>
    %cst_50 = arith.constant dense<0.000000e+00> : vector<256x64xf32>
    %73 = tpu.matmul %70, %72, %cst_50 {dimension_numbers = #tpu.dot_dimension_numbers<[1], [0], [0], [1], [0, 0, 1, 1], [], []>} : vector<256x128xf32>, vector<128x64xf32>, vector<256x64xf32> -> vector<256x64xf32>
    %74 = arith.addf %69, %73 : vector<256x64xf32>
    %c25 = arith.constant 25 : index
    %c0_51 = arith.constant 0 : index
    %75 = vector.load %arg8[%c25, %c0_51] : memref<304x128xf32, #tpu.memory_space<vmem>>, vector<256x128xf32>
    %c5 = arith.constant 5 : index
    %c0_52 = arith.constant 0 : index
    %c0_53 = arith.constant 0 : index
    %76 = vector.load %arg3[%c5, %c0_52, %c0_53] : memref<9x128x64xf32, #tpu.memory_space<vmem>>, vector<1x128x64xf32>
    %77 = vector.shape_cast %76 : vector<1x128x64xf32> to vector<128x64xf32>
    %cst_54 = arith.constant dense<0.000000e+00> : vector<256x64xf32>
    %78 = tpu.matmul %75, %77, %cst_54 {dimension_numbers = #tpu.dot_dimension_numbers<[1], [0], [0], [1], [0, 0, 1, 1], [], []>} : vector<256x128xf32>, vector<128x64xf32>, vector<256x64xf32> -> vector<256x64xf32>
    %79 = arith.addf %74, %78 : vector<256x64xf32>
    %c41 = arith.constant 41 : index
    %c0_55 = arith.constant 0 : index
    %80 = vector.load %arg8[%c41, %c0_55] : memref<304x128xf32, #tpu.memory_space<vmem>>, vector<256x128xf32>
    %c8_56 = arith.constant 8 : index
    %c0_57 = arith.constant 0 : index
    %c0_58 = arith.constant 0 : index
    %81 = vector.load %arg3[%c8_56, %c0_57, %c0_58] : memref<9x128x64xf32, #tpu.memory_space<vmem>>, vector<1x128x64xf32>
    %82 = vector.shape_cast %81 : vector<1x128x64xf32> to vector<128x64xf32>
    %cst_59 = arith.constant dense<0.000000e+00> : vector<256x64xf32>
    %83 = tpu.matmul %80, %82, %cst_59 {dimension_numbers = #tpu.dot_dimension_numbers<[1], [0], [0], [1], [0, 0, 1, 1], [], []>} : vector<256x128xf32>, vector<128x64xf32>, vector<256x64xf32> -> vector<256x64xf32>
    %84 = arith.addf %79, %83 : vector<256x64xf32>
    %c15_i32 = arith.constant 15 : i32
    %85 = vector.broadcast %c15_i32 : i32 to vector<256x1xi32>
    %86 = arith.cmpi eq, %27, %85 : vector<256x1xi32>
    %cst_60 = arith.constant 0.000000e+00 : f32
    %87 = vector.shape_cast %86 : vector<256x1xi1> to vector<256x1xi1>
    %88 = vector.broadcast %87 : vector<256x1xi1> to vector<256x64xi1>
    %89 = vector.broadcast %cst_60 : f32 to vector<256x64xf32>
    %90 = arith.select %88, %89, %84 : vector<256x64xi1>, vector<256x64xf32>
    %91 = arith.addf %68, %90 : vector<256x64xf32>
    %cst_61 = arith.constant 0.000000e+00 : f32
    %92 = vector.broadcast %cst_61 : f32 to vector<256x64xf32>
    %93 = arith.maximumf %91, %92 : vector<256x64xf32>
    %c0_62 = arith.constant 0 : index
    %c0_63 = arith.constant 0 : index
    %94 = vector.load %arg4[%c0_62, %c0_63] : memref<64x32xf32, #tpu.memory_space<vmem>>, vector<64x32xf32>
    %cst_64 = arith.constant dense<0.000000e+00> : vector<256x32xf32>
    %95 = tpu.matmul %93, %94, %cst_64 {dimension_numbers = #tpu.dot_dimension_numbers<[1], [0], [0], [1], [0, 0, 1, 1], [], []>} : vector<256x64xf32>, vector<64x32xf32>, vector<256x32xf32> -> vector<256x32xf32>
    %cst_65 = arith.constant 0.000000e+00 : f32
    %96 = vector.broadcast %cst_65 : f32 to vector<256x32xf32>
    %97 = arith.maximumf %95, %96 : vector<256x32xf32>
    %c0_66 = arith.constant 0 : index
    %c0_67 = arith.constant 0 : index
    %98 = vector.load %arg5[%c0_66, %c0_67] : memref<64x32xf32, #tpu.memory_space<vmem>>, vector<64x32xf32>
    %cst_68 = arith.constant dense<0.000000e+00> : vector<256x32xf32>
    %99 = tpu.matmul %93, %98, %cst_68 {dimension_numbers = #tpu.dot_dimension_numbers<[1], [0], [0], [1], [0, 0, 1, 1], [], []>} : vector<256x64xf32>, vector<64x32xf32>, vector<256x32xf32> -> vector<256x32xf32>
    %c0_69 = arith.constant 0 : index
    %c0_70 = arith.constant 0 : index
    %100 = vector.load %arg6[%c0_69, %c0_70] : memref<32x32xf32, #tpu.memory_space<vmem>>, vector<32x32xf32>
    %cst_71 = arith.constant dense<0.000000e+00> : vector<256x32xf32>
    %101 = tpu.matmul %97, %100, %cst_71 {dimension_numbers = #tpu.dot_dimension_numbers<[1], [0], [0], [1], [0, 0, 1, 1], [], []>} : vector<256x32xf32>, vector<32x32xf32>, vector<256x32xf32> -> vector<256x32xf32>
    %102 = arith.addf %99, %101 : vector<256x32xf32>
    %cst_72 = arith.constant 0.000000e+00 : f32
    %103 = vector.broadcast %cst_72 : f32 to vector<256x32xf32>
    %104 = arith.maximumf %102, %103 : vector<256x32xf32>
    %c0_73 = arith.constant 0 : index
    %c0_74 = arith.constant 0 : index
    %c0_75 = arith.constant 0 : index
    %105 = vector.load %arg7[%c0_73, %c0_74, %c0_75] : memref<1x256x32xf32, #tpu.memory_space<vmem>>, vector<1x256x32xf32>
    %106 = vector.shape_cast %105 : vector<1x256x32xf32> to vector<256x32xf32>
    %107 = vector.shape_cast %104 : vector<256x32xf32> to vector<1x256x32xf32>
    tpu.vector_store %arg7[%c0_73, %c0_74, %c0_75], %107 {strides = array<i32>} : memref<1x256x32xf32, #tpu.memory_space<vmem>>, vector<1x256x32xf32>,
    return
  }
  func.func @transform_0(%arg0: i32) -> (i32, i32, i32) {
    %c0_i32 = arith.constant 0 : i32
    %c0_i32_0 = arith.constant 0 : i32
    %c0_i32_1 = arith.constant 0 : i32
    return %arg0, %c0_i32, %c0_i32_0 : i32, i32, i32
  }
  func.func @transform_1(%arg0: i32) -> (i32, i32) {
    %c0_i32 = arith.constant 0 : i32
    %c0_i32_0 = arith.constant 0 : i32
    %c0_i32_1 = arith.constant 0 : i32
    return %c0_i32, %c0_i32_0 : i32, i32
  }
  func.func @transform_2(%arg0: i32) -> (i32, i32, i32) {
    %c0_i32 = arith.constant 0 : i32
    %c0_i32_0 = arith.constant 0 : i32
    %c0_i32_1 = arith.constant 0 : i32
    %c0_i32_2 = arith.constant 0 : i32
    return %c0_i32, %c0_i32_0, %c0_i32_1 : i32, i32, i32
  }
  func.func @transform_3(%arg0: i32) -> (i32, i32) {
    %c0_i32 = arith.constant 0 : i32
    %c0_i32_0 = arith.constant 0 : i32
    %c0_i32_1 = arith.constant 0 : i32
    return %c0_i32, %c0_i32_0 : i32, i32
  }
  func.func @transform_4(%arg0: i32) -> (i32, i32) {
    %c0_i32 = arith.constant 0 : i32
    %c0_i32_0 = arith.constant 0 : i32
    %c0_i32_1 = arith.constant 0 : i32
    return %c0_i32, %c0_i32_0 : i32, i32
  }
  func.func @transform_5(%arg0: i32) -> (i32, i32) {
    %c0_i32 = arith.constant 0 : i32
    %c0_i32_0 = arith.constant 0 : i32
    %c0_i32_1 = arith.constant 0 : i32
    return %c0_i32, %c0_i32_0 : i32, i32
  }
  func.func @transform_6(%arg0: i32) -> (i32, i32, i32) {
    %c0_i32 = arith.constant 0 : i32
    %c0_i32_0 = arith.constant 0 : i32
    %c0_i32_1 = arith.constant 0 : i32
    return %arg0, %c0_i32, %c0_i32_0 : i32, i32, i32
  }
}

</mosaic_0001>

<llo_original>
// kernel: dfus_block_forward.1
$region0: #{dfus_block_forward.1}
  #allocation0 [shape = 'u32[]', space=smem, size = 0x4, offset = 0x4, fixed_abs, tag = 'smem constant byte address 0x4 - core index']
  #allocation1 [shape = 'u32[72,128]{1,0:T(1,128)}', space=vmem, size = 0x9000, scoped, tag = 'internal scratch']
  #allocation2 [shape = 'f32[304,128]{1,0:T(8,128)}', space=vmem, size = 0x26000, scoped, tag = 'scratch operand']
  %s0 = inlined_call_operand.vmem [shape: f32[2,256,4], index: 0, kind: input, shape index: {}]
  %s1 = inlined_call_operand.vmem [shape: f32[4,128], index: 1, kind: input, shape index: {}]
  %s2 = inlined_call_operand.vmem [shape: f32[9,128,64], index: 2, kind: input, shape index: {}]
  %s3 = inlined_call_operand.vmem [shape: f32[64,32], index: 3, kind: input, shape index: {}]
  %s4 = inlined_call_operand.vmem [shape: f32[64,32], index: 4, kind: input, shape index: {}]
  %s5 = inlined_call_operand.vmem [shape: f32[32,32], index: 5, kind: input, shape index: {}]
  %s6 = inlined_call_operand.vmem [shape: f32[2,256,32], index: 6, kind: output, shape index: {}]
  %s7 = sld [smem:[#allocation0]]
  $region57: #{dfus_block_forward.1} parent=0
    _
  %s9 = ssub.s32 1, %s7
  %s10 = scalar_select 0, %s9, %s7
  loop: start=0, step=1, limit=4
  $region2: #{dfus_block_forward.1} parent=0 // loop_pre_header
    _
  $region3: #{dfus_block_forward.1} parent=0 // loop_header
    %s12 = sphi 0, %s16
    %p13 = scmp.ge.s32.totalorder %s12, 4
    %s22 = sphi 0, %s24
    %s25 = sphi 0, %s22
    %s26 = sphi 0, %s25
    %s42 = sphi 0, %s26
    %s46 = sphi 0, %s46
    %s48 = sphi 0, %s46
    %s49 = sphi 0, %s48
    %s63 = sphi 0, %s49
    %s67 = sphi 0, %s67
    %s69 = sphi 0, %s67
    %s70 = sphi 0, %s69
    %s84 = sphi 0, %s70
    %s88 = sphi 0, %s88
    %s90 = sphi 0, %s88
    %s91 = sphi 0, %s90
    %s105 = sphi 0, %s91
    %s109 = sphi 0, %s109
    %s111 = sphi 0, %s109
    %s112 = sphi 0, %s111
    %s126 = sphi 0, %s112
    %s130 = sphi 0, %s130
    %s132 = sphi 0, %s130
    %s133 = sphi 0, %s132
    %s147 = sphi 0, %s133
    %s153 = sphi 0, %s155
    %s156 = sphi 0, %s153
    %s157 = sphi 0, %s156
    %s173 = sphi 0, %s157
  $region4: #{dfus_block_forward.1} parent=0 // loop_header_branch
    %15 = sbr.rel (%p13) target = $region8
  $region5: #{dfus_block_forward.1} parent=0 // loop_body
    %s17 = ssub.s32 %s12, 1
    %s18 = ssub.s32 %s12, 2
    %s19 = sadd.s32 %s12, 1
    %s20 = ssub.s32 %s12, %s19
    %p21 = scmp.eq.s32.totalorder %s20, 0
    %s23 = sadd.s32 %s22, 1
    %s24 = scalar_select %p21, %s22, %s23
    %p27 = pneg %p21
    %p28 = scmp.eq.s32.totalorder %s12, 1
    %p29 = por %p27, %p28
    %p30 = scmp.ne.s32.totalorder %s22, %s25
    %p31 = scmp.eq.s32.totalorder %s12, 0
    %p32 = por %p30, %p31
    %p33 = scmp.ne.s32.totalorder %s22, %s25
    %p34 = scmp.eq.s32.totalorder %s17, 1
    %p35 = por %p33, %p34
    %p36 = scmp.ne.s32.totalorder %s25, %s26
    %p37 = scmp.eq.s32.totalorder %s17, 0
    %p38 = por %p36, %p37
    %p39 = scmp.ne.s32.totalorder %s25, %s26
    %p40 = scmp.eq.s32.totalorder %s18, 1
    %p41 = por %p39, %p40
    %p43 = scmp.ne.s32.totalorder %s26, %s42
    %p44 = scmp.eq.s32.totalorder %s18, 0
    %p45 = por %p43, %p44
    %s47 = sadd.s32 %s46, 1
    %p50 = scmp.eq.s32.totalorder %s12, 1
    %p51 = scmp.ne.s32.totalorder %s46, %s48
    %p52 = scmp.eq.s32.totalorder %s12, 0
    %p53 = por %p51, %p52
    %p54 = scmp.ne.s32.totalorder %s46, %s48
    %p55 = scmp.eq.s32.totalorder %s17, 1
    %p56 = por %p54, %p55
    %p57 = scmp.ne.s32.totalorder %s48, %s49
    %p58 = scmp.eq.s32.totalorder %s17, 0
    %p59 = por %p57, %p58
    %p60 = scmp.ne.s32.totalorder %s48, %s49
    %p61 = scmp.eq.s32.totalorder %s18, 1
    %p62 = por %p60, %p61
    %p64 = scmp.ne.s32.totalorder %s49, %s63
    %p65 = scmp.eq.s32.totalorder %s18, 0
    %p66 = por %p64, %p65
    %s68 = sadd.s32 %s67, 1
    %p71 = scmp.eq.s32.totalorder %s12, 1
    %p72 = scmp.ne.s32.totalorder %s67, %s69
    %p73 = scmp.eq.s32.totalorder %s12, 0
    %p74 = por %p72, %p73
    %p75 = scmp.ne.s32.totalorder %s67, %s69
    %p76 = scmp.eq.s32.totalorder %s17, 1
    %p77 = por %p75, %p76
    %p78 = scmp.ne.s32.totalorder %s69, %s70
    %p79 = scmp.eq.s32.totalorder %s17, 0
    %p80 = por %p78, %p79
    %p81 = scmp.ne.s32.totalorder %s69, %s70
    %p82 = scmp.eq.s32.totalorder %s18, 1
    %p83 = por %p81, %p82
    %p85 = scmp.ne.s32.totalorder %s70, %s84
    %p86 = scmp.eq.s32.totalorder %s18, 0
    %p87 = por %p85, %p86
    %s89 = sadd.s32 %s88, 1
    %p92 = scmp.eq.s32.totalorder %s12, 1
    %p93 = scmp.ne.s32.totalorder %s88, %s90
    %p94 = scmp.eq.s32.totalorder %s12, 0
    %p95 = por %p93, %p94
    %p96 = scmp.ne.s32.totalorder %s88, %s90
    %p97 = scmp.eq.s32.totalorder %s17, 1
    %p98 = por %p96, %p97
    %p99 = scmp.ne.s32.totalorder %s90, %s91
    %p100 = scmp.eq.s32.totalorder %s17, 0
    %p101 = por %p99, %p100
    %p102 = scmp.ne.s32.totalorder %s90, %s91
    %p103 = scmp.eq.s32.totalorder %s18, 1
    %p104 = por %p102, %p103
    %p106 = scmp.ne.s32.totalorder %s91, %s105
    %p107 = scmp.eq.s32.totalorder %s18, 0
    %p108 = por %p106, %p107
    %s110 = sadd.s32 %s109, 1
    %p113 = scmp.eq.s32.totalorder %s12, 1
    %p114 = scmp.ne.s32.totalorder %s109, %s111
    %p115 = scmp.eq.s32.totalorder %s12, 0
    %p116 = por %p114, %p115
    %p117 = scmp.ne.s32.totalorder %s109, %s111
    %p118 = scmp.eq.s32.totalorder %s17, 1
    %p119 = por %p117, %p118
    %p120 = scmp.ne.s32.totalorder %s111, %s112
    %p121 = scmp.eq.s32.totalorder %s17, 0
    %p122 = por %p120, %p121
    %p123 = scmp.ne.s32.totalorder %s111, %s112
    %p124 = scmp.eq.s32.totalorder %s18, 1
    %p125 = por %p123, %p124
    %p127 = scmp.ne.s32.totalorder %s112, %s126
    %p128 = scmp.eq.s32.totalorder %s18, 0
    %p129 = por %p127, %p128
    %s131 = sadd.s32 %s130, 1
    %p134 = scmp.eq.s32.totalorder %s12, 1
    %p135 = scmp.ne.s32.totalorder %s130, %s132
    %p136 = scmp.eq.s32.totalorder %s12, 0
    %p137 = por %p135, %p136
    %p138 = scmp.ne.s32.totalorder %s130, %s132
    %p139 = scmp.eq.s32.totalorder %s17, 1
    %p140 = por %p138, %p139
    %p141 = scmp.ne.s32.totalorder %s132, %s133
    %p142 = scmp.eq.s32.totalorder %s17, 0
    %p143 = por %p141, %p142
    %p144 = scmp.ne.s32.totalorder %s132, %s133
    %p145 = scmp.eq.s32.totalorder %s18, 1
    %p146 = por %p144, %p145
    %p148 = scmp.ne.s32.totalorder %s133, %s147
    %p149 = scmp.eq.s32.totalorder %s18, 0
    %p150 = por %p148, %p149
    %s151 = ssub.s32 %s12, %s19
    %p152 = scmp.eq.s32.totalorder %s151, 0
    %s154 = sadd.s32 %s153, 1
    %s155 = scalar_select %p152, %s153, %s154
    %p158 = pneg %p152
    %p159 = scmp.eq.s32.totalorder %s12, 1
    %p160 = por %p158, %p159
    %p161 = scmp.ne.s32.totalorder %s153, %s156
    %p162 = scmp.eq.s32.totalorder %s12, 0
    %p163 = por %p161, %p162
    %p164 = scmp.ne.s32.totalorder %s153, %s156
    %p165 = scmp.eq.s32.totalorder %s17, 1
    %p166 = por %p164, %p165
    %p167 = scmp.ne.s32.totalorder %s156, %s157
    %p168 = scmp.eq.s32.totalorder %s17, 0
    %p169 = por %p167, %p168
    %p170 = scmp.ne.s32.totalorder %s156, %s157
    %p171 = scmp.eq.s32.totalorder %s18, 1
    %p172 = por %p170, %p171
    %p174 = scmp.ne.s32.totalorder %s157, %s173
    %p175 = scmp.eq.s32.totalorder %s18, 0
    %p176 = por %p174, %p175
    %p177 = scmp.le.s32.totalorder 1, %s12
    %p178 = scmp.lt.s32.totalorder %s12, 3
    %p179 = pnand %p177, %p178
    %p180 = pneg %p179
    // Predicated region
    $region9: #{dfus_block_forward.1} parent=5 // pred_check
      _
    $region10: #{dfus_block_forward.1} parent=5 // pred_check_branch
      %182 = sbr.rel (%p179) target = $region12
    $region11: #{dfus_block_forward.1} parent=5 // pred_region
      %s183 = ssub.s32 %s12, 1
      // Predicated region
      $region13: #{dfus_block_forward.1} parent=11 // pred_check
        %p184 = pneg %p59
      $region14: #{dfus_block_forward.1} parent=11 // pred_check_branch
        %186 = sbr.rel (%p184) target = $region16
      $region15: #{dfus_block_forward.1} parent=11 // pred_region
        _
      $region16: #{dfus_block_forward.1} parent=11 // pred_fallthru
        _
      // Predicated region
      $region17: #{dfus_block_forward.1} parent=11 // pred_check
        %p187 = pneg %p80
      $region18: #{dfus_block_forward.1} parent=11 // pred_check_branch
        %189 = sbr.rel (%p187) target = $region20
      $region19: #{dfus_block_forward.1} parent=11 // pred_region
        _
      $region20: #{dfus_block_forward.1} parent=11 // pred_fallthru
        _
      // Predicated region
      $region21: #{dfus_block_forward.1} parent=11 // pred_check
        %p190 = pneg %p101
      $region22: #{dfus_block_forward.1} parent=11 // pred_check_branch
        %192 = sbr.rel (%p190) target = $region24
      $region23: #{dfus_block_forward.1} parent=11 // pred_region
        _
      $region24: #{dfus_block_forward.1} parent=11 // pred_fallthru
        _
      // Predicated region
      $region25: #{dfus_block_forward.1} parent=11 // pred_check
        %p193 = pneg %p122
      $region26: #{dfus_block_forward.1} parent=11 // pred_check_branch
        %195 = sbr.rel (%p193) target = $region28
      $region27: #{dfus_block_forward.1} parent=11 // pred_region
        _
      $region28: #{dfus_block_forward.1} parent=11 // pred_fallthru
        _
      // Predicated region
      $region29: #{dfus_block_forward.1} parent=11 // pred_check
        %p196 = pneg %p143
      $region30: #{dfus_block_forward.1} parent=11 // pred_check_branch
        %198 = sbr.rel (%p196) target = $region32
      $region31: #{dfus_block_forward.1} parent=11 // pred_region
        _
      $region32: #{dfus_block_forward.1} parent=11 // pred_fallthru
        _
    $region12: #{dfus_block_forward.1} parent=5 // pred_fallthru
      _
    %p199 = scmp.lt.s32.totalorder %s12, 2
    // Predicated region
    $region33: #{dfus_block_forward.1} parent=5 // pred_check
      %p200 = pneg %p199
    $region34: #{dfus_block_forward.1} parent=5 // pred_check_branch
      %202 = sbr.rel (%p200) target = $region36
    $region35: #{dfus_block_forward.1} parent=5 // pred_region
      // Predicated region
      $region37: #{dfus_block_forward.1} parent=35 // pred_check
        %p203 = pneg %p32
      $region38: #{dfus_block_forward.1} parent=35 // pred_check_branch
        %205 = sbr.rel (%p203) target = $region40
      $region39: #{dfus_block_forward.1} parent=35 // pred_region
        %p206 = scmp.lt.s32.totalorder %s12, 1
        %s207 = scalar_select %p206, %s12, 1
        %s208 = smul.addr %s207, 32
        %s209 = smul.addr %s208, 8
        %s210 = scalar_lea.vmem %s0, %s209
      $region40: #{dfus_block_forward.1} parent=35 // pred_fallthru
        _
    $region36: #{dfus_block_forward.1} parent=5 // pred_fallthru
      _
    %p211 = scmp.le.s32.totalorder 1, %s12
    %p212 = scmp.lt.s32.totalorder %s12, 3
    %p213 = pnand %p211, %p212
    %p214 = pneg %p213
    // Predicated region
    $region41: #{dfus_block_forward.1} parent=5 // pred_check
      _
    $region42: #{dfus_block_forward.1} parent=5 // pred_check_branch
      %216 = sbr.rel (%p213) target = $region44
    $region43: #{dfus_block_forward.1} parent=5 // pred_region
      %s217 = ssub.s32 %s12, 1
      %p218 = scmp.lt.s32.totalorder %s17, 1
      %s219 = scalar_select %p218, %s17, 1
      %s220 = smul.addr %s219, 32
      %s221 = smul.addr %s220, 8
      %s222 = scalar_lea.vmem %s0, %s221
      %p223 = pneg %p38
      %p224 = pneg %p35
      %p225 = pneg %p59
      %p226 = pneg %p56
      %p227 = pneg %p80
      %p228 = pneg %p77
      %p229 = pneg %p101
      %p230 = pneg %p98
      %p231 = pneg %p122
      %p232 = pneg %p119
      %p233 = pneg %p143
      %p234 = pneg %p140
      %p235 = pneg %p169
      %p236 = pneg %p166
      %p237 = scmp.lt.s32.totalorder %s17, 1
      %s238 = scalar_select %p237, %s17, 1
      %s239 = smul.addr %s238, 32
      %s240 = smul.addr %s239, 8
      %s241 = scalar_lea.vmem %s6, %s240
      %p242 = scmp.lt.s32.totalorder %s17, 1
      %s243 = scalar_select %p242, %s17, 1
      %s244 = smul.addr %s243, 32
      %s245 = smul.addr %s244, 8
      %s246 = scalar_lea.vmem %s0, %s245
      %p247 = scmp.lt.s32.totalorder %s17, 1
      %s248 = scalar_select %p247, %s17, 1
      %s249 = smul.addr %s248, 32
      %s250 = smul.addr %s249, 8
      %s251 = scalar_lea.vmem %s6, %s250
      %v252 = vld [vmem:[%s246] sm:$0xff]
      %v253 = vld [vmem:[%s246 + $0x8] sm:$0xff]
      %v254 = vld [vmem:[%s246 + $0x10] sm:$0xff]
      %v255 = vld [vmem:[%s246 + $0x18] sm:$0xff]
      %v256 = vld [vmem:[%s246 + $0x20] sm:$0xff]
      %v257 = vld [vmem:[%s246 + $0x28] sm:$0xff]
      %v258 = vld [vmem:[%s246 + $0x30] sm:$0xff]
      %v259 = vld [vmem:[%s246 + $0x38] sm:$0xff]
      %v260 = vld [vmem:[%s246 + $0x40] sm:$0xff]
      %v261 = vld [vmem:[%s246 + $0x48] sm:$0xff]
      %v262 = vld [vmem:[%s246 + $0x50] sm:$0xff]
      %v263 = vld [vmem:[%s246 + $0x58] sm:$0xff]
      %v264 = vld [vmem:[%s246 + $0x60] sm:$0xff]
      %v265 = vld [vmem:[%s246 + $0x68] sm:$0xff]
      %v266 = vld [vmem:[%s246 + $0x70] sm:$0xff]
      %v267 = vld [vmem:[%s246 + $0x78] sm:$0xff]
      %v268 = vld [vmem:[%s246 + $0x80] sm:$0xff]
      %v269 = vld [vmem:[%s246 + $0x88] sm:$0xff]
      %v270 = vld [vmem:[%s246 + $0x90] sm:$0xff]
      %v271 = vld [vmem:[%s246 + $0x98] sm:$0xff]
      %v272 = vld [vmem:[%s246 + $0xa0] sm:$0xff]
      %v273 = vld [vmem:[%s246 + $0xa8] sm:$0xff]
      %v274 = vld [vmem:[%s246 + $0xb0] sm:$0xff]
      %v275 = vld [vmem:[%s246 + $0xb8] sm:$0xff]
      %v276 = vld [vmem:[%s246 + $0xc0] sm:$0xff]
      %v277 = vld [vmem:[%s246 + $0xc8] sm:$0xff]
      %v278 = vld [vmem:[%s246 + $0xd0] sm:$0xff]
      %v279 = vld [vmem:[%s246 + $0xd8] sm:$0xff]
      %v280 = vld [vmem:[%s246 + $0xe0] sm:$0xff]
      %v281 = vld [vmem:[%s246 + $0xe8] sm:$0xff]
      %v282 = vld [vmem:[%s246 + $0xf0] sm:$0xff]
      %v283 = vld [vmem:[%s246 + $0xf8] sm:$0xff]
      %v284 = vld [vmem:[%s1] sm:$0xf]
      %vm285 = vcmask 31744
      %v287 = vsel %vm285, %v252, 0
      %v290 = vsel %vm285, %v253, 0
      %v293 = vsel %vm285, %v254, 0
      %v296 = vsel %vm285, %v255, 0
      %v299 = vsel %vm285, %v256, 0
      %v302 = vsel %vm285, %v257, 0
      %v305 = vsel %vm285, %v258, 0
      %v308 = vsel %vm285, %v259, 0
      %v311 = vsel %vm285, %v260, 0
      %v314 = vsel %vm285, %v261, 0
      %v317 = vsel %vm285, %v262, 0
      %v320 = vsel %vm285, %v263, 0
      %v323 = vsel %vm285, %v264, 0
      %v326 = vsel %vm285, %v265, 0
      %v329 = vsel %vm285, %v266, 0
      %v332 = vsel %vm285, %v267, 0
      %v335 = vsel %vm285, %v268, 0
      %v338 = vsel %vm285, %v269, 0
      %v341 = vsel %vm285, %v270, 0
      %v344 = vsel %vm285, %v271, 0
      %v347 = vsel %vm285, %v272, 0
      %v350 = vsel %vm285, %v273, 0
      %v353 = vsel %vm285, %v274, 0
      %v356 = vsel %vm285, %v275, 0
      %v359 = vsel %vm285, %v276, 0
      %v362 = vsel %vm285, %v277, 0
      %v365 = vsel %vm285, %v278, 0
      %v368 = vsel %vm285, %v279, 0
      %v371 = vsel %vm285, %v280, 0
      %v374 = vsel %vm285, %v281, 0
      %v377 = vsel %vm285, %v282, 0
      %v380 = vsel %vm285, %v283, 0
      %vm382 = vcmask 1043456
      %v384 = vsel %vm382, %v284, 0
      %386 = vmatpush.msra.mxu0 0.0
      %387 = vmatpush.msra.mxu0 0.0
      %388 = vmatpush.msra.mxu0 0.0
      %389 = vmatpush.msra.mxu0 0.0
      %390 = vmatpush.msra.mxu0 0.0
      %391 = vmatpush.msra.mxu0 0.0
      %392 = vmatpush.msra.mxu0 0.0
      %393 = vmatpush.msra.mxu0 0.0
      %394 = vmatpush.msra.mxu0 0.0
      %395 = vmatpush.msra.mxu0 0.0
      %396 = vmatpush.msra.mxu0 0.0
      %397 = vmatpush.msra.mxu0 0.0
      %398 = vmatpush.msra.mxu0 0.0
      %399 = vmatpush.msra.mxu0 0.0
      %400 = vmatpush.msra.mxu0 0.0
      %401 = vmatpush.msra.mxu0 %v384
      %402 = vmatmul.f32.gmra.mxu0 %v287
      %v403 = vpop.f32.mrf.mxu0
      %v404 = vadd.f32 0.0, %v403
      %405 = vmatmul.f32.gmra.mxu0 %v290
      %v406 = vpop.f32.mrf.mxu0
      %v407 = vadd.f32 0.0, %v406
      %408 = vmatmul.f32.gmra.mxu0 %v293
      %v409 = vpop.f32.mrf.mxu0
      %v410 = vadd.f32 0.0, %v409
      %411 = vmatmul.f32.gmra.mxu0 %v296
      %v412 = vpop.f32.mrf.mxu0
      %v413 = vadd.f32 0.0, %v412
      %414 = vmatmul.f32.gmra.mxu0 %v299
      %v415 = vpop.f32.mrf.mxu0
      %v416 = vadd.f32 0.0, %v415
      %417 = vmatmul.f32.gmra.mxu0 %v302
      %v418 = vpop.f32.mrf.mxu0
      %v419 = vadd.f32 0.0, %v418
      %420 = vmatmul.f32.gmra.mxu0 %v305
      %v421 = vpop.f32.mrf.mxu0
      %v422 = vadd.f32 0.0, %v421
      %423 = vmatmul.f32.gmra.mxu0 %v308
      %v424 = vpop.f32.mrf.mxu0
      %v425 = vadd.f32 0.0, %v424
      %426 = vmatmul.f32.gmra.mxu0 %v311
      %v427 = vpop.f32.mrf.mxu0
      %v428 = vadd.f32 0.0, %v427
      %429 = vmatmul.f32.gmra.mxu0 %v314
      %v430 = vpop.f32.mrf.mxu0
      %v431 = vadd.f32 0.0, %v430
      %432 = vmatmul.f32.gmra.mxu0 %v317
      %v433 = vpop.f32.mrf.mxu0
      %v434 = vadd.f32 0.0, %v433
      %435 = vmatmul.f32.gmra.mxu0 %v320
      %v436 = vpop.f32.mrf.mxu0
      %v437 = vadd.f32 0.0, %v436
      %438 = vmatmul.f32.gmra.mxu0 %v323
      %v439 = vpop.f32.mrf.mxu0
      %v440 = vadd.f32 0.0, %v439
      %441 = vmatmul.f32.gmra.mxu0 %v326
      %v442 = vpop.f32.mrf.mxu0
      %v443 = vadd.f32 0.0, %v442
      %444 = vmatmul.f32.gmra.mxu0 %v329
      %v445 = vpop.f32.mrf.mxu0
      %v446 = vadd.f32 0.0, %v445
      %447 = vmatmul.f32.gmra.mxu0 %v332
      %v448 = vpop.f32.mrf.mxu0
      %v449 = vadd.f32 0.0, %v448
      %450 = vmatmul.f32.gmra.mxu0 %v335
      %v451 = vpop.f32.mrf.mxu0
      %v452 = vadd.f32 0.0, %v451
      %453 = vmatmul.f32.gmra.mxu0 %v338
      %v454 = vpop.f32.mrf.mxu0
      %v455 = vadd.f32 0.0, %v454
      %456 = vmatmul.f32.gmra.mxu0 %v341
      %v457 = vpop.f32.mrf.mxu0
      %v458 = vadd.f32 0.0, %v457
      %459 = vmatmul.f32.gmra.mxu0 %v344
      %v460 = vpop.f32.mrf.mxu0
      %v461 = vadd.f32 0.0, %v460
      %462 = vmatmul.f32.gmra.mxu0 %v347
      %v463 = vpop.f32.mrf.mxu0
      %v464 = vadd.f32 0.0, %v463
      %465 = vmatmul.f32.gmra.mxu0 %v350
      %v466 = vpop.f32.mrf.mxu0
      %v467 = vadd.f32 0.0, %v466
      %468 = vmatmul.f32.gmra.mxu0 %v353
      %v469 = vpop.f32.mrf.mxu0
      %v470 = vadd.f32 0.0, %v469
      %471 = vmatmul.f32.gmra.mxu0 %v356
      %v472 = vpop.f32.mrf.mxu0
      %v473 = vadd.f32 0.0, %v472
      %474 = vmatmul.f32.gmra.mxu0 %v359
      %v475 = vpop.f32.mrf.mxu0
      %v476 = vadd.f32 0.0, %v475
      %477 = vmatmul.f32.gmra.mxu0 %v362
      %v478 = vpop.f32.mrf.mxu0
      %v479 = vadd.f32 0.0, %v478
      %480 = vmatmul.f32.gmra.mxu0 %v365
      %v481 = vpop.f32.mrf.mxu0
      %v482 = vadd.f32 0.0, %v481
      %483 = vmatmul.f32.gmra.mxu0 %v368
      %v484 = vpop.f32.mrf.mxu0
      %v485 = vadd.f32 0.0, %v484
      %486 = vmatmul.f32.gmra.mxu0 %v371
      %v487 = vpop.f32.mrf.mxu0
      %v488 = vadd.f32 0.0, %v487
      %489 = vmatmul.f32.gmra.mxu0 %v374
      %v490 = vpop.f32.mrf.mxu0
      %v491 = vadd.f32 0.0, %v490
      %492 = vmatmul.f32.gmra.mxu0 %v377
      %v493 = vpop.f32.mrf.mxu0
      %v494 = vadd.f32 0.0, %v493
      %495 = vmatmul.f32.gmra.mxu0 %v380
      %v496 = vpop.f32.mrf.mxu0
      %v497 = vadd.f32 0.0, %v496
      %498 = vdwg.mxu0
      %v499 = vmax.f32 %v404, 0.0
      %v500 = vmax.f32 %v407, 0.0
      %v501 = vmax.f32 %v410, 0.0
      %v502 = vmax.f32 %v413, 0.0
      %v503 = vmax.f32 %v416, 0.0
      %v504 = vmax.f32 %v419, 0.0
      %v505 = vmax.f32 %v422, 0.0
      %v506 = vmax.f32 %v425, 0.0
      %v507 = vmax.f32 %v428, 0.0
      %v508 = vmax.f32 %v431, 0.0
      %v509 = vmax.f32 %v434, 0.0
      %v510 = vmax.f32 %v437, 0.0
      %v511 = vmax.f32 %v440, 0.0
      %v512 = vmax.f32 %v443, 0.0
      %v513 = vmax.f32 %v446, 0.0
      %v514 = vmax.f32 %v449, 0.0
      %v515 = vmax.f32 %v452, 0.0
      %v516 = vmax.f32 %v455, 0.0
      %v517 = vmax.f32 %v458, 0.0
      %v518 = vmax.f32 %v461, 0.0
      %v519 = vmax.f32 %v464, 0.0
      %v520 = vmax.f32 %v467, 0.0
      %v521 = vmax.f32 %v470, 0.0
      %v522 = vmax.f32 %v473, 0.0
      %v523 = vmax.f32 %v476, 0.0
      %v524 = vmax.f32 %v479, 0.0
      %v525 = vmax.f32 %v482, 0.0
      %v526 = vmax.f32 %v485, 0.0
      %v527 = vmax.f32 %v488, 0.0
      %v528 = vmax.f32 %v491, 0.0
      %v529 = vmax.f32 %v494, 0.0
      %v530 = vmax.f32 %v497, 0.0
      %531 = vst [vmem:[#allocation2] sm:$0xff] 0.0
      %532 = vst [vmem:[#allocation2 + $0x8] sm:$0xff] 0.0
      %533 = vst [vmem:[#allocation2 + $0x10] sm:$0xff] 0.0
      %534 = vst [vmem:[#allocation2 + $0x118] sm:$0xff] 0.0
      %535 = vst [vmem:[#allocation2 + $0x120] sm:$0xff] 0.0
      %536 = vst [vmem:[#allocation2 + $0x128] sm:$0xff] 0.0
      %537 = vst [vmem:[#allocation2 + $0x18] sm:$0xff] %v499
      %538 = vst [vmem:[#allocation2 + $0x20] sm:$0xff] %v500
      %539 = vst [vmem:[#allocation2 + $0x28] sm:$0xff] %v501
      %540 = vst [vmem:[#allocation2 + $0x30] sm:$0xff] %v502
      %541 = vst [vmem:[#allocation2 + $0x38] sm:$0xff] %v503
      %542 = vst [vmem:[#allocation2 + $0x40] sm:$0xff] %v504
      %543 = vst [vmem:[#allocation2 + $0x48] sm:$0xff] %v505
      %544 = vst [vmem:[#allocation2 + $0x50] sm:$0xff] %v506
      %545 = vst [vmem:[#allocation2 + $0x58] sm:$0xff] %v507
      %546 = vst [vmem:[#allocation2 + $0x60] sm:$0xff] %v508
      %547 = vst [vmem:[#allocation2 + $0x68] sm:$0xff] %v509
      %548 = vst [vmem:[#allocation2 + $0x70] sm:$0xff] %v510
      %549 = vst [vmem:[#allocation2 + $0x78] sm:$0xff] %v511
      %550 = vst [vmem:[#allocation2 + $0x80] sm:$0xff] %v512
      %551 = vst [vmem:[#allocation2 + $0x88] sm:$0xff] %v513
      %552 = vst [vmem:[#allocation2 + $0x90] sm:$0xff] %v514
      %553 = vst [vmem:[#allocation2 + $0x98] sm:$0xff] %v515
      %554 = vst [vmem:[#allocation2 + $0xa0] sm:$0xff] %v516
      %555 = vst [vmem:[#allocation2 + $0xa8] sm:$0xff] %v517
      %556 = vst [vmem:[#allocation2 + $0xb0] sm:$0xff] %v518
      %557 = vst [vmem:[#allocation2 + $0xb8] sm:$0xff] %v519
      %558 = vst [vmem:[#allocation2 + $0xc0] sm:$0xff] %v520
      %559 = vst [vmem:[#allocation2 + $0xc8] sm:$0xff] %v521
      %560 = vst [vmem:[#allocation2 + $0xd0] sm:$0xff] %v522
      %561 = vst [vmem:[#allocation2 + $0xd8] sm:$0xff] %v523
      %562 = vst [vmem:[#allocation2 + $0xe0] sm:$0xff] %v524
      %563 = vst [vmem:[#allocation2 + $0xe8] sm:$0xff] %v525
      %564 = vst [vmem:[#allocation2 + $0xf0] sm:$0xff] %v526
      %565 = vst [vmem:[#allocation2 + $0xf8] sm:$0xff] %v527
      %566 = vst [vmem:[#allocation2 + $0x100] sm:$0xff] %v528
      %567 = vst [vmem:[#allocation2 + $0x108] sm:$0xff] %v529
      %568 = vst [vmem:[#allocation2 + $0x110] sm:$0xff] %v530
      %v569 = vlaneseq
      %v570 = vshrl.u32 %v569, 7
      %v571 = vadd.s32 %v570, 8
      %v572 = vadd.s32 %v570, 16
      %v573 = vadd.s32 %v570, 24
      %v574 = vadd.s32 %v570, 32
      %v575 = vadd.s32 %v570, 40
      %v576 = vadd.s32 %v570, 48
      %v577 = vadd.s32 %v570, 56
      %v578 = vadd.s32 %v570, 64
      %v579 = vadd.s32 %v570, 72
      %v580 = vadd.s32 %v570, 80
      %v581 = vadd.s32 %v570, 88
      %v582 = vadd.s32 %v570, 96
      %v583 = vadd.s32 %v570, 104
      %v584 = vadd.s32 %v570, 112
      %v585 = vadd.s32 %v570, 120
      %v586 = vadd.s32 %v570, 128
      %v587 = vadd.s32 %v570, 136
      %v588 = vadd.s32 %v570, 144
      %v589 = vadd.s32 %v570, 152
      %v590 = vadd.s32 %v570, 160
      %v591 = vadd.s32 %v570, 168
      %v592 = vadd.s32 %v570, 176
      %v593 = vadd.s32 %v570, 184
      %v594 = vadd.s32 %v570, 192
      %v595 = vadd.s32 %v570, 200
      %v596 = vadd.s32 %v570, 208
      %v597 = vadd.s32 %v570, 216
      %v598 = vadd.s32 %v570, 224
      %v599 = vadd.s32 %v570, 232
      %v600 = vadd.s32 %v570, 240
      %v601 = vadd.s32 %v570, 248
      %vm602 = vcmp.lt.s32.totalorder %v570, 0
      %v603 = vsub.s32 0, %v570
      %v604 = vsel %vm602, %v603, %v570
      %v605 = vshrl.u32 %v604, 4
      %v606 = vand.u32 %v604, 15
      %v607 = vsub.s32 0, %v606
      %v608 = vsel %vm602, %v607, %v606
      %vm609 = vcmp.lt.s32.totalorder %v571, 0
      %v610 = vsub.s32 0, %v571
      %v611 = vsel %vm609, %v610, %v571
      %v612 = vshrl.u32 %v611, 4
      %v613 = vand.u32 %v611, 15
      %v614 = vsub.s32 0, %v613
      %v615 = vsel %vm609, %v614, %v613
      %vm616 = vcmp.lt.s32.totalorder %v572, 0
      %v617 = vsub.s32 0, %v572
      %v618 = vsel %vm616, %v617, %v572
      %v619 = vshrl.u32 %v618, 4
      %v620 = vand.u32 %v618, 15
      %v621 = vsub.s32 0, %v620
      %v622 = vsel %vm616, %v621, %v620
      %vm623 = vcmp.lt.s32.totalorder %v573, 0
      %v624 = vsub.s32 0, %v573
      %v625 = vsel %vm623, %v624, %v573
      %v626 = vshrl.u32 %v625, 4
      %v627 = vand.u32 %v625, 15
      %v628 = vsub.s32 0, %v627
      %v629 = vsel %vm623, %v628, %v627
      %vm630 = vcmp.lt.s32.totalorder %v574, 0
      %v631 = vsub.s32 0, %v574
      %v632 = vsel %vm630, %v631, %v574
      %v633 = vshrl.u32 %v632, 4
      %v634 = vand.u32 %v632, 15
      %v635 = vsub.s32 0, %v634
      %v636 = vsel %vm630, %v635, %v634
      %vm637 = vcmp.lt.s32.totalorder %v575, 0
      %v638 = vsub.s32 0, %v575
      %v639 = vsel %vm637, %v638, %v575
      %v640 = vshrl.u32 %v639, 4
      %v641 = vand.u32 %v639, 15
      %v642 = vsub.s32 0, %v641
      %v643 = vsel %vm637, %v642, %v641
      %vm644 = vcmp.lt.s32.totalorder %v576, 0
      %v645 = vsub.s32 0, %v576
      %v646 = vsel %vm644, %v645, %v576
      %v647 = vshrl.u32 %v646, 4
      %v648 = vand.u32 %v646, 15
      %v649 = vsub.s32 0, %v648
      %v650 = vsel %vm644, %v649, %v648
      %vm651 = vcmp.lt.s32.totalorder %v577, 0
      %v652 = vsub.s32 0, %v577
      %v653 = vsel %vm651, %v652, %v577
      %v654 = vshrl.u32 %v653, 4
      %v655 = vand.u32 %v653, 15
      %v656 = vsub.s32 0, %v655
      %v657 = vsel %vm651, %v656, %v655
      %vm658 = vcmp.lt.s32.totalorder %v578, 0
      %v659 = vsub.s32 0, %v578
      %v660 = vsel %vm658, %v659, %v578
      %v661 = vshrl.u32 %v660, 4
      %v662 = vand.u32 %v660, 15
      %v663 = vsub.s32 0, %v662
      %v664 = vsel %vm658, %v663, %v662
      %vm665 = vcmp.lt.s32.totalorder %v579, 0
      %v666 = vsub.s32 0, %v579
      %v667 = vsel %vm665, %v666, %v579
      %v668 = vshrl.u32 %v667, 4
      %v669 = vand.u32 %v667, 15
      %v670 = vsub.s32 0, %v669
      %v671 = vsel %vm665, %v670, %v669
      %vm672 = vcmp.lt.s32.totalorder %v580, 0
      %v673 = vsub.s32 0, %v580
      %v674 = vsel %vm672, %v673, %v580
      %v675 = vshrl.u32 %v674, 4
      %v676 = vand.u32 %v674, 15
      %v677 = vsub.s32 0, %v676
      %v678 = vsel %vm672, %v677, %v676
      %vm679 = vcmp.lt.s32.totalorder %v581, 0
      %v680 = vsub.s32 0, %v581
      %v681 = vsel %vm679, %v680, %v581
      %v682 = vshrl.u32 %v681, 4
      %v683 = vand.u32 %v681, 15
      %v684 = vsub.s32 0, %v683
      %v685 = vsel %vm679, %v684, %v683
      %vm686 = vcmp.lt.s32.totalorder %v582, 0
      %v687 = vsub.s32 0, %v582
      %v688 = vsel %vm686, %v687, %v582
      %v689 = vshrl.u32 %v688, 4
      %v690 = vand.u32 %v688, 15
      %v691 = vsub.s32 0, %v690
      %v692 = vsel %vm686, %v691, %v690
      %vm693 = vcmp.lt.s32.totalorder %v583, 0
      %v694 = vsub.s32 0, %v583
      %v695 = vsel %vm693, %v694, %v583
      %v696 = vshrl.u32 %v695, 4
      %v697 = vand.u32 %v695, 15
      %v698 = vsub.s32 0, %v697
      %v699 = vsel %vm693, %v698, %v697
      %vm700 = vcmp.lt.s32.totalorder %v584, 0
      %v701 = vsub.s32 0, %v584
      %v702 = vsel %vm700, %v701, %v584
      %v703 = vshrl.u32 %v702, 4
      %v704 = vand.u32 %v702, 15
      %v705 = vsub.s32 0, %v704
      %v706 = vsel %vm700, %v705, %v704
      %vm707 = vcmp.lt.s32.totalorder %v585, 0
      %v708 = vsub.s32 0, %v585
      %v709 = vsel %vm707, %v708, %v585
      %v710 = vshrl.u32 %v709, 4
      %v711 = vand.u32 %v709, 15
      %v712 = vsub.s32 0, %v711
      %v713 = vsel %vm707, %v712, %v711
      %vm714 = vcmp.lt.s32.totalorder %v586, 0
      %v715 = vsub.s32 0, %v586
      %v716 = vsel %vm714, %v715, %v586
      %v717 = vshrl.u32 %v716, 4
      %v718 = vand.u32 %v716, 15
      %v719 = vsub.s32 0, %v718
      %v720 = vsel %vm714, %v719, %v718
      %vm721 = vcmp.lt.s32.totalorder %v587, 0
      %v722 = vsub.s32 0, %v587
      %v723 = vsel %vm721, %v722, %v587
      %v724 = vshrl.u32 %v723, 4
      %v725 = vand.u32 %v723, 15
      %v726 = vsub.s32 0, %v725
      %v727 = vsel %vm721, %v726, %v725
      %vm728 = vcmp.lt.s32.totalorder %v588, 0
      %v729 = vsub.s32 0, %v588
      %v730 = vsel %vm728, %v729, %v588
      %v731 = vshrl.u32 %v730, 4
      %v732 = vand.u32 %v730, 15
      %v733 = vsub.s32 0, %v732
      %v734 = vsel %vm728, %v733, %v732
      %vm735 = vcmp.lt.s32.totalorder %v589, 0
      %v736 = vsub.s32 0, %v589
      %v737 = vsel %vm735, %v736, %v589
      %v738 = vshrl.u32 %v737, 4
      %v739 = vand.u32 %v737, 15
      %v740 = vsub.s32 0, %v739
      %v741 = vsel %vm735, %v740, %v739
      %vm742 = vcmp.lt.s32.totalorder %v590, 0
      %v743 = vsub.s32 0, %v590
      %v744 = vsel %vm742, %v743, %v590
      %v745 = vshrl.u32 %v744, 4
      %v746 = vand.u32 %v744, 15
      %v747 = vsub.s32 0, %v746
      %v748 = vsel %vm742, %v747, %v746
      %vm749 = vcmp.lt.s32.totalorder %v591, 0
      %v750 = vsub.s32 0, %v591
      %v751 = vsel %vm749, %v750, %v591
      %v752 = vshrl.u32 %v751, 4
      %v753 = vand.u32 %v751, 15
      %v754 = vsub.s32 0, %v753
      %v755 = vsel %vm749, %v754, %v753
      %vm756 = vcmp.lt.s32.totalorder %v592, 0
      %v757 = vsub.s32 0, %v592
      %v758 = vsel %vm756, %v757, %v592
      %v759 = vshrl.u32 %v758, 4
      %v760 = vand.u32 %v758, 15
      %v761 = vsub.s32 0, %v760
      %v762 = vsel %vm756, %v761, %v760
      %vm763 = vcmp.lt.s32.totalorder %v593, 0
      %v764 = vsub.s32 0, %v593
      %v765 = vsel %vm763, %v764, %v593
      %v766 = vshrl.u32 %v765, 4
      %v767 = vand.u32 %v765, 15
      %v768 = vsub.s32 0, %v767
      %v769 = vsel %vm763, %v768, %v767
      %vm770 = vcmp.lt.s32.totalorder %v594, 0
      %v771 = vsub.s32 0, %v594
      %v772 = vsel %vm770, %v771, %v594
      %v773 = vshrl.u32 %v772, 4
      %v774 = vand.u32 %v772, 15
      %v775 = vsub.s32 0, %v774
      %v776 = vsel %vm770, %v775, %v774
      %vm777 = vcmp.lt.s32.totalorder %v595, 0
      %v778 = vsub.s32 0, %v595
      %v779 = vsel %vm777, %v778, %v595
      %v780 = vshrl.u32 %v779, 4
      %v781 = vand.u32 %v779, 15
      %v782 = vsub.s32 0, %v781
      %v783 = vsel %vm777, %v782, %v781
      %vm784 = vcmp.lt.s32.totalorder %v596, 0
      %v785 = vsub.s32 0, %v596
      %v786 = vsel %vm784, %v785, %v596
      %v787 = vshrl.u32 %v786, 4
      %v788 = vand.u32 %v786, 15
      %v789 = vsub.s32 0, %v788
      %v790 = vsel %vm784, %v789, %v788
      %vm791 = vcmp.lt.s32.totalorder %v597, 0
      %v792 = vsub.s32 0, %v597
      %v793 = vsel %vm791, %v792, %v597
      %v794 = vshrl.u32 %v793, 4
      %v795 = vand.u32 %v793, 15
      %v796 = vsub.s32 0, %v795
      %v797 = vsel %vm791, %v796, %v795
      %vm798 = vcmp.lt.s32.totalorder %v598, 0
      %v799 = vsub.s32 0, %v598
      %v800 = vsel %vm798, %v799, %v598
      %v801 = vshrl.u32 %v800, 4
      %v802 = vand.u32 %v800, 15
      %v803 = vsub.s32 0, %v802
      %v804 = vsel %vm798, %v803, %v802
      %vm805 = vcmp.lt.s32.totalorder %v599, 0
      %v806 = vsub.s32 0, %v599
      %v807 = vsel %vm805, %v806, %v599
      %v808 = vshrl.u32 %v807, 4
      %v809 = vand.u32 %v807, 15
      %v810 = vsub.s32 0, %v809
      %v811 = vsel %vm805, %v810, %v809
      %vm812 = vcmp.lt.s32.totalorder %v600, 0
      %v813 = vsub.s32 0, %v600
      %v814 = vsel %vm812, %v813, %v600
      %v815 = vshrl.u32 %v814, 4
      %v816 = vand.u32 %v814, 15
      %v817 = vsub.s32 0, %v816
      %v818 = vsel %vm812, %v817, %v816
      %vm819 = vcmp.lt.s32.totalorder %v601, 0
      %v820 = vsub.s32 0, %v601
      %v821 = vsel %vm819, %v820, %v601
      %v822 = vshrl.u32 %v821, 4
      %v823 = vand.u32 %v821, 15
      %v824 = vsub.s32 0, %v823
      %v825 = vsel %vm819, %v824, %v823
      %vm826 = vcmp.ne.s32.totalorder %v608, 0
      %vm827 = vcmp.ne.s32.totalorder %v615, 0
      %vm828 = vcmp.ne.s32.totalorder %v622, 0
      %vm829 = vcmp.ne.s32.totalorder %v629, 0
      %vm830 = vcmp.ne.s32.totalorder %v636, 0
      %vm831 = vcmp.ne.s32.totalorder %v643, 0
      %vm832 = vcmp.ne.s32.totalorder %v650, 0
      %vm833 = vcmp.ne.s32.totalorder %v657, 0
      %vm834 = vcmp.ne.s32.totalorder %v664, 0
      %vm835 = vcmp.ne.s32.totalorder %v671, 0
      %vm836 = vcmp.ne.s32.totalorder %v678, 0
      %vm837 = vcmp.ne.s32.totalorder %v685, 0
      %vm838 = vcmp.ne.s32.totalorder %v692, 0
      %vm839 = vcmp.ne.s32.totalorder %v699, 0
      %vm840 = vcmp.ne.s32.totalorder %v706, 0
      %vm841 = vcmp.ne.s32.totalorder %v713, 0
      %vm842 = vcmp.ne.s32.totalorder %v720, 0
      %vm843 = vcmp.ne.s32.totalorder %v727, 0
      %vm844 = vcmp.ne.s32.totalorder %v734, 0
      %vm845 = vcmp.ne.s32.totalorder %v741, 0
      %vm846 = vcmp.ne.s32.totalorder %v748, 0
      %vm847 = vcmp.ne.s32.totalorder %v755, 0
      %vm848 = vcmp.ne.s32.totalorder %v762, 0
      %vm849 = vcmp.ne.s32.totalorder %v769, 0
      %vm850 = vcmp.ne.s32.totalorder %v776, 0
      %vm851 = vcmp.ne.s32.totalorder %v783, 0
      %vm852 = vcmp.ne.s32.totalorder %v790, 0
      %vm853 = vcmp.ne.s32.totalorder %v797, 0
      %vm854 = vcmp.ne.s32.totalorder %v804, 0
      %vm855 = vcmp.ne.s32.totalorder %v811, 0
      %vm856 = vcmp.ne.s32.totalorder %v818, 0
      %vm857 = vcmp.ne.s32.totalorder %v825, 0
      %vm858 = vcmp.lt.s32.totalorder %v608, 0
      %vm859 = vcmp.lt.s32.totalorder %v615, 0
      %vm860 = vcmp.lt.s32.totalorder %v622, 0
      %vm861 = vcmp.lt.s32.totalorder %v629, 0
      %vm862 = vcmp.lt.s32.totalorder %v636, 0
      %vm863 = vcmp.lt.s32.totalorder %v643, 0
      %vm864 = vcmp.lt.s32.totalorder %v650, 0
      %vm865 = vcmp.lt.s32.totalorder %v657, 0
      %vm866 = vcmp.lt.s32.totalorder %v664, 0
      %vm867 = vcmp.lt.s32.totalorder %v671, 0
      %vm868 = vcmp.lt.s32.totalorder %v678, 0
      %vm869 = vcmp.lt.s32.totalorder %v685, 0
      %vm870 = vcmp.lt.s32.totalorder %v692, 0
      %vm871 = vcmp.lt.s32.totalorder %v699, 0
      %vm872 = vcmp.lt.s32.totalorder %v706, 0
      %vm873 = vcmp.lt.s32.totalorder %v713, 0
      %vm874 = vcmp.lt.s32.totalorder %v720, 0
      %vm875 = vcmp.lt.s32.totalorder %v727, 0
      %vm876 = vcmp.lt.s32.totalorder %v734, 0
      %vm877 = vcmp.lt.s32.totalorder %v741, 0
      %vm878 = vcmp.lt.s32.totalorder %v748, 0
      %vm879 = vcmp.lt.s32.totalorder %v755, 0
      %vm880 = vcmp.lt.s32.totalorder %v762, 0
      %vm881 = vcmp.lt.s32.totalorder %v769, 0
      %vm882 = vcmp.lt.s32.totalorder %v776, 0
      %vm883 = vcmp.lt.s32.totalorder %v783, 0
      %vm884 = vcmp.lt.s32.totalorder %v790, 0
      %vm885 = vcmp.lt.s32.totalorder %v797, 0
      %vm886 = vcmp.lt.s32.totalorder %v804, 0
      %vm887 = vcmp.lt.s32.totalorder %v811, 0
      %vm888 = vcmp.lt.s32.totalorder %v818, 0
      %vm889 = vcmp.lt.s32.totalorder %v825, 0
      %vm890 = vmand %vm858, %vm826
      %vm891 = vmand %vm859, %vm827
      %vm892 = vmand %vm860, %vm828
      %vm893 = vmand %vm861, %vm829
      %vm894 = vmand %vm862, %vm830
      %vm895 = vmand %vm863, %vm831
      %vm896 = vmand %vm864, %vm832
      %vm897 = vmand %vm865, %vm833
      %vm898 = vmand %vm866, %vm834
      %vm899 = vmand %vm867, %vm835
      %vm900 = vmand %vm868, %vm836
      %vm901 = vmand %vm869, %vm837
      %vm902 = vmand %vm870, %vm838
      %vm903 = vmand %vm871, %vm839
      %vm904 = vmand %vm872, %vm840
      %vm905 = vmand %vm873, %vm841
      %vm906 = vmand %vm874, %vm842
      %vm907 = vmand %vm875, %vm843
      %vm908 = vmand %vm876, %vm844
      %vm909 = vmand %vm877, %vm845
      %vm910 = vmand %vm878, %vm846
      %vm911 = vmand %vm879, %vm847
      %vm912 = vmand %vm880, %vm848
      %vm913 = vmand %vm881, %vm849
      %vm914 = vmand %vm882, %vm850
      %vm915 = vmand %vm883, %vm851
      %vm916 = vmand %vm884, %vm852
      %vm917 = vmand %vm885, %vm853
      %vm918 = vmand %vm886, %vm854
      %vm919 = vmand %vm887, %vm855
      %vm920 = vmand %vm888, %vm856
      %vm921 = vmand %vm889, %vm857
      %v922 = vadd.s32 %v608, 16
      %v923 = vadd.s32 %v615, 16
      %v924 = vadd.s32 %v622, 16
      %v925 = vadd.s32 %v629, 16
      %v926 = vadd.s32 %v636, 16
      %v927 = vadd.s32 %v643, 16
      %v928 = vadd.s32 %v650, 16
      %v929 = vadd.s32 %v657, 16
      %v930 = vadd.s32 %v664, 16
      %v931 = vadd.s32 %v671, 16
      %v932 = vadd.s32 %v678, 16
      %v933 = vadd.s32 %v685, 16
      %v934 = vadd.s32 %v692, 16
      %v935 = vadd.s32 %v699, 16
      %v936 = vadd.s32 %v706, 16
      %v937 = vadd.s32 %v713, 16
      %v938 = vadd.s32 %v720, 16
      %v939 = vadd.s32 %v727, 16
      %v940 = vadd.s32 %v734, 16
      %v941 = vadd.s32 %v741, 16
      %v942 = vadd.s32 %v748, 16
      %v943 = vadd.s32 %v755, 16
      %v944 = vadd.s32 %v762, 16
      %v945 = vadd.s32 %v769, 16
      %v946 = vadd.s32 %v776, 16
      %v947 = vadd.s32 %v783, 16
      %v948 = vadd.s32 %v790, 16
      %v949 = vadd.s32 %v797, 16
      %v950 = vadd.s32 %v804, 16
      %v951 = vadd.s32 %v811, 16
      %v952 = vadd.s32 %v818, 16
      %v953 = vadd.s32 %v825, 16
      %v954 = vsel %vm890, %v922, %v608
      %v955 = vsel %vm891, %v923, %v615
      %v956 = vsel %vm892, %v924, %v622
      %v957 = vsel %vm893, %v925, %v629
      %v958 = vsel %vm894, %v926, %v636
      %v959 = vsel %vm895, %v927, %v643
      %v960 = vsel %vm896, %v928, %v650
      %v961 = vsel %vm897, %v929, %v657
      %v962 = vsel %vm898, %v930, %v664
      %v963 = vsel %vm899, %v931, %v671
      %v964 = vsel %vm900, %v932, %v678
      %v965 = vsel %vm901, %v933, %v685
      %v966 = vsel %vm902, %v934, %v692
      %v967 = vsel %vm903, %v935, %v699
      %v968 = vsel %vm904, %v936, %v706
      %v969 = vsel %vm905, %v937, %v713
      %v970 = vsel %vm906, %v938, %v720
      %v971 = vsel %vm907, %v939, %v727
      %v972 = vsel %vm908, %v940, %v734
      %v973 = vsel %vm909, %v941, %v741
      %v974 = vsel %vm910, %v942, %v748
      %v975 = vsel %vm911, %v943, %v755
      %v976 = vsel %vm912, %v944, %v762
      %v977 = vsel %vm913, %v945, %v769
      %v978 = vsel %vm914, %v946, %v776
      %v979 = vsel %vm915, %v947, %v783
      %v980 = vsel %vm916, %v948, %v790
      %v981 = vsel %vm917, %v949, %v797
      %v982 = vsel %vm918, %v950, %v804
      %v983 = vsel %vm919, %v951, %v811
      %v984 = vsel %vm920, %v952, %v818
      %v985 = vsel %vm921, %v953, %v825
      %v986 = vld [vmem:[#allocation2 + $0x7] sm:$0xff]
      %v987 = vld [vmem:[#allocation2 + $0xf] sm:$0xff]
      %v988 = vld [vmem:[#allocation2 + $0x17] sm:$0xff]
      %v989 = vld [vmem:[#allocation2 + $0x1f] sm:$0xff]
      %v990 = vld [vmem:[#allocation2 + $0x27] sm:$0xff]
      %v991 = vld [vmem:[#allocation2 + $0x2f] sm:$0xff]
      %v992 = vld [vmem:[#allocation2 + $0x37] sm:$0xff]
      %v993 = vld [vmem:[#allocation2 + $0x3f] sm:$0xff]
      %v994 = vld [vmem:[#allocation2 + $0x47] sm:$0xff]
      %v995 = vld [vmem:[#allocation2 + $0x4f] sm:$0xff]
      %v996 = vld [vmem:[#allocation2 + $0x57] sm:$0xff]
      %v997 = vld [vmem:[#allocation2 + $0x5f] sm:$0xff]
      %v998 = vld [vmem:[#allocation2 + $0x67] sm:$0xff]
      %v999 = vld [vmem:[#allocation2 + $0x6f] sm:$0xff]
      %v1000 = vld [vmem:[#allocation2 + $0x77] sm:$0xff]
      %v1001 = vld [vmem:[#allocation2 + $0x7f] sm:$0xff]
      %v1002 = vld [vmem:[#allocation2 + $0x87] sm:$0xff]
      %v1003 = vld [vmem:[#allocation2 + $0x8f] sm:$0xff]
      %v1004 = vld [vmem:[#allocation2 + $0x97] sm:$0xff]
      %v1005 = vld [vmem:[#allocation2 + $0x9f] sm:$0xff]
      %v1006 = vld [vmem:[#allocation2 + $0xa7] sm:$0xff]
      %v1007 = vld [vmem:[#allocation2 + $0xaf] sm:$0xff]
      %v1008 = vld [vmem:[#allocation2 + $0xb7] sm:$0xff]
      %v1009 = vld [vmem:[#allocation2 + $0xbf] sm:$0xff]
      %v1010 = vld [vmem:[#allocation2 + $0xc7] sm:$0xff]
      %v1011 = vld [vmem:[#allocation2 + $0xcf] sm:$0xff]
      %v1012 = vld [vmem:[#allocation2 + $0xd7] sm:$0xff]
      %v1013 = vld [vmem:[#allocation2 + $0xdf] sm:$0xff]
      %v1014 = vld [vmem:[#allocation2 + $0xe7] sm:$0xff]
      %v1015 = vld [vmem:[#allocation2 + $0xef] sm:$0xff]
      %v1016 = vld [vmem:[#allocation2 + $0xf7] sm:$0xff]
      %v1017 = vld [vmem:[#allocation2 + $0xff] sm:$0xff]
      %v1018 = vld [vmem:[%s2] sm:$0xff]
      %v1019 = vld [vmem:[%s2 + $0x8] sm:$0xff]
      %v1020 = vld [vmem:[%s2 + $0x10] sm:$0xff]
      %v1021 = vld [vmem:[%s2 + $0x18] sm:$0xff]
      %v1022 = vld [vmem:[%s2 + $0x20] sm:$0xff]
      %v1023 = vld [vmem:[%s2 + $0x28] sm:$0xff]
      %v1024 = vld [vmem:[%s2 + $0x30] sm:$0xff]
      %v1025 = vld [vmem:[%s2 + $0x38] sm:$0xff]
      %v1026 = vld [vmem:[%s2 + $0x40] sm:$0xff]
      %v1027 = vld [vmem:[%s2 + $0x48] sm:$0xff]
      %v1028 = vld [vmem:[%s2 + $0x50] sm:$0xff]
      %v1029 = vld [vmem:[%s2 + $0x58] sm:$0xff]
      %v1030 = vld [vmem:[%s2 + $0x60] sm:$0xff]
      %v1031 = vld [vmem:[%s2 + $0x68] sm:$0xff]
      %v1032 = vld [vmem:[%s2 + $0x70] sm:$0xff]
      %v1033 = vld [vmem:[%s2 + $0x78] sm:$0xff]
      %v1034 = vld [vmem:[#allocation2 + $0x107] sm:$0xff]
      %v1035 = vld [vmem:[#allocation2 + $0x10f] sm:$0xff]
      %s1036 = scalar_lea.vmem %s2, 384
      %v1037 = vld [vmem:[%s1036] sm:$0xff]
      %v1038 = vld [vmem:[%s1036 + $0x8] sm:$0xff]
      %v1039 = vld [vmem:[%s1036 + $0x10] sm:$0xff]
      %v1040 = vld [vmem:[%s1036 + $0x18] sm:$0xff]
      %v1041 = vld [vmem:[%s1036 + $0x20] sm:$0xff]
      %v1042 = vld [vmem:[%s1036 + $0x28] sm:$0xff]
      %v1043 = vld [vmem:[%s1036 + $0x30] sm:$0xff]
      %v1044 = vld [vmem:[%s1036 + $0x38] sm:$0xff]
      %v1045 = vld [vmem:[%s1036 + $0x40] sm:$0xff]
      %v1046 = vld [vmem:[%s1036 + $0x48] sm:$0xff]
      %v1047 = vld [vmem:[%s1036 + $0x50] sm:$0xff]
      %v1048 = vld [vmem:[%s1036 + $0x58] sm:$0xff]
      %v1049 = vld [vmem:[%s1036 + $0x60] sm:$0xff]
      %v1050 = vld [vmem:[%s1036 + $0x68] sm:$0xff]
      %v1051 = vld [vmem:[%s1036 + $0x70] sm:$0xff]
      %v1052 = vld [vmem:[%s1036 + $0x78] sm:$0xff]
      %1053 = vmatpush.msra.mxu0 %v1052
      %1054 = vmatpush.msra.mxu0 %v1051
      %1055 = vmatpush.msra.mxu0 %v1050
      %1056 = vmatpush.msra.mxu0 %v1049
      %1057 = vmatpush.msra.mxu0 %v1048
      %1058 = vmatpush.msra.mxu0 %v1047
      %1059 = vmatpush.msra.mxu0 %v1046
      %1060 = vmatpush.msra.mxu0 %v1045
      %1061 = vmatpush.msra.mxu0 %v1044
      %1062 = vmatpush.msra.mxu0 %v1043
      %1063 = vmatpush.msra.mxu0 %v1042
      %1064 = vmatpush.msra.mxu0 %v1041
      %1065 = vmatpush.msra.mxu0 %v1040
      %1066 = vmatpush.msra.mxu0 %v1039
      %1067 = vmatpush.msra.mxu0 %v1038
      %1068 = vmatpush.msra.mxu0 %v1037
      %1069 = vmatmul.f32.gmra.mxu0 %v988
      %v1070 = vpop.f32.mrf.mxu0
      %v1071 = vadd.f32 0.0, %v1070
      %1072 = vmatmul.f32.gmra.mxu0 %v989
      %v1073 = vpop.f32.mrf.mxu0
      %v1074 = vadd.f32 0.0, %v1073
      %1075 = vmatmul.f32.gmra.mxu0 %v990
      %v1076 = vpop.f32.mrf.mxu0
      %v1077 = vadd.f32 0.0, %v1076
      %1078 = vmatmul.f32.gmra.mxu0 %v991
      %v1079 = vpop.f32.mrf.mxu0
      %v1080 = vadd.f32 0.0, %v1079
      %1081 = vmatmul.f32.gmra.mxu0 %v992
      %v1082 = vpop.f32.mrf.mxu0
      %v1083 = vadd.f32 0.0, %v1082
      %1084 = vmatmul.f32.gmra.mxu0 %v993
      %v1085 = vpop.f32.mrf.mxu0
      %v1086 = vadd.f32 0.0, %v1085
      %1087 = vmatmul.f32.gmra.mxu0 %v994
      %v1088 = vpop.f32.mrf.mxu0
      %v1089 = vadd.f32 0.0, %v1088
      %1090 = vmatmul.f32.gmra.mxu0 %v995
      %v1091 = vpop.f32.mrf.mxu0
      %v1092 = vadd.f32 0.0, %v1091
      %1093 = vmatmul.f32.gmra.mxu0 %v996
      %v1094 = vpop.f32.mrf.mxu0
      %v1095 = vadd.f32 0.0, %v1094
      %1096 = vmatmul.f32.gmra.mxu0 %v997
      %v1097 = vpop.f32.mrf.mxu0
      %v1098 = vadd.f32 0.0, %v1097
      %1099 = vmatmul.f32.gmra.mxu0 %v998
      %v1100 = vpop.f32.mrf.mxu0
      %v1101 = vadd.f32 0.0, %v1100
      %1102 = vmatmul.f32.gmra.mxu0 %v999
      %v1103 = vpop.f32.mrf.mxu0
      %v1104 = vadd.f32 0.0, %v1103
      %1105 = vmatmul.f32.gmra.mxu0 %v1000
      %v1106 = vpop.f32.mrf.mxu0
      %v1107 = vadd.f32 0.0, %v1106
      %1108 = vmatmul.f32.gmra.mxu0 %v1001
      %v1109 = vpop.f32.mrf.mxu0
      %v1110 = vadd.f32 0.0, %v1109
      %1111 = vmatmul.f32.gmra.mxu0 %v1002
      %v1112 = vpop.f32.mrf.mxu0
      %v1113 = vadd.f32 0.0, %v1112
      %1114 = vmatmul.f32.gmra.mxu0 %v1003
      %v1115 = vpop.f32.mrf.mxu0
      %v1116 = vadd.f32 0.0, %v1115
      %1117 = vmatmul.f32.gmra.mxu0 %v1004
      %v1118 = vpop.f32.mrf.mxu0
      %v1119 = vadd.f32 0.0, %v1118
      %1120 = vmatmul.f32.gmra.mxu0 %v1005
      %v1121 = vpop.f32.mrf.mxu0
      %v1122 = vadd.f32 0.0, %v1121
      %1123 = vmatmul.f32.gmra.mxu0 %v1006
      %v1124 = vpop.f32.mrf.mxu0
      %v1125 = vadd.f32 0.0, %v1124
      %1126 = vmatmul.f32.gmra.mxu0 %v1007
      %v1127 = vpop.f32.mrf.mxu0
      %v1128 = vadd.f32 0.0, %v1127
      %1129 = vmatmul.f32.gmra.mxu0 %v1008
      %v1130 = vpop.f32.mrf.mxu0
      %v1131 = vadd.f32 0.0, %v1130
      %1132 = vmatmul.f32.gmra.mxu0 %v1009
      %v1133 = vpop.f32.mrf.mxu0
      %v1134 = vadd.f32 0.0, %v1133
      %1135 = vmatmul.f32.gmra.mxu0 %v1010
      %v1136 = vpop.f32.mrf.mxu0
      %v1137 = vadd.f32 0.0, %v1136
      %1138 = vmatmul.f32.gmra.mxu0 %v1011
      %v1139 = vpop.f32.mrf.mxu0
      %v1140 = vadd.f32 0.0, %v1139
      %1141 = vmatmul.f32.gmra.mxu0 %v1012
      %v1142 = vpop.f32.mrf.mxu0
      %v1143 = vadd.f32 0.0, %v1142
      %1144 = vmatmul.f32.gmra.mxu0 %v1013
      %v1145 = vpop.f32.mrf.mxu0
      %v1146 = vadd.f32 0.0, %v1145
      %1147 = vmatmul.f32.gmra.mxu0 %v1014
      %v1148 = vpop.f32.mrf.mxu0
      %v1149 = vadd.f32 0.0, %v1148
      %1150 = vmatmul.f32.gmra.mxu0 %v1015
      %v1151 = vpop.f32.mrf.mxu0
      %v1152 = vadd.f32 0.0, %v1151
      %1153 = vmatmul.f32.gmra.mxu0 %v1016
      %v1154 = vpop.f32.mrf.mxu0
      %v1155 = vadd.f32 0.0, %v1154
      %1156 = vmatmul.f32.gmra.mxu0 %v1017
      %v1157 = vpop.f32.mrf.mxu0
      %v1158 = vadd.f32 0.0, %v1157
      %1159 = vmatmul.f32.gmra.mxu0 %v1034
      %v1160 = vpop.f32.mrf.mxu0
      %v1161 = vadd.f32 0.0, %v1160
      %1162 = vmatmul.f32.gmra.mxu0 %v1035
      %v1163 = vpop.f32.mrf.mxu0
      %v1164 = vadd.f32 0.0, %v1163
      %1165 = vdwg.mxu0
      %1166 = vmatpush.msra.mxu0 %v1033
      %1167 = vmatpush.msra.mxu0 %v1032
      %1168 = vmatpush.msra.mxu0 %v1031
      %1169 = vmatpush.msra.mxu0 %v1030
      %1170 = vmatpush.msra.mxu0 %v1029
      %1171 = vmatpush.msra.mxu0 %v1028
      %1172 = vmatpush.msra.mxu0 %v1027
      %1173 = vmatpush.msra.mxu0 %v1026
      %1174 = vmatpush.msra.mxu0 %v1025
      %1175 = vmatpush.msra.mxu0 %v1024
      %1176 = vmatpush.msra.mxu0 %v1023
      %1177 = vmatpush.msra.mxu0 %v1022
      %1178 = vmatpush.msra.mxu0 %v1021
      %1179 = vmatpush.msra.mxu0 %v1020
      %1180 = vmatpush.msra.mxu0 %v1019
      %1181 = vmatpush.msra.mxu0 %v1018
      %1182 = vmatmul.f32.gmra.mxu0 %v986
      %v1183 = vpop.f32.mrf.mxu0
      %v1184 = vadd.f32 %v1071, %v1183
      %1185 = vmatmul.f32.gmra.mxu0 %v987
      %v1186 = vpop.f32.mrf.mxu0
      %v1187 = vadd.f32 %v1074, %v1186
      %1188 = vmatmul.f32.gmra.mxu0 %v988
      %v1189 = vpop.f32.mrf.mxu0
      %v1190 = vadd.f32 %v1077, %v1189
      %1191 = vmatmul.f32.gmra.mxu0 %v989
      %v1192 = vpop.f32.mrf.mxu0
      %v1193 = vadd.f32 %v1080, %v1192
      %1194 = vmatmul.f32.gmra.mxu0 %v990
      %v1195 = vpop.f32.mrf.mxu0
      %v1196 = vadd.f32 %v1083, %v1195
      %1197 = vmatmul.f32.gmra.mxu0 %v991
      %v1198 = vpop.f32.mrf.mxu0
      %v1199 = vadd.f32 %v1086, %v1198
      %1200 = vmatmul.f32.gmra.mxu0 %v992
      %v1201 = vpop.f32.mrf.mxu0
      %v1202 = vadd.f32 %v1089, %v1201
      %1203 = vmatmul.f32.gmra.mxu0 %v993
      %v1204 = vpop.f32.mrf.mxu0
      %v1205 = vadd.f32 %v1092, %v1204
      %1206 = vmatmul.f32.gmra.mxu0 %v994
      %v1207 = vpop.f32.mrf.mxu0
      %v1208 = vadd.f32 %v1095, %v1207
      %1209 = vmatmul.f32.gmra.mxu0 %v995
      %v1210 = vpop.f32.mrf.mxu0
      %v1211 = vadd.f32 %v1098, %v1210
      %1212 = vmatmul.f32.gmra.mxu0 %v996
      %v1213 = vpop.f32.mrf.mxu0
      %v1214 = vadd.f32 %v1101, %v1213
      %1215 = vmatmul.f32.gmra.mxu0 %v997
      %v1216 = vpop.f32.mrf.mxu0
      %v1217 = vadd.f32 %v1104, %v1216
      %1218 = vmatmul.f32.gmra.mxu0 %v998
      %v1219 = vpop.f32.mrf.mxu0
      %v1220 = vadd.f32 %v1107, %v1219
      %1221 = vmatmul.f32.gmra.mxu0 %v999
      %v1222 = vpop.f32.mrf.mxu0
      %v1223 = vadd.f32 %v1110, %v1222
      %1224 = vmatmul.f32.gmra.mxu0 %v1000
      %v1225 = vpop.f32.mrf.mxu0
      %v1226 = vadd.f32 %v1113, %v1225
      %1227 = vmatmul.f32.gmra.mxu0 %v1001
      %v1228 = vpop.f32.mrf.mxu0
      %v1229 = vadd.f32 %v1116, %v1228
      %1230 = vmatmul.f32.gmra.mxu0 %v1002
      %v1231 = vpop.f32.mrf.mxu0
      %v1232 = vadd.f32 %v1119, %v1231
      %1233 = vmatmul.f32.gmra.mxu0 %v1003
      %v1234 = vpop.f32.mrf.mxu0
      %v1235 = vadd.f32 %v1122, %v1234
      %1236 = vmatmul.f32.gmra.mxu0 %v1004
      %v1237 = vpop.f32.mrf.mxu0
      %v1238 = vadd.f32 %v1125, %v1237
      %1239 = vmatmul.f32.gmra.mxu0 %v1005
      %v1240 = vpop.f32.mrf.mxu0
      %v1241 = vadd.f32 %v1128, %v1240
      %1242 = vmatmul.f32.gmra.mxu0 %v1006
      %v1243 = vpop.f32.mrf.mxu0
      %v1244 = vadd.f32 %v1131, %v1243
      %1245 = vmatmul.f32.gmra.mxu0 %v1007
      %v1246 = vpop.f32.mrf.mxu0
      %v1247 = vadd.f32 %v1134, %v1246
      %1248 = vmatmul.f32.gmra.mxu0 %v1008
      %v1249 = vpop.f32.mrf.mxu0
      %v1250 = vadd.f32 %v1137, %v1249
      %1251 = vmatmul.f32.gmra.mxu0 %v1009
      %v1252 = vpop.f32.mrf.mxu0
      %v1253 = vadd.f32 %v1140, %v1252
      %1254 = vmatmul.f32.gmra.mxu0 %v1010
      %v1255 = vpop.f32.mrf.mxu0
      %v1256 = vadd.f32 %v1143, %v1255
      %1257 = vmatmul.f32.gmra.mxu0 %v1011
      %v1258 = vpop.f32.mrf.mxu0
      %v1259 = vadd.f32 %v1146, %v1258
      %1260 = vmatmul.f32.gmra.mxu0 %v1012
      %v1261 = vpop.f32.mrf.mxu0
      %v1262 = vadd.f32 %v1149, %v1261
      %1263 = vmatmul.f32.gmra.mxu0 %v1013
      %v1264 = vpop.f32.mrf.mxu0
      %v1265 = vadd.f32 %v1152, %v1264
      %1266 = vmatmul.f32.gmra.mxu0 %v1014
      %v1267 = vpop.f32.mrf.mxu0
      %v1268 = vadd.f32 %v1155, %v1267
      %1269 = vmatmul.f32.gmra.mxu0 %v1015
      %v1270 = vpop.f32.mrf.mxu0
      %v1271 = vadd.f32 %v1158, %v1270
      %1272 = vmatmul.f32.gmra.mxu0 %v1016
      %v1273 = vpop.f32.mrf.mxu0
      %v1274 = vadd.f32 %v1161, %v1273
      %1275 = vmatmul.f32.gmra.mxu0 %v1017
      %v1276 = vpop.f32.mrf.mxu0
      %v1277 = vadd.f32 %v1164, %v1276
      %1278 = vdwg.mxu0
      %v1279 = vld [vmem:[#allocation2 + $0x27] sm:$0xff]
      %v1280 = vld [vmem:[#allocation2 + $0x2f] sm:$0xff]
      %v1281 = vld [vmem:[#allocation2 + $0x37] sm:$0xff]
      %v1282 = vld [vmem:[#allocation2 + $0x3f] sm:$0xff]
      %v1283 = vld [vmem:[#allocation2 + $0x47] sm:$0xff]
      %v1284 = vld [vmem:[#allocation2 + $0x4f] sm:$0xff]
      %v1285 = vld [vmem:[#allocation2 + $0x57] sm:$0xff]
      %v1286 = vld [vmem:[#allocation2 + $0x5f] sm:$0xff]
      %v1287 = vld [vmem:[#allocation2 + $0x67] sm:$0xff]
      %v1288 = vld [vmem:[#allocation2 + $0x6f] sm:$0xff]
      %v1289 = vld [vmem:[#allocation2 + $0x77] sm:$0xff]
      %v1290 = vld [vmem:[#allocation2 + $0x7f] sm:$0xff]
      %v1291 = vld [vmem:[#allocation2 + $0x87] sm:$0xff]
      %v1292 = vld [vmem:[#allocation2 + $0x8f] sm:$0xff]
      %v1293 = vld [vmem:[#allocation2 + $0x97] sm:$0xff]
      %v1294 = vld [vmem:[#allocation2 + $0x9f] sm:$0xff]
      %v1295 = vld [vmem:[#allocation2 + $0xa7] sm:$0xff]
      %v1296 = vld [vmem:[#allocation2 + $0xaf] sm:$0xff]
      %v1297 = vld [vmem:[#allocation2 + $0xb7] sm:$0xff]
      %v1298 = vld [vmem:[#allocation2 + $0xbf] sm:$0xff]
      %v1299 = vld [vmem:[#allocation2 + $0xc7] sm:$0xff]
      %v1300 = vld [vmem:[#allocation2 + $0xcf] sm:$0xff]
      %v1301 = vld [vmem:[#allocation2 + $0xd7] sm:$0xff]
      %v1302 = vld [vmem:[#allocation2 + $0xdf] sm:$0xff]
      %v1303 = vld [vmem:[#allocation2 + $0xe7] sm:$0xff]
      %v1304 = vld [vmem:[#allocation2 + $0xef] sm:$0xff]
      %v1305 = vld [vmem:[#allocation2 + $0xf7] sm:$0xff]
      %v1306 = vld [vmem:[#allocation2 + $0xff] sm:$0xff]
      %v1307 = vld [vmem:[#allocation2 + $0x107] sm:$0xff]
      %v1308 = vld [vmem:[#allocation2 + $0x10f] sm:$0xff]
      %v1309 = vld [vmem:[#allocation2 + $0x117] sm:$0xff]
      %v1310 = vld [vmem:[#allocation2 + $0x11f] sm:$0xff]
      %s1311 = scalar_lea.vmem %s2, 768
      %v1312 = vld [vmem:[%s1311] sm:$0xff]
      %v1313 = vld [vmem:[%s1311 + $0x8] sm:$0xff]
      %v1314 = vld [vmem:[%s1311 + $0x10] sm:$0xff]
      %v1315 = vld [vmem:[%s1311 + $0x18] sm:$0xff]
      %v1316 = vld [vmem:[%s1311 + $0x20] sm:$0xff]
      %v1317 = vld [vmem:[%s1311 + $0x28] sm:$0xff]
      %v1318 = vld [vmem:[%s1311 + $0x30] sm:$0xff]
      %v1319 = vld [vmem:[%s1311 + $0x38] sm:$0xff]
      %v1320 = vld [vmem:[%s1311 + $0x40] sm:$0xff]
      %v1321 = vld [vmem:[%s1311 + $0x48] sm:$0xff]
      %v1322 = vld [vmem:[%s1311 + $0x50] sm:$0xff]
      %v1323 = vld [vmem:[%s1311 + $0x58] sm:$0xff]
      %v1324 = vld [vmem:[%s1311 + $0x60] sm:$0xff]
      %v1325 = vld [vmem:[%s1311 + $0x68] sm:$0xff]
      %v1326 = vld [vmem:[%s1311 + $0x70] sm:$0xff]
      %v1327 = vld [vmem:[%s1311 + $0x78] sm:$0xff]
      %1328 = vmatpush.msra.mxu0 %v1327
      %1329 = vmatpush.msra.mxu0 %v1326
      %1330 = vmatpush.msra.mxu0 %v1325
      %1331 = vmatpush.msra.mxu0 %v1324
      %1332 = vmatpush.msra.mxu0 %v1323
      %1333 = vmatpush.msra.mxu0 %v1322
      %1334 = vmatpush.msra.mxu0 %v1321
      %1335 = vmatpush.msra.mxu0 %v1320
      %1336 = vmatpush.msra.mxu0 %v1319
      %1337 = vmatpush.msra.mxu0 %v1318
      %1338 = vmatpush.msra.mxu0 %v1317
      %1339 = vmatpush.msra.mxu0 %v1316
      %1340 = vmatpush.msra.mxu0 %v1315
      %1341 = vmatpush.msra.mxu0 %v1314
      %1342 = vmatpush.msra.mxu0 %v1313
      %1343 = vmatpush.msra.mxu0 %v1312
      %1344 = vmatmul.f32.gmra.mxu0 %v1279
      %v1345 = vpop.f32.mrf.mxu0
      %v1346 = vadd.f32 0.0, %v1345
      %1347 = vmatmul.f32.gmra.mxu0 %v1280
      %v1348 = vpop.f32.mrf.mxu0
      %v1349 = vadd.f32 0.0, %v1348
      %1350 = vmatmul.f32.gmra.mxu0 %v1281
      %v1351 = vpop.f32.mrf.mxu0
      %v1352 = vadd.f32 0.0, %v1351
      %1353 = vmatmul.f32.gmra.mxu0 %v1282
      %v1354 = vpop.f32.mrf.mxu0
      %v1355 = vadd.f32 0.0, %v1354
      %1356 = vmatmul.f32.gmra.mxu0 %v1283
      %v1357 = vpop.f32.mrf.mxu0
      %v1358 = vadd.f32 0.0, %v1357
      %1359 = vmatmul.f32.gmra.mxu0 %v1284
      %v1360 = vpop.f32.mrf.mxu0
      %v1361 = vadd.f32 0.0, %v1360
      %1362 = vmatmul.f32.gmra.mxu0 %v1285
      %v1363 = vpop.f32.mrf.mxu0
      %v1364 = vadd.f32 0.0, %v1363
      %1365 = vmatmul.f32.gmra.mxu0 %v1286
      %v1366 = vpop.f32.mrf.mxu0
      %v1367 = vadd.f32 0.0, %v1366
      %1368 = vmatmul.f32.gmra.mxu0 %v1287
      %v1369 = vpop.f32.mrf.mxu0
      %v1370 = vadd.f32 0.0, %v1369
      %1371 = vmatmul.f32.gmra.mxu0 %v1288
      %v1372 = vpop.f32.mrf.mxu0
      %v1373 = vadd.f32 0.0, %v1372
      %1374 = vmatmul.f32.gmra.mxu0 %v1289
      %v1375 = vpop.f32.mrf.mxu0
      %v1376 = vadd.f32 0.0, %v1375
      %1377 = vmatmul.f32.gmra.mxu0 %v1290
      %v1378 = vpop.f32.mrf.mxu0
      %v1379 = vadd.f32 0.0, %v1378
      %1380 = vmatmul.f32.gmra.mxu0 %v1291
      %v1381 = vpop.f32.mrf.mxu0
      %v1382 = vadd.f32 0.0, %v1381
      %1383 = vmatmul.f32.gmra.mxu0 %v1292
      %v1384 = vpop.f32.mrf.mxu0
      %v1385 = vadd.f32 0.0, %v1384
      %1386 = vmatmul.f32.gmra.mxu0 %v1293
      %v1387 = vpop.f32.mrf.mxu0
      %v1388 = vadd.f32 0.0, %v1387
      %1389 = vmatmul.f32.gmra.mxu0 %v1294
      %v1390 = vpop.f32.mrf.mxu0
      %v1391 = vadd.f32 0.0, %v1390
      %1392 = vmatmul.f32.gmra.mxu0 %v1295
      %v1393 = vpop.f32.mrf.mxu0
      %v1394 = vadd.f32 0.0, %v1393
      %1395 = vmatmul.f32.gmra.mxu0 %v1296
      %v1396 = vpop.f32.mrf.mxu0
      %v1397 = vadd.f32 0.0, %v1396
      %1398 = vmatmul.f32.gmra.mxu0 %v1297
      %v1399 = vpop.f32.mrf.mxu0
      %v1400 = vadd.f32 0.0, %v1399
      %1401 = vmatmul.f32.gmra.mxu0 %v1298
      %v1402 = vpop.f32.mrf.mxu0
      %v1403 = vadd.f32 0.0, %v1402
      %1404 = vmatmul.f32.gmra.mxu0 %v1299
      %v1405 = vpop.f32.mrf.mxu0
      %v1406 = vadd.f32 0.0, %v1405
      %1407 = vmatmul.f32.gmra.mxu0 %v1300
      %v1408 = vpop.f32.mrf.mxu0
      %v1409 = vadd.f32 0.0, %v1408
      %1410 = vmatmul.f32.gmra.mxu0 %v1301
      %v1411 = vpop.f32.mrf.mxu0
      %v1412 = vadd.f32 0.0, %v1411
      %1413 = vmatmul.f32.gmra.mxu0 %v1302
      %v1414 = vpop.f32.mrf.mxu0
      %v1415 = vadd.f32 0.0, %v1414
      %1416 = vmatmul.f32.gmra.mxu0 %v1303
      %v1417 = vpop.f32.mrf.mxu0
      %v1418 = vadd.f32 0.0, %v1417
      %1419 = vmatmul.f32.gmra.mxu0 %v1304
      %v1420 = vpop.f32.mrf.mxu0
      %v1421 = vadd.f32 0.0, %v1420
      %1422 = vmatmul.f32.gmra.mxu0 %v1305
      %v1423 = vpop.f32.mrf.mxu0
      %v1424 = vadd.f32 0.0, %v1423
      %1425 = vmatmul.f32.gmra.mxu0 %v1306
      %v1426 = vpop.f32.mrf.mxu0
      %v1427 = vadd.f32 0.0, %v1426
      %1428 = vmatmul.f32.gmra.mxu0 %v1307
      %v1429 = vpop.f32.mrf.mxu0
      %v1430 = vadd.f32 0.0, %v1429
      %1431 = vmatmul.f32.gmra.mxu0 %v1308
      %v1432 = vpop.f32.mrf.mxu0
      %v1433 = vadd.f32 0.0, %v1432
      %1434 = vmatmul.f32.gmra.mxu0 %v1309
      %v1435 = vpop.f32.mrf.mxu0
      %v1436 = vadd.f32 0.0, %v1435
      %1437 = vmatmul.f32.gmra.mxu0 %v1310
      %v1438 = vpop.f32.mrf.mxu0
      %v1439 = vadd.f32 0.0, %v1438
      %1440 = vdwg.mxu0
      %v1441 = vadd.f32 %v1184, %v1346
      %v1442 = vadd.f32 %v1187, %v1349
      %v1443 = vadd.f32 %v1190, %v1352
      %v1444 = vadd.f32 %v1193, %v1355
      %v1445 = vadd.f32 %v1196, %v1358
      %v1446 = vadd.f32 %v1199, %v1361
      %v1447 = vadd.f32 %v1202, %v1364
      %v1448 = vadd.f32 %v1205, %v1367
      %v1449 = vadd.f32 %v1208, %v1370
      %v1450 = vadd.f32 %v1211, %v1373
      %v1451 = vadd.f32 %v1214, %v1376
      %v1452 = vadd.f32 %v1217, %v1379
      %v1453 = vadd.f32 %v1220, %v1382
      %v1454 = vadd.f32 %v1223, %v1385
      %v1455 = vadd.f32 %v1226, %v1388
      %v1456 = vadd.f32 %v1229, %v1391
      %v1457 = vadd.f32 %v1232, %v1394
      %v1458 = vadd.f32 %v1235, %v1397
      %v1459 = vadd.f32 %v1238, %v1400
      %v1460 = vadd.f32 %v1241, %v1403
      %v1461 = vadd.f32 %v1244, %v1406
      %v1462 = vadd.f32 %v1247, %v1409
      %v1463 = vadd.f32 %v1250, %v1412
      %v1464 = vadd.f32 %v1253, %v1415
      %v1465 = vadd.f32 %v1256, %v1418
      %v1466 = vadd.f32 %v1259, %v1421
      %v1467 = vadd.f32 %v1262, %v1424
      %v1468 = vadd.f32 %v1265, %v1427
      %v1469 = vadd.f32 %v1268, %v1430
      %v1470 = vadd.f32 %v1271, %v1433
      %v1471 = vadd.f32 %v1274, %v1436
      %v1472 = vadd.f32 %v1277, %v1439
      %vm1473 = vcmp.eq.s32.totalorder %v954, 0
      %vm1474 = vcmp.eq.s32.totalorder %v955, 0
      %vm1475 = vcmp.eq.s32.totalorder %v956, 0
      %vm1476 = vcmp.eq.s32.totalorder %v957, 0
      %vm1477 = vcmp.eq.s32.totalorder %v958, 0
      %vm1478 = vcmp.eq.s32.totalorder %v959, 0
      %vm1479 = vcmp.eq.s32.totalorder %v960, 0
      %vm1480 = vcmp.eq.s32.totalorder %v961, 0
      %vm1481 = vcmp.eq.s32.totalorder %v962, 0
      %vm1482 = vcmp.eq.s32.totalorder %v963, 0
      %vm1483 = vcmp.eq.s32.totalorder %v964, 0
      %vm1484 = vcmp.eq.s32.totalorder %v965, 0
      %vm1485 = vcmp.eq.s32.totalorder %v966, 0
      %vm1486 = vcmp.eq.s32.totalorder %v967, 0
      %vm1487 = vcmp.eq.s32.totalorder %v968, 0
      %vm1488 = vcmp.eq.s32.totalorder %v969, 0
      %vm1489 = vcmp.eq.s32.totalorder %v970, 0
      %vm1490 = vcmp.eq.s32.totalorder %v971, 0
      %vm1491 = vcmp.eq.s32.totalorder %v972, 0
      %vm1492 = vcmp.eq.s32.totalorder %v973, 0
      %vm1493 = vcmp.eq.s32.totalorder %v974, 0
      %vm1494 = vcmp.eq.s32.totalorder %v975, 0
      %vm1495 = vcmp.eq.s32.totalorder %v976, 0
      %vm1496 = vcmp.eq.s32.totalorder %v977, 0
      %vm1497 = vcmp.eq.s32.totalorder %v978, 0
      %vm1498 = vcmp.eq.s32.totalorder %v979, 0
      %vm1499 = vcmp.eq.s32.totalorder %v980, 0
      %vm1500 = vcmp.eq.s32.totalorder %v981, 0
      %vm1501 = vcmp.eq.s32.totalorder %v982, 0
      %vm1502 = vcmp.eq.s32.totalorder %v983, 0
      %vm1503 = vcmp.eq.s32.totalorder %v984, 0
      %vm1504 = vcmp.eq.s32.totalorder %v985, 0
      %v1505 = vsel %vm1473, 1, 0
      %v1506 = vsel %vm1474, 1, 0
      %v1507 = vsel %vm1475, 1, 0
      %v1508 = vsel %vm1476, 1, 0
      %v1509 = vsel %vm1477, 1, 0
      %v1510 = vsel %vm1478, 1, 0
      %v1511 = vsel %vm1479, 1, 0
      %v1512 = vsel %vm1480, 1, 0
      %v1513 = vsel %vm1481, 1, 0
      %v1514 = vsel %vm1482, 1, 0
      %v1515 = vsel %vm1483, 1, 0
      %v1516 = vsel %vm1484, 1, 0
      %v1517 = vsel %vm1485, 1, 0
      %v1518 = vsel %vm1486, 1, 0
      %v1519 = vsel %vm1487, 1, 0
      %v1520 = vsel %vm1488, 1, 0
      %v1521 = vsel %vm1489, 1, 0
      %v1522 = vsel %vm1490, 1, 0
      %v1523 = vsel %vm1491, 1, 0
      %v1524 = vsel %vm1492, 1, 0
      %v1525 = vsel %vm1493, 1, 0
      %v1526 = vsel %vm1494, 1, 0
      %v1527 = vsel %vm1495, 1, 0
      %v1528 = vsel %vm1496, 1, 0
      %v1529 = vsel %vm1497, 1, 0
      %v1530 = vsel %vm1498, 1, 0
      %v1531 = vsel %vm1499, 1, 0
      %v1532 = vsel %vm1500, 1, 0
      %v1533 = vsel %vm1501, 1, 0
      %v1534 = vsel %vm1502, 1, 0
      %v1535 = vsel %vm1503, 1, 0
      %v1536 = vsel %vm1504, 1, 0
      %vm1537 = vcmp.eq.s32.totalorder %v1505, 1
      %vm1538 = vcmp.eq.s32.totalorder %v1506, 1
      %vm1539 = vcmp.eq.s32.totalorder %v1507, 1
      %vm1540 = vcmp.eq.s32.totalorder %v1508, 1
      %vm1541 = vcmp.eq.s32.totalorder %v1509, 1
      %vm1542 = vcmp.eq.s32.totalorder %v1510, 1
      %vm1543 = vcmp.eq.s32.totalorder %v1511, 1
      %vm1544 = vcmp.eq.s32.totalorder %v1512, 1
      %vm1545 = vcmp.eq.s32.totalorder %v1513, 1
      %vm1546 = vcmp.eq.s32.totalorder %v1514, 1
      %vm1547 = vcmp.eq.s32.totalorder %v1515, 1
      %vm1548 = vcmp.eq.s32.totalorder %v1516, 1
      %vm1549 = vcmp.eq.s32.totalorder %v1517, 1
      %vm1550 = vcmp.eq.s32.totalorder %v1518, 1
      %vm1551 = vcmp.eq.s32.totalorder %v1519, 1
      %vm1552 = vcmp.eq.s32.totalorder %v1520, 1
      %vm1553 = vcmp.eq.s32.totalorder %v1521, 1
      %vm1554 = vcmp.eq.s32.totalorder %v1522, 1
      %vm1555 = vcmp.eq.s32.totalorder %v1523, 1
      %vm1556 = vcmp.eq.s32.totalorder %v1524, 1
      %vm1557 = vcmp.eq.s32.totalorder %v1525, 1
      %vm1558 = vcmp.eq.s32.totalorder %v1526, 1
      %vm1559 = vcmp.eq.s32.totalorder %v1527, 1
      %vm1560 = vcmp.eq.s32.totalorder %v1528, 1
      %vm1561 = vcmp.eq.s32.totalorder %v1529, 1
      %vm1562 = vcmp.eq.s32.totalorder %v1530, 1
      %vm1563 = vcmp.eq.s32.totalorder %v1531, 1
      %vm1564 = vcmp.eq.s32.totalorder %v1532, 1
      %vm1565 = vcmp.eq.s32.totalorder %v1533, 1
      %vm1566 = vcmp.eq.s32.totalorder %v1534, 1
      %vm1567 = vcmp.eq.s32.totalorder %v1535, 1
      %vm1568 = vcmp.eq.s32.totalorder %v1536, 1
      %v1569 = vsel %vm1537, 0.0, %v1441
      %v1570 = vsel %vm1538, 0.0, %v1442
      %v1571 = vsel %vm1539, 0.0, %v1443
      %v1572 = vsel %vm1540, 0.0, %v1444
      %v1573 = vsel %vm1541, 0.0, %v1445
      %v1574 = vsel %vm1542, 0.0, %v1446
      %v1575 = vsel %vm1543, 0.0, %v1447
      %v1576 = vsel %vm1544, 0.0, %v1448
      %v1577 = vsel %vm1545, 0.0, %v1449
      %v1578 = vsel %vm1546, 0.0, %v1450
      %v1579 = vsel %vm1547, 0.0, %v1451
      %v1580 = vsel %vm1548, 0.0, %v1452
      %v1581 = vsel %vm1549, 0.0, %v1453
      %v1582 = vsel %vm1550, 0.0, %v1454
      %v1583 = vsel %vm1551, 0.0, %v1455
      %v1584 = vsel %vm1552, 0.0, %v1456
      %v1585 = vsel %vm1553, 0.0, %v1457
      %v1586 = vsel %vm1554, 0.0, %v1458
      %v1587 = vsel %vm1555, 0.0, %v1459
      %v1588 = vsel %vm1556, 0.0, %v1460
      %v1589 = vsel %vm1557, 0.0, %v1461
      %v1590 = vsel %vm1558, 0.0, %v1462
      %v1591 = vsel %vm1559, 0.0, %v1463
      %v1592 = vsel %vm1560, 0.0, %v1464
      %v1593 = vsel %vm1561, 0.0, %v1465
      %v1594 = vsel %vm1562, 0.0, %v1466
      %v1595 = vsel %vm1563, 0.0, %v1467
      %v1596 = vsel %vm1564, 0.0, %v1468
      %v1597 = vsel %vm1565, 0.0, %v1469
      %v1598 = vsel %vm1566, 0.0, %v1470
      %v1599 = vsel %vm1567, 0.0, %v1471
      %v1600 = vsel %vm1568, 0.0, %v1472
      %v1601 = vadd.f32 %v1569, 0.0
      %v1602 = vadd.f32 %v1570, 0.0
      %v1603 = vadd.f32 %v1571, 0.0
      %v1604 = vadd.f32 %v1572, 0.0
      %v1605 = vadd.f32 %v1573, 0.0
      %v1606 = vadd.f32 %v1574, 0.0
      %v1607 = vadd.f32 %v1575, 0.0
      %v1608 = vadd.f32 %v1576, 0.0
      %v1609 = vadd.f32 %v1577, 0.0
      %v1610 = vadd.f32 %v1578, 0.0
      %v1611 = vadd.f32 %v1579, 0.0
      %v1612 = vadd.f32 %v1580, 0.0
      %v1613 = vadd.f32 %v1581, 0.0
      %v1614 = vadd.f32 %v1582, 0.0
      %v1615 = vadd.f32 %v1583, 0.0
      %v1616 = vadd.f32 %v1584, 0.0
      %v1617 = vadd.f32 %v1585, 0.0
      %v1618 = vadd.f32 %v1586, 0.0
      %v1619 = vadd.f32 %v1587, 0.0
      %v1620 = vadd.f32 %v1588, 0.0
      %v1621 = vadd.f32 %v1589, 0.0
      %v1622 = vadd.f32 %v1590, 0.0
      %v1623 = vadd.f32 %v1591, 0.0
      %v1624 = vadd.f32 %v1592, 0.0
      %v1625 = vadd.f32 %v1593, 0.0
      %v1626 = vadd.f32 %v1594, 0.0
      %v1627 = vadd.f32 %v1595, 0.0
      %v1628 = vadd.f32 %v1596, 0.0
      %v1629 = vadd.f32 %v1597, 0.0
      %v1630 = vadd.f32 %v1598, 0.0
      %v1631 = vadd.f32 %v1599, 0.0
      %v1632 = vadd.f32 %v1600, 0.0
      %v1633 = vld [vmem:[#allocation2 + $0x8] sm:$0xff]
      %v1634 = vld [vmem:[#allocation2 + $0x10] sm:$0xff]
      %v1635 = vld [vmem:[#allocation2 + $0x18] sm:$0xff]
      %v1636 = vld [vmem:[#allocation2 + $0x20] sm:$0xff]
      %v1637 = vld [vmem:[#allocation2 + $0x28] sm:$0xff]
      %v1638 = vld [vmem:[#allocation2 + $0x30] sm:$0xff]
      %v1639 = vld [vmem:[#allocation2 + $0x38] sm:$0xff]
      %v1640 = vld [vmem:[#allocation2 + $0x40] sm:$0xff]
      %v1641 = vld [vmem:[#allocation2 + $0x48] sm:$0xff]
      %v1642 = vld [vmem:[#allocation2 + $0x50] sm:$0xff]
      %v1643 = vld [vmem:[#allocation2 + $0x58] sm:$0xff]
      %v1644 = vld [vmem:[#allocation2 + $0x60] sm:$0xff]
      %v1645 = vld [vmem:[#allocation2 + $0x68] sm:$0xff]
      %v1646 = vld [vmem:[#allocation2 + $0x70] sm:$0xff]
      %v1647 = vld [vmem:[#allocation2 + $0x78] sm:$0xff]
      %v1648 = vld [vmem:[#allocation2 + $0x80] sm:$0xff]
      %v1649 = vld [vmem:[#allocation2 + $0x88] sm:$0xff]
      %v1650 = vld [vmem:[#allocation2 + $0x90] sm:$0xff]
      %v1651 = vld [vmem:[#allocation2 + $0x98] sm:$0xff]
      %v1652 = vld [vmem:[#allocation2 + $0xa0] sm:$0xff]
      %v1653 = vld [vmem:[#allocation2 + $0xa8] sm:$0xff]
      %v1654 = vld [vmem:[#allocation2 + $0xb0] sm:$0xff]
      %v1655 = vld [vmem:[#allocation2 + $0xb8] sm:$0xff]
      %v1656 = vld [vmem:[#allocation2 + $0xc0] sm:$0xff]
      %v1657 = vld [vmem:[#allocation2 + $0xc8] sm:$0xff]
      %v1658 = vld [vmem:[#allocation2 + $0xd0] sm:$0xff]
      %v1659 = vld [vmem:[#allocation2 + $0xd8] sm:$0xff]
      %v1660 = vld [vmem:[#allocation2 + $0xe0] sm:$0xff]
      %v1661 = vld [vmem:[#allocation2 + $0xe8] sm:$0xff]
      %v1662 = vld [vmem:[#allocation2 + $0xf0] sm:$0xff]
      %v1663 = vld [vmem:[#allocation2 + $0xf8] sm:$0xff]
      %v1664 = vld [vmem:[#allocation2 + $0x100] sm:$0xff]
      %s1665 = scalar_lea.vmem %s2, 128
      %v1666 = vld [vmem:[%s1665] sm:$0xff]
      %v1667 = vld [vmem:[%s1665 + $0x8] sm:$0xff]
      %v1668 = vld [vmem:[%s1665 + $0x10] sm:$0xff]
      %v1669 = vld [vmem:[%s1665 + $0x18] sm:$0xff]
      %v1670 = vld [vmem:[%s1665 + $0x20] sm:$0xff]
      %v1671 = vld [vmem:[%s1665 + $0x28] sm:$0xff]
      %v1672 = vld [vmem:[%s1665 + $0x30] sm:$0xff]
      %v1673 = vld [vmem:[%s1665 + $0x38] sm:$0xff]
      %v1674 = vld [vmem:[%s1665 + $0x40] sm:$0xff]
      %v1675 = vld [vmem:[%s1665 + $0x48] sm:$0xff]
      %v1676 = vld [vmem:[%s1665 + $0x50] sm:$0xff]
      %v1677 = vld [vmem:[%s1665 + $0x58] sm:$0xff]
      %v1678 = vld [vmem:[%s1665 + $0x60] sm:$0xff]
      %v1679 = vld [vmem:[%s1665 + $0x68] sm:$0xff]
      %v1680 = vld [vmem:[%s1665 + $0x70] sm:$0xff]
      %v1681 = vld [vmem:[%s1665 + $0x78] sm:$0xff]
      %v1682 = vld [vmem:[#allocation2 + $0x108] sm:$0xff]
      %v1683 = vld [vmem:[#allocation2 + $0x110] sm:$0xff]
      %s1684 = scalar_lea.vmem %s2, 512
      %v1685 = vld [vmem:[%s1684] sm:$0xff]
      %v1686 = vld [vmem:[%s1684 + $0x8] sm:$0xff]
      %v1687 = vld [vmem:[%s1684 + $0x10] sm:$0xff]
      %v1688 = vld [vmem:[%s1684 + $0x18] sm:$0xff]
      %v1689 = vld [vmem:[%s1684 + $0x20] sm:$0xff]
      %v1690 = vld [vmem:[%s1684 + $0x28] sm:$0xff]
      %v1691 = vld [vmem:[%s1684 + $0x30] sm:$0xff]
      %v1692 = vld [vmem:[%s1684 + $0x38] sm:$0xff]
      %v1693 = vld [vmem:[%s1684 + $0x40] sm:$0xff]
      %v1694 = vld [vmem:[%s1684 + $0x48] sm:$0xff]
      %v1695 = vld [vmem:[%s1684 + $0x50] sm:$0xff]
      %v1696 = vld [vmem:[%s1684 + $0x58] sm:$0xff]
      %v1697 = vld [vmem:[%s1684 + $0x60] sm:$0xff]
      %v1698 = vld [vmem:[%s1684 + $0x68] sm:$0xff]
      %v1699 = vld [vmem:[%s1684 + $0x70] sm:$0xff]
      %v1700 = vld [vmem:[%s1684 + $0x78] sm:$0xff]
      %1701 = vmatpush.msra.mxu0 %v1700
      %1702 = vmatpush.msra.mxu0 %v1699
      %1703 = vmatpush.msra.mxu0 %v1698
      %1704 = vmatpush.msra.mxu0 %v1697
      %1705 = vmatpush.msra.mxu0 %v1696
      %1706 = vmatpush.msra.mxu0 %v1695
      %1707 = vmatpush.msra.mxu0 %v1694
      %1708 = vmatpush.msra.mxu0 %v1693
      %1709 = vmatpush.msra.mxu0 %v1692
      %1710 = vmatpush.msra.mxu0 %v1691
      %1711 = vmatpush.msra.mxu0 %v1690
      %1712 = vmatpush.msra.mxu0 %v1689
      %1713 = vmatpush.msra.mxu0 %v1688
      %1714 = vmatpush.msra.mxu0 %v1687
      %1715 = vmatpush.msra.mxu0 %v1686
      %1716 = vmatpush.msra.mxu0 %v1685
      %1717 = vmatmul.f32.gmra.mxu0 %v1635
      %v1718 = vpop.f32.mrf.mxu0
      %v1719 = vadd.f32 0.0, %v1718
      %1720 = vmatmul.f32.gmra.mxu0 %v1636
      %v1721 = vpop.f32.mrf.mxu0
      %v1722 = vadd.f32 0.0, %v1721
      %1723 = vmatmul.f32.gmra.mxu0 %v1637
      %v1724 = vpop.f32.mrf.mxu0
      %v1725 = vadd.f32 0.0, %v1724
      %1726 = vmatmul.f32.gmra.mxu0 %v1638
      %v1727 = vpop.f32.mrf.mxu0
      %v1728 = vadd.f32 0.0, %v1727
      %1729 = vmatmul.f32.gmra.mxu0 %v1639
      %v1730 = vpop.f32.mrf.mxu0
      %v1731 = vadd.f32 0.0, %v1730
      %1732 = vmatmul.f32.gmra.mxu0 %v1640
      %v1733 = vpop.f32.mrf.mxu0
      %v1734 = vadd.f32 0.0, %v1733
      %1735 = vmatmul.f32.gmra.mxu0 %v1641
      %v1736 = vpop.f32.mrf.mxu0
      %v1737 = vadd.f32 0.0, %v1736
      %1738 = vmatmul.f32.gmra.mxu0 %v1642
      %v1739 = vpop.f32.mrf.mxu0
      %v1740 = vadd.f32 0.0, %v1739
      %1741 = vmatmul.f32.gmra.mxu0 %v1643
      %v1742 = vpop.f32.mrf.mxu0
      %v1743 = vadd.f32 0.0, %v1742
      %1744 = vmatmul.f32.gmra.mxu0 %v1644
      %v1745 = vpop.f32.mrf.mxu0
      %v1746 = vadd.f32 0.0, %v1745
      %1747 = vmatmul.f32.gmra.mxu0 %v1645
      %v1748 = vpop.f32.mrf.mxu0
      %v1749 = vadd.f32 0.0, %v1748
      %1750 = vmatmul.f32.gmra.mxu0 %v1646
      %v1751 = vpop.f32.mrf.mxu0
      %v1752 = vadd.f32 0.0, %v1751
      %1753 = vmatmul.f32.gmra.mxu0 %v1647
      %v1754 = vpop.f32.mrf.mxu0
      %v1755 = vadd.f32 0.0, %v1754
      %1756 = vmatmul.f32.gmra.mxu0 %v1648
      %v1757 = vpop.f32.mrf.mxu0
      %v1758 = vadd.f32 0.0, %v1757
      %1759 = vmatmul.f32.gmra.mxu0 %v1649
      %v1760 = vpop.f32.mrf.mxu0
      %v1761 = vadd.f32 0.0, %v1760
      %1762 = vmatmul.f32.gmra.mxu0 %v1650
      %v1763 = vpop.f32.mrf.mxu0
      %v1764 = vadd.f32 0.0, %v1763
      %1765 = vmatmul.f32.gmra.mxu0 %v1651
      %v1766 = vpop.f32.mrf.mxu0
      %v1767 = vadd.f32 0.0, %v1766
      %1768 = vmatmul.f32.gmra.mxu0 %v1652
      %v1769 = vpop.f32.mrf.mxu0
      %v1770 = vadd.f32 0.0, %v1769
      %1771 = vmatmul.f32.gmra.mxu0 %v1653
      %v1772 = vpop.f32.mrf.mxu0
      %v1773 = vadd.f32 0.0, %v1772
      %1774 = vmatmul.f32.gmra.mxu0 %v1654
      %v1775 = vpop.f32.mrf.mxu0
      %v1776 = vadd.f32 0.0, %v1775
      %1777 = vmatmul.f32.gmra.mxu0 %v1655
      %v1778 = vpop.f32.mrf.mxu0
      %v1779 = vadd.f32 0.0, %v1778
      %1780 = vmatmul.f32.gmra.mxu0 %v1656
      %v1781 = vpop.f32.mrf.mxu0
      %v1782 = vadd.f32 0.0, %v1781
      %1783 = vmatmul.f32.gmra.mxu0 %v1657
      %v1784 = vpop.f32.mrf.mxu0
      %v1785 = vadd.f32 0.0, %v1784
      %1786 = vmatmul.f32.gmra.mxu0 %v1658
      %v1787 = vpop.f32.mrf.mxu0
      %v1788 = vadd.f32 0.0, %v1787
      %1789 = vmatmul.f32.gmra.mxu0 %v1659
      %v1790 = vpop.f32.mrf.mxu0
      %v1791 = vadd.f32 0.0, %v1790
      %1792 = vmatmul.f32.gmra.mxu0 %v1660
      %v1793 = vpop.f32.mrf.mxu0
      %v1794 = vadd.f32 0.0, %v1793
      %1795 = vmatmul.f32.gmra.mxu0 %v1661
      %v1796 = vpop.f32.mrf.mxu0
      %v1797 = vadd.f32 0.0, %v1796
      %1798 = vmatmul.f32.gmra.mxu0 %v1662
      %v1799 = vpop.f32.mrf.mxu0
      %v1800 = vadd.f32 0.0, %v1799
      %1801 = vmatmul.f32.gmra.mxu0 %v1663
      %v1802 = vpop.f32.mrf.mxu0
      %v1803 = vadd.f32 0.0, %v1802
      %1804 = vmatmul.f32.gmra.mxu0 %v1664
      %v1805 = vpop.f32.mrf.mxu0
      %v1806 = vadd.f32 0.0, %v1805
      %1807 = vmatmul.f32.gmra.mxu0 %v1682
      %v1808 = vpop.f32.mrf.mxu0
      %v1809 = vadd.f32 0.0, %v1808
      %1810 = vmatmul.f32.gmra.mxu0 %v1683
      %v1811 = vpop.f32.mrf.mxu0
      %v1812 = vadd.f32 0.0, %v1811
      %1813 = vdwg.mxu0
      %1814 = vmatpush.msra.mxu0 %v1681
      %1815 = vmatpush.msra.mxu0 %v1680
      %1816 = vmatpush.msra.mxu0 %v1679
      %1817 = vmatpush.msra.mxu0 %v1678
      %1818 = vmatpush.msra.mxu0 %v1677
      %1819 = vmatpush.msra.mxu0 %v1676
      %1820 = vmatpush.msra.mxu0 %v1675
      %1821 = vmatpush.msra.mxu0 %v1674
      %1822 = vmatpush.msra.mxu0 %v1673
      %1823 = vmatpush.msra.mxu0 %v1672
      %1824 = vmatpush.msra.mxu0 %v1671
      %1825 = vmatpush.msra.mxu0 %v1670
      %1826 = vmatpush.msra.mxu0 %v1669
      %1827 = vmatpush.msra.mxu0 %v1668
      %1828 = vmatpush.msra.mxu0 %v1667
      %1829 = vmatpush.msra.mxu0 %v1666
      %1830 = vmatmul.f32.gmra.mxu0 %v1633
      %v1831 = vpop.f32.mrf.mxu0
      %v1832 = vadd.f32 %v1719, %v1831
      %1833 = vmatmul.f32.gmra.mxu0 %v1634
      %v1834 = vpop.f32.mrf.mxu0
      %v1835 = vadd.f32 %v1722, %v1834
      %1836 = vmatmul.f32.gmra.mxu0 %v1635
      %v1837 = vpop.f32.mrf.mxu0
      %v1838 = vadd.f32 %v1725, %v1837
      %1839 = vmatmul.f32.gmra.mxu0 %v1636
      %v1840 = vpop.f32.mrf.mxu0
      %v1841 = vadd.f32 %v1728, %v1840
      %1842 = vmatmul.f32.gmra.mxu0 %v1637
      %v1843 = vpop.f32.mrf.mxu0
      %v1844 = vadd.f32 %v1731, %v1843
      %1845 = vmatmul.f32.gmra.mxu0 %v1638
      %v1846 = vpop.f32.mrf.mxu0
      %v1847 = vadd.f32 %v1734, %v1846
      %1848 = vmatmul.f32.gmra.mxu0 %v1639
      %v1849 = vpop.f32.mrf.mxu0
      %v1850 = vadd.f32 %v1737, %v1849
      %1851 = vmatmul.f32.gmra.mxu0 %v1640
      %v1852 = vpop.f32.mrf.mxu0
      %v1853 = vadd.f32 %v1740, %v1852
      %1854 = vmatmul.f32.gmra.mxu0 %v1641
      %v1855 = vpop.f32.mrf.mxu0
      %v1856 = vadd.f32 %v1743, %v1855
      %1857 = vmatmul.f32.gmra.mxu0 %v1642
      %v1858 = vpop.f32.mrf.mxu0
      %v1859 = vadd.f32 %v1746, %v1858
      %1860 = vmatmul.f32.gmra.mxu0 %v1643
      %v1861 = vpop.f32.mrf.mxu0
      %v1862 = vadd.f32 %v1749, %v1861
      %1863 = vmatmul.f32.gmra.mxu0 %v1644
      %v1864 = vpop.f32.mrf.mxu0
      %v1865 = vadd.f32 %v1752, %v1864
      %1866 = vmatmul.f32.gmra.mxu0 %v1645
      %v1867 = vpop.f32.mrf.mxu0
      %v1868 = vadd.f32 %v1755, %v1867
      %1869 = vmatmul.f32.gmra.mxu0 %v1646
      %v1870 = vpop.f32.mrf.mxu0
      %v1871 = vadd.f32 %v1758, %v1870
      %1872 = vmatmul.f32.gmra.mxu0 %v1647
      %v1873 = vpop.f32.mrf.mxu0
      %v1874 = vadd.f32 %v1761, %v1873
      %1875 = vmatmul.f32.gmra.mxu0 %v1648
      %v1876 = vpop.f32.mrf.mxu0
      %v1877 = vadd.f32 %v1764, %v1876
      %1878 = vmatmul.f32.gmra.mxu0 %v1649
      %v1879 = vpop.f32.mrf.mxu0
      %v1880 = vadd.f32 %v1767, %v1879
      %1881 = vmatmul.f32.gmra.mxu0 %v1650
      %v1882 = vpop.f32.mrf.mxu0
      %v1883 = vadd.f32 %v1770, %v1882
      %1884 = vmatmul.f32.gmra.mxu0 %v1651
      %v1885 = vpop.f32.mrf.mxu0
      %v1886 = vadd.f32 %v1773, %v1885
      %1887 = vmatmul.f32.gmra.mxu0 %v1652
      %v1888 = vpop.f32.mrf.mxu0
      %v1889 = vadd.f32 %v1776, %v1888
      %1890 = vmatmul.f32.gmra.mxu0 %v1653
      %v1891 = vpop.f32.mrf.mxu0
      %v1892 = vadd.f32 %v1779, %v1891
      %1893 = vmatmul.f32.gmra.mxu0 %v1654
      %v1894 = vpop.f32.mrf.mxu0
      %v1895 = vadd.f32 %v1782, %v1894
      %1896 = vmatmul.f32.gmra.mxu0 %v1655
      %v1897 = vpop.f32.mrf.mxu0
      %v1898 = vadd.f32 %v1785, %v1897
      %1899 = vmatmul.f32.gmra.mxu0 %v1656
      %v1900 = vpop.f32.mrf.mxu0
      %v1901 = vadd.f32 %v1788, %v1900
      %1902 = vmatmul.f32.gmra.mxu0 %v1657
      %v1903 = vpop.f32.mrf.mxu0
      %v1904 = vadd.f32 %v1791, %v1903
      %1905 = vmatmul.f32.gmra.mxu0 %v1658
      %v1906 = vpop.f32.mrf.mxu0
      %v1907 = vadd.f32 %v1794, %v1906
      %1908 = vmatmul.f32.gmra.mxu0 %v1659
      %v1909 = vpop.f32.mrf.mxu0
      %v1910 = vadd.f32 %v1797, %v1909
      %1911 = vmatmul.f32.gmra.mxu0 %v1660
      %v1912 = vpop.f32.mrf.mxu0
      %v1913 = vadd.f32 %v1800, %v1912
      %1914 = vmatmul.f32.gmra.mxu0 %v1661
      %v1915 = vpop.f32.mrf.mxu0
      %v1916 = vadd.f32 %v1803, %v1915
      %1917 = vmatmul.f32.gmra.mxu0 %v1662
      %v1918 = vpop.f32.mrf.mxu0
      %v1919 = vadd.f32 %v1806, %v1918
      %1920 = vmatmul.f32.gmra.mxu0 %v1663
      %v1921 = vpop.f32.mrf.mxu0
      %v1922 = vadd.f32 %v1809, %v1921
      %1923 = vmatmul.f32.gmra.mxu0 %v1664
      %v1924 = vpop.f32.mrf.mxu0
      %v1925 = vadd.f32 %v1812, %v1924
      %1926 = vdwg.mxu0
      %v1927 = vld [vmem:[#allocation2 + $0x28] sm:$0xff]
      %v1928 = vld [vmem:[#allocation2 + $0x30] sm:$0xff]
      %v1929 = vld [vmem:[#allocation2 + $0x38] sm:$0xff]
      %v1930 = vld [vmem:[#allocation2 + $0x40] sm:$0xff]
      %v1931 = vld [vmem:[#allocation2 + $0x48] sm:$0xff]
      %v1932 = vld [vmem:[#allocation2 + $0x50] sm:$0xff]
      %v1933 = vld [vmem:[#allocation2 + $0x58] sm:$0xff]
      %v1934 = vld [vmem:[#allocation2 + $0x60] sm:$0xff]
      %v1935 = vld [vmem:[#allocation2 + $0x68] sm:$0xff]
      %v1936 = vld [vmem:[#allocation2 + $0x70] sm:$0xff]
      %v1937 = vld [vmem:[#allocation2 + $0x78] sm:$0xff]
      %v1938 = vld [vmem:[#allocation2 + $0x80] sm:$0xff]
      %v1939 = vld [vmem:[#allocation2 + $0x88] sm:$0xff]
      %v1940 = vld [vmem:[#allocation2 + $0x90] sm:$0xff]
      %v1941 = vld [vmem:[#allocation2 + $0x98] sm:$0xff]
      %v1942 = vld [vmem:[#allocation2 + $0xa0] sm:$0xff]
      %v1943 = vld [vmem:[#allocation2 + $0xa8] sm:$0xff]
      %v1944 = vld [vmem:[#allocation2 + $0xb0] sm:$0xff]
      %v1945 = vld [vmem:[#allocation2 + $0xb8] sm:$0xff]
      %v1946 = vld [vmem:[#allocation2 + $0xc0] sm:$0xff]
      %v1947 = vld [vmem:[#allocation2 + $0xc8] sm:$0xff]
      %v1948 = vld [vmem:[#allocation2 + $0xd0] sm:$0xff]
      %v1949 = vld [vmem:[#allocation2 + $0xd8] sm:$0xff]
      %v1950 = vld [vmem:[#allocation2 + $0xe0] sm:$0xff]
      %v1951 = vld [vmem:[#allocation2 + $0xe8] sm:$0xff]
      %v1952 = vld [vmem:[#allocation2 + $0xf0] sm:$0xff]
      %v1953 = vld [vmem:[#allocation2 + $0xf8] sm:$0xff]
      %v1954 = vld [vmem:[#allocation2 + $0x100] sm:$0xff]
      %v1955 = vld [vmem:[#allocation2 + $0x108] sm:$0xff]
      %v1956 = vld [vmem:[#allocation2 + $0x110] sm:$0xff]
      %v1957 = vld [vmem:[#allocation2 + $0x118] sm:$0xff]
      %v1958 = vld [vmem:[#allocation2 + $0x120] sm:$0xff]
      %s1959 = scalar_lea.vmem %s2, 896
      %v1960 = vld [vmem:[%s1959] sm:$0xff]
      %v1961 = vld [vmem:[%s1959 + $0x8] sm:$0xff]
      %v1962 = vld [vmem:[%s1959 + $0x10] sm:$0xff]
      %v1963 = vld [vmem:[%s1959 + $0x18] sm:$0xff]
      %v1964 = vld [vmem:[%s1959 + $0x20] sm:$0xff]
      %v1965 = vld [vmem:[%s1959 + $0x28] sm:$0xff]
      %v1966 = vld [vmem:[%s1959 + $0x30] sm:$0xff]
      %v1967 = vld [vmem:[%s1959 + $0x38] sm:$0xff]
      %v1968 = vld [vmem:[%s1959 + $0x40] sm:$0xff]
      %v1969 = vld [vmem:[%s1959 + $0x48] sm:$0xff]
      %v1970 = vld [vmem:[%s1959 + $0x50] sm:$0xff]
      %v1971 = vld [vmem:[%s1959 + $0x58] sm:$0xff]
      %v1972 = vld [vmem:[%s1959 + $0x60] sm:$0xff]
      %v1973 = vld [vmem:[%s1959 + $0x68] sm:$0xff]
      %v1974 = vld [vmem:[%s1959 + $0x70] sm:$0xff]
      %v1975 = vld [vmem:[%s1959 + $0x78] sm:$0xff]
      %1976 = vmatpush.msra.mxu0 %v1975
      %1977 = vmatpush.msra.mxu0 %v1974
      %1978 = vmatpush.msra.mxu0 %v1973
      %1979 = vmatpush.msra.mxu0 %v1972
      %1980 = vmatpush.msra.mxu0 %v1971
      %1981 = vmatpush.msra.mxu0 %v1970
      %1982 = vmatpush.msra.mxu0 %v1969
      %1983 = vmatpush.msra.mxu0 %v1968
      %1984 = vmatpush.msra.mxu0 %v1967
      %1985 = vmatpush.msra.mxu0 %v1966
      %1986 = vmatpush.msra.mxu0 %v1965
      %1987 = vmatpush.msra.mxu0 %v1964
      %1988 = vmatpush.msra.mxu0 %v1963
      %1989 = vmatpush.msra.mxu0 %v1962
      %1990 = vmatpush.msra.mxu0 %v1961
      %1991 = vmatpush.msra.mxu0 %v1960
      %1992 = vmatmul.f32.gmra.mxu0 %v1927
      %v1993 = vpop.f32.mrf.mxu0
      %v1994 = vadd.f32 0.0, %v1993
      %1995 = vmatmul.f32.gmra.mxu0 %v1928
      %v1996 = vpop.f32.mrf.mxu0
      %v1997 = vadd.f32 0.0, %v1996
      %1998 = vmatmul.f32.gmra.mxu0 %v1929
      %v1999 = vpop.f32.mrf.mxu0
      %v2000 = vadd.f32 0.0, %v1999
      %2001 = vmatmul.f32.gmra.mxu0 %v1930
      %v2002 = vpop.f32.mrf.mxu0
      %v2003 = vadd.f32 0.0, %v2002
      %2004 = vmatmul.f32.gmra.mxu0 %v1931
      %v2005 = vpop.f32.mrf.mxu0
      %v2006 = vadd.f32 0.0, %v2005
      %2007 = vmatmul.f32.gmra.mxu0 %v1932
      %v2008 = vpop.f32.mrf.mxu0
      %v2009 = vadd.f32 0.0, %v2008
      %2010 = vmatmul.f32.gmra.mxu0 %v1933
      %v2011 = vpop.f32.mrf.mxu0
      %v2012 = vadd.f32 0.0, %v2011
      %2013 = vmatmul.f32.gmra.mxu0 %v1934
      %v2014 = vpop.f32.mrf.mxu0
      %v2015 = vadd.f32 0.0, %v2014
      %2016 = vmatmul.f32.gmra.mxu0 %v1935
      %v2017 = vpop.f32.mrf.mxu0
      %v2018 = vadd.f32 0.0, %v2017
      %2019 = vmatmul.f32.gmra.mxu0 %v1936
      %v2020 = vpop.f32.mrf.mxu0
      %v2021 = vadd.f32 0.0, %v2020
      %2022 = vmatmul.f32.gmra.mxu0 %v1937
      %v2023 = vpop.f32.mrf.mxu0
      %v2024 = vadd.f32 0.0, %v2023
      %2025 = vmatmul.f32.gmra.mxu0 %v1938
      %v2026 = vpop.f32.mrf.mxu0
      %v2027 = vadd.f32 0.0, %v2026
      %2028 = vmatmul.f32.gmra.mxu0 %v1939
      %v2029 = vpop.f32.mrf.mxu0
      %v2030 = vadd.f32 0.0, %v2029
      %2031 = vmatmul.f32.gmra.mxu0 %v1940
      %v2032 = vpop.f32.mrf.mxu0
      %v2033 = vadd.f32 0.0, %v2032
      %2034 = vmatmul.f32.gmra.mxu0 %v1941
      %v2035 = vpop.f32.mrf.mxu0
      %v2036 = vadd.f32 0.0, %v2035
      %2037 = vmatmul.f32.gmra.mxu0 %v1942
      %v2038 = vpop.f32.mrf.mxu0
      %v2039 = vadd.f32 0.0, %v2038
      %2040 = vmatmul.f32.gmra.mxu0 %v1943
      %v2041 = vpop.f32.mrf.mxu0
      %v2042 = vadd.f32 0.0, %v2041
      %2043 = vmatmul.f32.gmra.mxu0 %v1944
      %v2044 = vpop.f32.mrf.mxu0
      %v2045 = vadd.f32 0.0, %v2044
      %2046 = vmatmul.f32.gmra.mxu0 %v1945
      %v2047 = vpop.f32.mrf.mxu0
      %v2048 = vadd.f32 0.0, %v2047
      %2049 = vmatmul.f32.gmra.mxu0 %v1946
      %v2050 = vpop.f32.mrf.mxu0
      %v2051 = vadd.f32 0.0, %v2050
      %2052 = vmatmul.f32.gmra.mxu0 %v1947
      %v2053 = vpop.f32.mrf.mxu0
      %v2054 = vadd.f32 0.0, %v2053
      %2055 = vmatmul.f32.gmra.mxu0 %v1948
      %v2056 = vpop.f32.mrf.mxu0
      %v2057 = vadd.f32 0.0, %v2056
      %2058 = vmatmul.f32.gmra.mxu0 %v1949
      %v2059 = vpop.f32.mrf.mxu0
      %v2060 = vadd.f32 0.0, %v2059
      %2061 = vmatmul.f32.gmra.mxu0 %v1950
      %v2062 = vpop.f32.mrf.mxu0
      %v2063 = vadd.f32 0.0, %v2062
      %2064 = vmatmul.f32.gmra.mxu0 %v1951
      %v2065 = vpop.f32.mrf.mxu0
      %v2066 = vadd.f32 0.0, %v2065
      %2067 = vmatmul.f32.gmra.mxu0 %v1952
      %v2068 = vpop.f32.mrf.mxu0
      %v2069 = vadd.f32 0.0, %v2068
      %2070 = vmatmul.f32.gmra.mxu0 %v1953
      %v2071 = vpop.f32.mrf.mxu0
      %v2072 = vadd.f32 0.0, %v2071
      %2073 = vmatmul.f32.gmra.mxu0 %v1954
      %v2074 = vpop.f32.mrf.mxu0
      %v2075 = vadd.f32 0.0, %v2074
      %2076 = vmatmul.f32.gmra.mxu0 %v1955
      %v2077 = vpop.f32.mrf.mxu0
      %v2078 = vadd.f32 0.0, %v2077
      %2079 = vmatmul.f32.gmra.mxu0 %v1956
      %v2080 = vpop.f32.mrf.mxu0
      %v2081 = vadd.f32 0.0, %v2080
      %2082 = vmatmul.f32.gmra.mxu0 %v1957
      %v2083 = vpop.f32.mrf.mxu0
      %v2084 = vadd.f32 0.0, %v2083
      %2085 = vmatmul.f32.gmra.mxu0 %v1958
      %v2086 = vpop.f32.mrf.mxu0
      %v2087 = vadd.f32 0.0, %v2086
      %2088 = vdwg.mxu0
      %v2089 = vadd.f32 %v1832, %v1994
      %v2090 = vadd.f32 %v1835, %v1997
      %v2091 = vadd.f32 %v1838, %v2000
      %v2092 = vadd.f32 %v1841, %v2003
      %v2093 = vadd.f32 %v1844, %v2006
      %v2094 = vadd.f32 %v1847, %v2009
      %v2095 = vadd.f32 %v1850, %v2012
      %v2096 = vadd.f32 %v1853, %v2015
      %v2097 = vadd.f32 %v1856, %v2018
      %v2098 = vadd.f32 %v1859, %v2021
      %v2099 = vadd.f32 %v1862, %v2024
      %v2100 = vadd.f32 %v1865, %v2027
      %v2101 = vadd.f32 %v1868, %v2030
      %v2102 = vadd.f32 %v1871, %v2033
      %v2103 = vadd.f32 %v1874, %v2036
      %v2104 = vadd.f32 %v1877, %v2039
      %v2105 = vadd.f32 %v1880, %v2042
      %v2106 = vadd.f32 %v1883, %v2045
      %v2107 = vadd.f32 %v1886, %v2048
      %v2108 = vadd.f32 %v1889, %v2051
      %v2109 = vadd.f32 %v1892, %v2054
      %v2110 = vadd.f32 %v1895, %v2057
      %v2111 = vadd.f32 %v1898, %v2060
      %v2112 = vadd.f32 %v1901, %v2063
      %v2113 = vadd.f32 %v1904, %v2066
      %v2114 = vadd.f32 %v1907, %v2069
      %v2115 = vadd.f32 %v1910, %v2072
      %v2116 = vadd.f32 %v1913, %v2075
      %v2117 = vadd.f32 %v1916, %v2078
      %v2118 = vadd.f32 %v1919, %v2081
      %v2119 = vadd.f32 %v1922, %v2084
      %v2120 = vadd.f32 %v1925, %v2087
      %v2121 = vadd.f32 %v1601, %v2089
      %v2122 = vadd.f32 %v1602, %v2090
      %v2123 = vadd.f32 %v1603, %v2091
      %v2124 = vadd.f32 %v1604, %v2092
      %v2125 = vadd.f32 %v1605, %v2093
      %v2126 = vadd.f32 %v1606, %v2094
      %v2127 = vadd.f32 %v1607, %v2095
      %v2128 = vadd.f32 %v1608, %v2096
      %v2129 = vadd.f32 %v1609, %v2097
      %v2130 = vadd.f32 %v1610, %v2098
      %v2131 = vadd.f32 %v1611, %v2099
      %v2132 = vadd.f32 %v1612, %v2100
      %v2133 = vadd.f32 %v1613, %v2101
      %v2134 = vadd.f32 %v1614, %v2102
      %v2135 = vadd.f32 %v1615, %v2103
      %v2136 = vadd.f32 %v1616, %v2104
      %v2137 = vadd.f32 %v1617, %v2105
      %v2138 = vadd.f32 %v1618, %v2106
      %v2139 = vadd.f32 %v1619, %v2107
      %v2140 = vadd.f32 %v1620, %v2108
      %v2141 = vadd.f32 %v1621, %v2109
      %v2142 = vadd.f32 %v1622, %v2110
      %v2143 = vadd.f32 %v1623, %v2111
      %v2144 = vadd.f32 %v1624, %v2112
      %v2145 = vadd.f32 %v1625, %v2113
      %v2146 = vadd.f32 %v1626, %v2114
      %v2147 = vadd.f32 %v1627, %v2115
      %v2148 = vadd.f32 %v1628, %v2116
      %v2149 = vadd.f32 %v1629, %v2117
      %v2150 = vadd.f32 %v1630, %v2118
      %v2151 = vadd.f32 %v1631, %v2119
      %v2152 = vadd.f32 %v1632, %v2120
      %v2153 = vld [vmem:[#allocation2 + $0x9] sm:$0xff]
      %v2154 = vld [vmem:[#allocation2 + $0x11] sm:$0xff]
      %v2155 = vld [vmem:[#allocation2 + $0x19] sm:$0xff]
      %v2156 = vld [vmem:[#allocation2 + $0x21] sm:$0xff]
      %v2157 = vld [vmem:[#allocation2 + $0x29] sm:$0xff]
      %v2158 = vld [vmem:[#allocation2 + $0x31] sm:$0xff]
      %v2159 = vld [vmem:[#allocation2 + $0x39] sm:$0xff]
      %v2160 = vld [vmem:[#allocation2 + $0x41] sm:$0xff]
      %v2161 = vld [vmem:[#allocation2 + $0x49] sm:$0xff]
      %v2162 = vld [vmem:[#allocation2 + $0x51] sm:$0xff]
      %v2163 = vld [vmem:[#allocation2 + $0x59] sm:$0xff]
      %v2164 = vld [vmem:[#allocation2 + $0x61] sm:$0xff]
      %v2165 = vld [vmem:[#allocation2 + $0x69] sm:$0xff]
      %v2166 = vld [vmem:[#allocation2 + $0x71] sm:$0xff]
      %v2167 = vld [vmem:[#allocation2 + $0x79] sm:$0xff]
      %v2168 = vld [vmem:[#allocation2 + $0x81] sm:$0xff]
      %v2169 = vld [vmem:[#allocation2 + $0x89] sm:$0xff]
      %v2170 = vld [vmem:[#allocation2 + $0x91] sm:$0xff]
      %v2171 = vld [vmem:[#allocation2 + $0x99] sm:$0xff]
      %v2172 = vld [vmem:[#allocation2 + $0xa1] sm:$0xff]
      %v2173 = vld [vmem:[#allocation2 + $0xa9] sm:$0xff]
      %v2174 = vld [vmem:[#allocation2 + $0xb1] sm:$0xff]
      %v2175 = vld [vmem:[#allocation2 + $0xb9] sm:$0xff]
      %v2176 = vld [vmem:[#allocation2 + $0xc1] sm:$0xff]
      %v2177 = vld [vmem:[#allocation2 + $0xc9] sm:$0xff]
      %v2178 = vld [vmem:[#allocation2 + $0xd1] sm:$0xff]
      %v2179 = vld [vmem:[#allocation2 + $0xd9] sm:$0xff]
      %v2180 = vld [vmem:[#allocation2 + $0xe1] sm:$0xff]
      %v2181 = vld [vmem:[#allocation2 + $0xe9] sm:$0xff]
      %v2182 = vld [vmem:[#allocation2 + $0xf1] sm:$0xff]
      %v2183 = vld [vmem:[#allocation2 + $0xf9] sm:$0xff]
      %v2184 = vld [vmem:[#allocation2 + $0x101] sm:$0xff]
      %s2185 = scalar_lea.vmem %s2, 256
      %v2186 = vld [vmem:[%s2185] sm:$0xff]
      %v2187 = vld [vmem:[%s2185 + $0x8] sm:$0xff]
      %v2188 = vld [vmem:[%s2185 + $0x10] sm:$0xff]
      %v2189 = vld [vmem:[%s2185 + $0x18] sm:$0xff]
      %v2190 = vld [vmem:[%s2185 + $0x20] sm:$0xff]
      %v2191 = vld [vmem:[%s2185 + $0x28] sm:$0xff]
      %v2192 = vld [vmem:[%s2185 + $0x30] sm:$0xff]
      %v2193 = vld [vmem:[%s2185 + $0x38] sm:$0xff]
      %v2194 = vld [vmem:[%s2185 + $0x40] sm:$0xff]
      %v2195 = vld [vmem:[%s2185 + $0x48] sm:$0xff]
      %v2196 = vld [vmem:[%s2185 + $0x50] sm:$0xff]
      %v2197 = vld [vmem:[%s2185 + $0x58] sm:$0xff]
      %v2198 = vld [vmem:[%s2185 + $0x60] sm:$0xff]
      %v2199 = vld [vmem:[%s2185 + $0x68] sm:$0xff]
      %v2200 = vld [vmem:[%s2185 + $0x70] sm:$0xff]
      %v2201 = vld [vmem:[%s2185 + $0x78] sm:$0xff]
      %v2202 = vld [vmem:[#allocation2 + $0x109] sm:$0xff]
      %v2203 = vld [vmem:[#allocation2 + $0x111] sm:$0xff]
      %s2204 = scalar_lea.vmem %s2, 640
      %v2205 = vld [vmem:[%s2204] sm:$0xff]
      %v2206 = vld [vmem:[%s2204 + $0x8] sm:$0xff]
      %v2207 = vld [vmem:[%s2204 + $0x10] sm:$0xff]
      %v2208 = vld [vmem:[%s2204 + $0x18] sm:$0xff]
      %v2209 = vld [vmem:[%s2204 + $0x20] sm:$0xff]
      %v2210 = vld [vmem:[%s2204 + $0x28] sm:$0xff]
      %v2211 = vld [vmem:[%s2204 + $0x30] sm:$0xff]
      %v2212 = vld [vmem:[%s2204 + $0x38] sm:$0xff]
      %v2213 = vld [vmem:[%s2204 + $0x40] sm:$0xff]
      %v2214 = vld [vmem:[%s2204 + $0x48] sm:$0xff]
      %v2215 = vld [vmem:[%s2204 + $0x50] sm:$0xff]
      %v2216 = vld [vmem:[%s2204 + $0x58] sm:$0xff]
      %v2217 = vld [vmem:[%s2204 + $0x60] sm:$0xff]
      %v2218 = vld [vmem:[%s2204 + $0x68] sm:$0xff]
      %v2219 = vld [vmem:[%s2204 + $0x70] sm:$0xff]
      %v2220 = vld [vmem:[%s2204 + $0x78] sm:$0xff]
      %2221 = vmatpush.msra.mxu0 %v2220
      %2222 = vmatpush.msra.mxu0 %v2219
      %2223 = vmatpush.msra.mxu0 %v2218
      %2224 = vmatpush.msra.mxu0 %v2217
      %2225 = vmatpush.msra.mxu0 %v2216
      %2226 = vmatpush.msra.mxu0 %v2215
      %2227 = vmatpush.msra.mxu0 %v2214
      %2228 = vmatpush.msra.mxu0 %v2213
      %2229 = vmatpush.msra.mxu0 %v2212
      %2230 = vmatpush.msra.mxu0 %v2211
      %2231 = vmatpush.msra.mxu0 %v2210
      %2232 = vmatpush.msra.mxu0 %v2209
      %2233 = vmatpush.msra.mxu0 %v2208
      %2234 = vmatpush.msra.mxu0 %v2207
      %2235 = vmatpush.msra.mxu0 %v2206
      %2236 = vmatpush.msra.mxu0 %v2205
      %2237 = vmatmul.f32.gmra.mxu0 %v2155
      %v2238 = vpop.f32.mrf.mxu0
      %v2239 = vadd.f32 0.0, %v2238
      %2240 = vmatmul.f32.gmra.mxu0 %v2156
      %v2241 = vpop.f32.mrf.mxu0
      %v2242 = vadd.f32 0.0, %v2241
      %2243 = vmatmul.f32.gmra.mxu0 %v2157
      %v2244 = vpop.f32.mrf.mxu0
      %v2245 = vadd.f32 0.0, %v2244
      %2246 = vmatmul.f32.gmra.mxu0 %v2158
      %v2247 = vpop.f32.mrf.mxu0
      %v2248 = vadd.f32 0.0, %v2247
      %2249 = vmatmul.f32.gmra.mxu0 %v2159
      %v2250 = vpop.f32.mrf.mxu0
      %v2251 = vadd.f32 0.0, %v2250
      %2252 = vmatmul.f32.gmra.mxu0 %v2160
      %v2253 = vpop.f32.mrf.mxu0
      %v2254 = vadd.f32 0.0, %v2253
      %2255 = vmatmul.f32.gmra.mxu0 %v2161
      %v2256 = vpop.f32.mrf.mxu0
      %v2257 = vadd.f32 0.0, %v2256
      %2258 = vmatmul.f32.gmra.mxu0 %v2162
      %v2259 = vpop.f32.mrf.mxu0
      %v2260 = vadd.f32 0.0, %v2259
      %2261 = vmatmul.f32.gmra.mxu0 %v2163
      %v2262 = vpop.f32.mrf.mxu0
      %v2263 = vadd.f32 0.0, %v2262
      %2264 = vmatmul.f32.gmra.mxu0 %v2164
      %v2265 = vpop.f32.mrf.mxu0
      %v2266 = vadd.f32 0.0, %v2265
      %2267 = vmatmul.f32.gmra.mxu0 %v2165
      %v2268 = vpop.f32.mrf.mxu0
      %v2269 = vadd.f32 0.0, %v2268
      %2270 = vmatmul.f32.gmra.mxu0 %v2166
      %v2271 = vpop.f32.mrf.mxu0
      %v2272 = vadd.f32 0.0, %v2271
      %2273 = vmatmul.f32.gmra.mxu0 %v2167
      %v2274 = vpop.f32.mrf.mxu0
      %v2275 = vadd.f32 0.0, %v2274
      %2276 = vmatmul.f32.gmra.mxu0 %v2168
      %v2277 = vpop.f32.mrf.mxu0
      %v2278 = vadd.f32 0.0, %v2277
      %2279 = vmatmul.f32.gmra.mxu0 %v2169
      %v2280 = vpop.f32.mrf.mxu0
      %v2281 = vadd.f32 0.0, %v2280
      %2282 = vmatmul.f32.gmra.mxu0 %v2170
      %v2283 = vpop.f32.mrf.mxu0
      %v2284 = vadd.f32 0.0, %v2283
      %2285 = vmatmul.f32.gmra.mxu0 %v2171
      %v2286 = vpop.f32.mrf.mxu0
      %v2287 = vadd.f32 0.0, %v2286
      %2288 = vmatmul.f32.gmra.mxu0 %v2172
      %v2289 = vpop.f32.mrf.mxu0
      %v2290 = vadd.f32 0.0, %v2289
      %2291 = vmatmul.f32.gmra.mxu0 %v2173
      %v2292 = vpop.f32.mrf.mxu0
      %v2293 = vadd.f32 0.0, %v2292
      %2294 = vmatmul.f32.gmra.mxu0 %v2174
      %v2295 = vpop.f32.mrf.mxu0
      %v2296 = vadd.f32 0.0, %v2295
      %2297 = vmatmul.f32.gmra.mxu0 %v2175
      %v2298 = vpop.f32.mrf.mxu0
      %v2299 = vadd.f32 0.0, %v2298
      %2300 = vmatmul.f32.gmra.mxu0 %v2176
      %v2301 = vpop.f32.mrf.mxu0
      %v2302 = vadd.f32 0.0, %v2301
      %2303 = vmatmul.f32.gmra.mxu0 %v2177
      %v2304 = vpop.f32.mrf.mxu0
      %v2305 = vadd.f32 0.0, %v2304
      %2306 = vmatmul.f32.gmra.mxu0 %v2178
      %v2307 = vpop.f32.mrf.mxu0
      %v2308 = vadd.f32 0.0, %v2307
      %2309 = vmatmul.f32.gmra.mxu0 %v2179
      %v2310 = vpop.f32.mrf.mxu0
      %v2311 = vadd.f32 0.0, %v2310
      %2312 = vmatmul.f32.gmra.mxu0 %v2180
      %v2313 = vpop.f32.mrf.mxu0
      %v2314 = vadd.f32 0.0, %v2313
      %2315 = vmatmul.f32.gmra.mxu0 %v2181
      %v2316 = vpop.f32.mrf.mxu0
      %v2317 = vadd.f32 0.0, %v2316
      %2318 = vmatmul.f32.gmra.mxu0 %v2182
      %v2319 = vpop.f32.mrf.mxu0
      %v2320 = vadd.f32 0.0, %v2319
      %2321 = vmatmul.f32.gmra.mxu0 %v2183
      %v2322 = vpop.f32.mrf.mxu0
      %v2323 = vadd.f32 0.0, %v2322
      %2324 = vmatmul.f32.gmra.mxu0 %v2184
      %v2325 = vpop.f32.mrf.mxu0
      %v2326 = vadd.f32 0.0, %v2325
      %2327 = vmatmul.f32.gmra.mxu0 %v2202
      %v2328 = vpop.f32.mrf.mxu0
      %v2329 = vadd.f32 0.0, %v2328
      %2330 = vmatmul.f32.gmra.mxu0 %v2203
      %v2331 = vpop.f32.mrf.mxu0
      %v2332 = vadd.f32 0.0, %v2331
      %2333 = vdwg.mxu0
      %2334 = vmatpush.msra.mxu0 %v2201
      %2335 = vmatpush.msra.mxu0 %v2200
      %2336 = vmatpush.msra.mxu0 %v2199
      %2337 = vmatpush.msra.mxu0 %v2198
      %2338 = vmatpush.msra.mxu0 %v2197
      %2339 = vmatpush.msra.mxu0 %v2196
      %2340 = vmatpush.msra.mxu0 %v2195
      %2341 = vmatpush.msra.mxu0 %v2194
      %2342 = vmatpush.msra.mxu0 %v2193
      %2343 = vmatpush.msra.mxu0 %v2192
      %2344 = vmatpush.msra.mxu0 %v2191
      %2345 = vmatpush.msra.mxu0 %v2190
      %2346 = vmatpush.msra.mxu0 %v2189
      %2347 = vmatpush.msra.mxu0 %v2188
      %2348 = vmatpush.msra.mxu0 %v2187
      %2349 = vmatpush.msra.mxu0 %v2186
      %2350 = vmatmul.f32.gmra.mxu0 %v2153
      %v2351 = vpop.f32.mrf.mxu0
      %v2352 = vadd.f32 %v2239, %v2351
      %2353 = vmatmul.f32.gmra.mxu0 %v2154
      %v2354 = vpop.f32.mrf.mxu0
      %v2355 = vadd.f32 %v2242, %v2354
      %2356 = vmatmul.f32.gmra.mxu0 %v2155
      %v2357 = vpop.f32.mrf.mxu0
      %v2358 = vadd.f32 %v2245, %v2357
      %2359 = vmatmul.f32.gmra.mxu0 %v2156
      %v2360 = vpop.f32.mrf.mxu0
      %v2361 = vadd.f32 %v2248, %v2360
      %2362 = vmatmul.f32.gmra.mxu0 %v2157
      %v2363 = vpop.f32.mrf.mxu0
      %v2364 = vadd.f32 %v2251, %v2363
      %2365 = vmatmul.f32.gmra.mxu0 %v2158
      %v2366 = vpop.f32.mrf.mxu0
      %v2367 = vadd.f32 %v2254, %v2366
      %2368 = vmatmul.f32.gmra.mxu0 %v2159
      %v2369 = vpop.f32.mrf.mxu0
      %v2370 = vadd.f32 %v2257, %v2369
      %2371 = vmatmul.f32.gmra.mxu0 %v2160
      %v2372 = vpop.f32.mrf.mxu0
      %v2373 = vadd.f32 %v2260, %v2372
      %2374 = vmatmul.f32.gmra.mxu0 %v2161
      %v2375 = vpop.f32.mrf.mxu0
      %v2376 = vadd.f32 %v2263, %v2375
      %2377 = vmatmul.f32.gmra.mxu0 %v2162
      %v2378 = vpop.f32.mrf.mxu0
      %v2379 = vadd.f32 %v2266, %v2378
      %2380 = vmatmul.f32.gmra.mxu0 %v2163
      %v2381 = vpop.f32.mrf.mxu0
      %v2382 = vadd.f32 %v2269, %v2381
      %2383 = vmatmul.f32.gmra.mxu0 %v2164
      %v2384 = vpop.f32.mrf.mxu0
      %v2385 = vadd.f32 %v2272, %v2384
      %2386 = vmatmul.f32.gmra.mxu0 %v2165
      %v2387 = vpop.f32.mrf.mxu0
      %v2388 = vadd.f32 %v2275, %v2387
      %2389 = vmatmul.f32.gmra.mxu0 %v2166
      %v2390 = vpop.f32.mrf.mxu0
      %v2391 = vadd.f32 %v2278, %v2390
      %2392 = vmatmul.f32.gmra.mxu0 %v2167
      %v2393 = vpop.f32.mrf.mxu0
      %v2394 = vadd.f32 %v2281, %v2393
      %2395 = vmatmul.f32.gmra.mxu0 %v2168
      %v2396 = vpop.f32.mrf.mxu0
      %v2397 = vadd.f32 %v2284, %v2396
      %2398 = vmatmul.f32.gmra.mxu0 %v2169
      %v2399 = vpop.f32.mrf.mxu0
      %v2400 = vadd.f32 %v2287, %v2399
      %2401 = vmatmul.f32.gmra.mxu0 %v2170
      %v2402 = vpop.f32.mrf.mxu0
      %v2403 = vadd.f32 %v2290, %v2402
      %2404 = vmatmul.f32.gmra.mxu0 %v2171
      %v2405 = vpop.f32.mrf.mxu0
      %v2406 = vadd.f32 %v2293, %v2405
      %2407 = vmatmul.f32.gmra.mxu0 %v2172
      %v2408 = vpop.f32.mrf.mxu0
      %v2409 = vadd.f32 %v2296, %v2408
      %2410 = vmatmul.f32.gmra.mxu0 %v2173
      %v2411 = vpop.f32.mrf.mxu0
      %v2412 = vadd.f32 %v2299, %v2411
      %2413 = vmatmul.f32.gmra.mxu0 %v2174
      %v2414 = vpop.f32.mrf.mxu0
      %v2415 = vadd.f32 %v2302, %v2414
      %2416 = vmatmul.f32.gmra.mxu0 %v2175
      %v2417 = vpop.f32.mrf.mxu0
      %v2418 = vadd.f32 %v2305, %v2417
      %2419 = vmatmul.f32.gmra.mxu0 %v2176
      %v2420 = vpop.f32.mrf.mxu0
      %v2421 = vadd.f32 %v2308, %v2420
      %2422 = vmatmul.f32.gmra.mxu0 %v2177
      %v2423 = vpop.f32.mrf.mxu0
      %v2424 = vadd.f32 %v2311, %v2423
      %2425 = vmatmul.f32.gmra.mxu0 %v2178
      %v2426 = vpop.f32.mrf.mxu0
      %v2427 = vadd.f32 %v2314, %v2426
      %2428 = vmatmul.f32.gmra.mxu0 %v2179
      %v2429 = vpop.f32.mrf.mxu0
      %v2430 = vadd.f32 %v2317, %v2429
      %2431 = vmatmul.f32.gmra.mxu0 %v2180
      %v2432 = vpop.f32.mrf.mxu0
      %v2433 = vadd.f32 %v2320, %v2432
      %2434 = vmatmul.f32.gmra.mxu0 %v2181
      %v2435 = vpop.f32.mrf.mxu0
      %v2436 = vadd.f32 %v2323, %v2435
      %2437 = vmatmul.f32.gmra.mxu0 %v2182
      %v2438 = vpop.f32.mrf.mxu0
      %v2439 = vadd.f32 %v2326, %v2438
      %2440 = vmatmul.f32.gmra.mxu0 %v2183
      %v2441 = vpop.f32.mrf.mxu0
      %v2442 = vadd.f32 %v2329, %v2441
      %2443 = vmatmul.f32.gmra.mxu0 %v2184
      %v2444 = vpop.f32.mrf.mxu0
      %v2445 = vadd.f32 %v2332, %v2444
      %2446 = vdwg.mxu0
      %v2447 = vld [vmem:[#allocation2 + $0x29] sm:$0xff]
      %v2448 = vld [vmem:[#allocation2 + $0x31] sm:$0xff]
      %v2449 = vld [vmem:[#allocation2 + $0x39] sm:$0xff]
      %v2450 = vld [vmem:[#allocation2 + $0x41] sm:$0xff]
      %v2451 = vld [vmem:[#allocation2 + $0x49] sm:$0xff]
      %v2452 = vld [vmem:[#allocation2 + $0x51] sm:$0xff]
      %v2453 = vld [vmem:[#allocation2 + $0x59] sm:$0xff]
      %v2454 = vld [vmem:[#allocation2 + $0x61] sm:$0xff]
      %v2455 = vld [vmem:[#allocation2 + $0x69] sm:$0xff]
      %v2456 = vld [vmem:[#allocation2 + $0x71] sm:$0xff]
      %v2457 = vld [vmem:[#allocation2 + $0x79] sm:$0xff]
      %v2458 = vld [vmem:[#allocation2 + $0x81] sm:$0xff]
      %v2459 = vld [vmem:[#allocation2 + $0x89] sm:$0xff]
      %v2460 = vld [vmem:[#allocation2 + $0x91] sm:$0xff]
      %v2461 = vld [vmem:[#allocation2 + $0x99] sm:$0xff]
      %v2462 = vld [vmem:[#allocation2 + $0xa1] sm:$0xff]
      %v2463 = vld [vmem:[#allocation2 + $0xa9] sm:$0xff]
      %v2464 = vld [vmem:[#allocation2 + $0xb1] sm:$0xff]
      %v2465 = vld [vmem:[#allocation2 + $0xb9] sm:$0xff]
      %v2466 = vld [vmem:[#allocation2 + $0xc1] sm:$0xff]
      %v2467 = vld [vmem:[#allocation2 + $0xc9] sm:$0xff]
      %v2468 = vld [vmem:[#allocation2 + $0xd1] sm:$0xff]
      %v2469 = vld [vmem:[#allocation2 + $0xd9] sm:$0xff]
      %v2470 = vld [vmem:[#allocation2 + $0xe1] sm:$0xff]
      %v2471 = vld [vmem:[#allocation2 + $0xe9] sm:$0xff]
      %v2472 = vld [vmem:[#allocation2 + $0xf1] sm:$0xff]
      %v2473 = vld [vmem:[#allocation2 + $0xf9] sm:$0xff]
      %v2474 = vld [vmem:[#allocation2 + $0x101] sm:$0xff]
      %v2475 = vld [vmem:[#allocation2 + $0x109] sm:$0xff]
      %v2476 = vld [vmem:[#allocation2 + $0x111] sm:$0xff]
      %v2477 = vld [vmem:[#allocation2 + $0x119] sm:$0xff]
      %v2478 = vld [vmem:[#allocation2 + $0x121] sm:$0xff]
      %s2479 = scalar_lea.vmem %s2, 1024
      %v2480 = vld [vmem:[%s2479] sm:$0xff]
      %v2481 = vld [vmem:[%s2479 + $0x8] sm:$0xff]
      %v2482 = vld [vmem:[%s2479 + $0x10] sm:$0xff]
      %v2483 = vld [vmem:[%s2479 + $0x18] sm:$0xff]
      %v2484 = vld [vmem:[%s2479 + $0x20] sm:$0xff]
      %v2485 = vld [vmem:[%s2479 + $0x28] sm:$0xff]
      %v2486 = vld [vmem:[%s2479 + $0x30] sm:$0xff]
      %v2487 = vld [vmem:[%s2479 + $0x38] sm:$0xff]
      %v2488 = vld [vmem:[%s2479 + $0x40] sm:$0xff]
      %v2489 = vld [vmem:[%s2479 + $0x48] sm:$0xff]
      %v2490 = vld [vmem:[%s2479 + $0x50] sm:$0xff]
      %v2491 = vld [vmem:[%s2479 + $0x58] sm:$0xff]
      %v2492 = vld [vmem:[%s2479 + $0x60] sm:$0xff]
      %v2493 = vld [vmem:[%s2479 + $0x68] sm:$0xff]
      %v2494 = vld [vmem:[%s2479 + $0x70] sm:$0xff]
      %v2495 = vld [vmem:[%s2479 + $0x78] sm:$0xff]
      %2496 = vmatpush.msra.mxu0 %v2495
      %2497 = vmatpush.msra.mxu0 %v2494
      %2498 = vmatpush.msra.mxu0 %v2493
      %2499 = vmatpush.msra.mxu0 %v2492
      %2500 = vmatpush.msra.mxu0 %v2491
      %2501 = vmatpush.msra.mxu0 %v2490
      %2502 = vmatpush.msra.mxu0 %v2489
      %2503 = vmatpush.msra.mxu0 %v2488
      %2504 = vmatpush.msra.mxu0 %v2487
      %2505 = vmatpush.msra.mxu0 %v2486
      %2506 = vmatpush.msra.mxu0 %v2485
      %2507 = vmatpush.msra.mxu0 %v2484
      %2508 = vmatpush.msra.mxu0 %v2483
      %2509 = vmatpush.msra.mxu0 %v2482
      %2510 = vmatpush.msra.mxu0 %v2481
      %2511 = vmatpush.msra.mxu0 %v2480
      %2512 = vmatmul.f32.gmra.mxu0 %v2447
      %v2513 = vpop.f32.mrf.mxu0
      %v2514 = vadd.f32 0.0, %v2513
      %2515 = vmatmul.f32.gmra.mxu0 %v2448
      %v2516 = vpop.f32.mrf.mxu0
      %v2517 = vadd.f32 0.0, %v2516
      %2518 = vmatmul.f32.gmra.mxu0 %v2449
      %v2519 = vpop.f32.mrf.mxu0
      %v2520 = vadd.f32 0.0, %v2519
      %2521 = vmatmul.f32.gmra.mxu0 %v2450
      %v2522 = vpop.f32.mrf.mxu0
      %v2523 = vadd.f32 0.0, %v2522
      %2524 = vmatmul.f32.gmra.mxu0 %v2451
      %v2525 = vpop.f32.mrf.mxu0
      %v2526 = vadd.f32 0.0, %v2525
      %2527 = vmatmul.f32.gmra.mxu0 %v2452
      %v2528 = vpop.f32.mrf.mxu0
      %v2529 = vadd.f32 0.0, %v2528
      %2530 = vmatmul.f32.gmra.mxu0 %v2453
      %v2531 = vpop.f32.mrf.mxu0
      %v2532 = vadd.f32 0.0, %v2531
      %2533 = vmatmul.f32.gmra.mxu0 %v2454
      %v2534 = vpop.f32.mrf.mxu0
      %v2535 = vadd.f32 0.0, %v2534
      %2536 = vmatmul.f32.gmra.mxu0 %v2455
      %v2537 = vpop.f32.mrf.mxu0
      %v2538 = vadd.f32 0.0, %v2537
      %2539 = vmatmul.f32.gmra.mxu0 %v2456
      %v2540 = vpop.f32.mrf.mxu0
      %v2541 = vadd.f32 0.0, %v2540
      %2542 = vmatmul.f32.gmra.mxu0 %v2457
      %v2543 = vpop.f32.mrf.mxu0
      %v2544 = vadd.f32 0.0, %v2543
      %2545 = vmatmul.f32.gmra.mxu0 %v2458
      %v2546 = vpop.f32.mrf.mxu0
      %v2547 = vadd.f32 0.0, %v2546
      %2548 = vmatmul.f32.gmra.mxu0 %v2459
      %v2549 = vpop.f32.mrf.mxu0
      %v2550 = vadd.f32 0.0, %v2549
      %2551 = vmatmul.f32.gmra.mxu0 %v2460
      %v2552 = vpop.f32.mrf.mxu0
      %v2553 = vadd.f32 0.0, %v2552
      %2554 = vmatmul.f32.gmra.mxu0 %v2461
      %v2555 = vpop.f32.mrf.mxu0
      %v2556 = vadd.f32 0.0, %v2555
      %2557 = vmatmul.f32.gmra.mxu0 %v2462
      %v2558 = vpop.f32.mrf.mxu0
      %v2559 = vadd.f32 0.0, %v2558
      %2560 = vmatmul.f32.gmra.mxu0 %v2463
      %v2561 = vpop.f32.mrf.mxu0
      %v2562 = vadd.f32 0.0, %v2561
      %2563 = vmatmul.f32.gmra.mxu0 %v2464
      %v2564 = vpop.f32.mrf.mxu0
      %v2565 = vadd.f32 0.0, %v2564
      %2566 = vmatmul.f32.gmra.mxu0 %v2465
      %v2567 = vpop.f32.mrf.mxu0
      %v2568 = vadd.f32 0.0, %v2567
      %2569 = vmatmul.f32.gmra.mxu0 %v2466
      %v2570 = vpop.f32.mrf.mxu0
      %v2571 = vadd.f32 0.0, %v2570
      %2572 = vmatmul.f32.gmra.mxu0 %v2467
      %v2573 = vpop.f32.mrf.mxu0
      %v2574 = vadd.f32 0.0, %v2573
      %2575 = vmatmul.f32.gmra.mxu0 %v2468
      %v2576 = vpop.f32.mrf.mxu0
      %v2577 = vadd.f32 0.0, %v2576
      %2578 = vmatmul.f32.gmra.mxu0 %v2469
      %v2579 = vpop.f32.mrf.mxu0
      %v2580 = vadd.f32 0.0, %v2579
      %2581 = vmatmul.f32.gmra.mxu0 %v2470
      %v2582 = vpop.f32.mrf.mxu0
      %v2583 = vadd.f32 0.0, %v2582
      %2584 = vmatmul.f32.gmra.mxu0 %v2471
      %v2585 = vpop.f32.mrf.mxu0
      %v2586 = vadd.f32 0.0, %v2585
      %2587 = vmatmul.f32.gmra.mxu0 %v2472
      %v2588 = vpop.f32.mrf.mxu0
      %v2589 = vadd.f32 0.0, %v2588
      %2590 = vmatmul.f32.gmra.mxu0 %v2473
      %v2591 = vpop.f32.mrf.mxu0
      %v2592 = vadd.f32 0.0, %v2591
      %2593 = vmatmul.f32.gmra.mxu0 %v2474
      %v2594 = vpop.f32.mrf.mxu0
      %v2595 = vadd.f32 0.0, %v2594
      %2596 = vmatmul.f32.gmra.mxu0 %v2475
      %v2597 = vpop.f32.mrf.mxu0
      %v2598 = vadd.f32 0.0, %v2597
      %2599 = vmatmul.f32.gmra.mxu0 %v2476
      %v2600 = vpop.f32.mrf.mxu0
      %v2601 = vadd.f32 0.0, %v2600
      %2602 = vmatmul.f32.gmra.mxu0 %v2477
      %v2603 = vpop.f32.mrf.mxu0
      %v2604 = vadd.f32 0.0, %v2603
      %2605 = vmatmul.f32.gmra.mxu0 %v2478
      %v2606 = vpop.f32.mrf.mxu0
      %v2607 = vadd.f32 0.0, %v2606
      %2608 = vdwg.mxu0
      %v2609 = vadd.f32 %v2352, %v2514
      %v2610 = vadd.f32 %v2355, %v2517
      %v2611 = vadd.f32 %v2358, %v2520
      %v2612 = vadd.f32 %v2361, %v2523
      %v2613 = vadd.f32 %v2364, %v2526
      %v2614 = vadd.f32 %v2367, %v2529
      %v2615 = vadd.f32 %v2370, %v2532
      %v2616 = vadd.f32 %v2373, %v2535
      %v2617 = vadd.f32 %v2376, %v2538
      %v2618 = vadd.f32 %v2379, %v2541
      %v2619 = vadd.f32 %v2382, %v2544
      %v2620 = vadd.f32 %v2385, %v2547
      %v2621 = vadd.f32 %v2388, %v2550
      %v2622 = vadd.f32 %v2391, %v2553
      %v2623 = vadd.f32 %v2394, %v2556
      %v2624 = vadd.f32 %v2397, %v2559
      %v2625 = vadd.f32 %v2400, %v2562
      %v2626 = vadd.f32 %v2403, %v2565
      %v2627 = vadd.f32 %v2406, %v2568
      %v2628 = vadd.f32 %v2409, %v2571
      %v2629 = vadd.f32 %v2412, %v2574
      %v2630 = vadd.f32 %v2415, %v2577
      %v2631 = vadd.f32 %v2418, %v2580
      %v2632 = vadd.f32 %v2421, %v2583
      %v2633 = vadd.f32 %v2424, %v2586
      %v2634 = vadd.f32 %v2427, %v2589
      %v2635 = vadd.f32 %v2430, %v2592
      %v2636 = vadd.f32 %v2433, %v2595
      %v2637 = vadd.f32 %v2436, %v2598
      %v2638 = vadd.f32 %v2439, %v2601
      %v2639 = vadd.f32 %v2442, %v2604
      %v2640 = vadd.f32 %v2445, %v2607
      %vm2641 = vcmp.eq.s32.totalorder %v954, 15
      %vm2642 = vcmp.eq.s32.totalorder %v955, 15
      %vm2643 = vcmp.eq.s32.totalorder %v956, 15
      %vm2644 = vcmp.eq.s32.totalorder %v957, 15
      %vm2645 = vcmp.eq.s32.totalorder %v958, 15
      %vm2646 = vcmp.eq.s32.totalorder %v959, 15
      %vm2647 = vcmp.eq.s32.totalorder %v960, 15
      %vm2648 = vcmp.eq.s32.totalorder %v961, 15
      %vm2649 = vcmp.eq.s32.totalorder %v962, 15
      %vm2650 = vcmp.eq.s32.totalorder %v963, 15
      %vm2651 = vcmp.eq.s32.totalorder %v964, 15
      %vm2652 = vcmp.eq.s32.totalorder %v965, 15
      %vm2653 = vcmp.eq.s32.totalorder %v966, 15
      %vm2654 = vcmp.eq.s32.totalorder %v967, 15
      %vm2655 = vcmp.eq.s32.totalorder %v968, 15
      %vm2656 = vcmp.eq.s32.totalorder %v969, 15
      %vm2657 = vcmp.eq.s32.totalorder %v970, 15
      %vm2658 = vcmp.eq.s32.totalorder %v971, 15
      %vm2659 = vcmp.eq.s32.totalorder %v972, 15
      %vm2660 = vcmp.eq.s32.totalorder %v973, 15
      %vm2661 = vcmp.eq.s32.totalorder %v974, 15
      %vm2662 = vcmp.eq.s32.totalorder %v975, 15
      %vm2663 = vcmp.eq.s32.totalorder %v976, 15
      %vm2664 = vcmp.eq.s32.totalorder %v977, 15
      %vm2665 = vcmp.eq.s32.totalorder %v978, 15
      %vm2666 = vcmp.eq.s32.totalorder %v979, 15
      %vm2667 = vcmp.eq.s32.totalorder %v980, 15
      %vm2668 = vcmp.eq.s32.totalorder %v981, 15
      %vm2669 = vcmp.eq.s32.totalorder %v982, 15
      %vm2670 = vcmp.eq.s32.totalorder %v983, 15
      %vm2671 = vcmp.eq.s32.totalorder %v984, 15
      %vm2672 = vcmp.eq.s32.totalorder %v985, 15
      %v2673 = vsel %vm2641, 1, 0
      %v2674 = vsel %vm2642, 1, 0
      %v2675 = vsel %vm2643, 1, 0
      %v2676 = vsel %vm2644, 1, 0
      %v2677 = vsel %vm2645, 1, 0
      %v2678 = vsel %vm2646, 1, 0
      %v2679 = vsel %vm2647, 1, 0
      %v2680 = vsel %vm2648, 1, 0
      %v2681 = vsel %vm2649, 1, 0
      %v2682 = vsel %vm2650, 1, 0
      %v2683 = vsel %vm2651, 1, 0
      %v2684 = vsel %vm2652, 1, 0
      %v2685 = vsel %vm2653, 1, 0
      %v2686 = vsel %vm2654, 1, 0
      %v2687 = vsel %vm2655, 1, 0
      %v2688 = vsel %vm2656, 1, 0
      %v2689 = vsel %vm2657, 1, 0
      %v2690 = vsel %vm2658, 1, 0
      %v2691 = vsel %vm2659, 1, 0
      %v2692 = vsel %vm2660, 1, 0
      %v2693 = vsel %vm2661, 1, 0
      %v2694 = vsel %vm2662, 1, 0
      %v2695 = vsel %vm2663, 1, 0
      %v2696 = vsel %vm2664, 1, 0
      %v2697 = vsel %vm2665, 1, 0
      %v2698 = vsel %vm2666, 1, 0
      %v2699 = vsel %vm2667, 1, 0
      %v2700 = vsel %vm2668, 1, 0
      %v2701 = vsel %vm2669, 1, 0
      %v2702 = vsel %vm2670, 1, 0
      %v2703 = vsel %vm2671, 1, 0
      %v2704 = vsel %vm2672, 1, 0
      %vm2705 = vcmp.eq.s32.totalorder %v2673, 1
      %vm2706 = vcmp.eq.s32.totalorder %v2674, 1
      %vm2707 = vcmp.eq.s32.totalorder %v2675, 1
      %vm2708 = vcmp.eq.s32.totalorder %v2676, 1
      %vm2709 = vcmp.eq.s32.totalorder %v2677, 1
      %vm2710 = vcmp.eq.s32.totalorder %v2678, 1
      %vm2711 = vcmp.eq.s32.totalorder %v2679, 1
      %vm2712 = vcmp.eq.s32.totalorder %v2680, 1
      %vm2713 = vcmp.eq.s32.totalorder %v2681, 1
      %vm2714 = vcmp.eq.s32.totalorder %v2682, 1
      %vm2715 = vcmp.eq.s32.totalorder %v2683, 1
      %vm2716 = vcmp.eq.s32.totalorder %v2684, 1
      %vm2717 = vcmp.eq.s32.totalorder %v2685, 1
      %vm2718 = vcmp.eq.s32.totalorder %v2686, 1
      %vm2719 = vcmp.eq.s32.totalorder %v2687, 1
      %vm2720 = vcmp.eq.s32.totalorder %v2688, 1
      %vm2721 = vcmp.eq.s32.totalorder %v2689, 1
      %vm2722 = vcmp.eq.s32.totalorder %v2690, 1
      %vm2723 = vcmp.eq.s32.totalorder %v2691, 1
      %vm2724 = vcmp.eq.s32.totalorder %v2692, 1
      %vm2725 = vcmp.eq.s32.totalorder %v2693, 1
      %vm2726 = vcmp.eq.s32.totalorder %v2694, 1
      %vm2727 = vcmp.eq.s32.totalorder %v2695, 1
      %vm2728 = vcmp.eq.s32.totalorder %v2696, 1
      %vm2729 = vcmp.eq.s32.totalorder %v2697, 1
      %vm2730 = vcmp.eq.s32.totalorder %v2698, 1
      %vm2731 = vcmp.eq.s32.totalorder %v2699, 1
      %vm2732 = vcmp.eq.s32.totalorder %v2700, 1
      %vm2733 = vcmp.eq.s32.totalorder %v2701, 1
      %vm2734 = vcmp.eq.s32.totalorder %v2702, 1
      %vm2735 = vcmp.eq.s32.totalorder %v2703, 1
      %vm2736 = vcmp.eq.s32.totalorder %v2704, 1
      %v2737 = vsel %vm2705, 0.0, %v2609
      %v2738 = vsel %vm2706, 0.0, %v2610
      %v2739 = vsel %vm2707, 0.0, %v2611
      %v2740 = vsel %vm2708, 0.0, %v2612
      %v2741 = vsel %vm2709, 0.0, %v2613
      %v2742 = vsel %vm2710, 0.0, %v2614
      %v2743 = vsel %vm2711, 0.0, %v2615
      %v2744 = vsel %vm2712, 0.0, %v2616
      %v2745 = vsel %vm2713, 0.0, %v2617
      %v2746 = vsel %vm2714, 0.0, %v2618
      %v2747 = vsel %vm2715, 0.0, %v2619
      %v2748 = vsel %vm2716, 0.0, %v2620
      %v2749 = vsel %vm2717, 0.0, %v2621
      %v2750 = vsel %vm2718, 0.0, %v2622
      %v2751 = vsel %vm2719, 0.0, %v2623
      %v2752 = vsel %vm2720, 0.0, %v2624
      %v2753 = vsel %vm2721, 0.0, %v2625
      %v2754 = vsel %vm2722, 0.0, %v2626
      %v2755 = vsel %vm2723, 0.0, %v2627
      %v2756 = vsel %vm2724, 0.0, %v2628
      %v2757 = vsel %vm2725, 0.0, %v2629
      %v2758 = vsel %vm2726, 0.0, %v2630
      %v2759 = vsel %vm2727, 0.0, %v2631
      %v2760 = vsel %vm2728, 0.0, %v2632
      %v2761 = vsel %vm2729, 0.0, %v2633
      %v2762 = vsel %vm2730, 0.0, %v2634
      %v2763 = vsel %vm2731, 0.0, %v2635
      %v2764 = vsel %vm2732, 0.0, %v2636
      %v2765 = vsel %vm2733, 0.0, %v2637
      %v2766 = vsel %vm2734, 0.0, %v2638
      %v2767 = vsel %vm2735, 0.0, %v2639
      %v2768 = vsel %vm2736, 0.0, %v2640
      %v2769 = vadd.f32 %v2121, %v2737
      %v2770 = vadd.f32 %v2122, %v2738
      %v2771 = vadd.f32 %v2123, %v2739
      %v2772 = vadd.f32 %v2124, %v2740
      %v2773 = vadd.f32 %v2125, %v2741
      %v2774 = vadd.f32 %v2126, %v2742
      %v2775 = vadd.f32 %v2127, %v2743
      %v2776 = vadd.f32 %v2128, %v2744
      %v2777 = vadd.f32 %v2129, %v2745
      %v2778 = vadd.f32 %v2130, %v2746
      %v2779 = vadd.f32 %v2131, %v2747
      %v2780 = vadd.f32 %v2132, %v2748
      %v2781 = vadd.f32 %v2133, %v2749
      %v2782 = vadd.f32 %v2134, %v2750
      %v2783 = vadd.f32 %v2135, %v2751
      %v2784 = vadd.f32 %v2136, %v2752
      %v2785 = vadd.f32 %v2137, %v2753
      %v2786 = vadd.f32 %v2138, %v2754
      %v2787 = vadd.f32 %v2139, %v2755
      %v2788 = vadd.f32 %v2140, %v2756
      %v2789 = vadd.f32 %v2141, %v2757
      %v2790 = vadd.f32 %v2142, %v2758
      %v2791 = vadd.f32 %v2143, %v2759
      %v2792 = vadd.f32 %v2144, %v2760
      %v2793 = vadd.f32 %v2145, %v2761
      %v2794 = vadd.f32 %v2146, %v2762
      %v2795 = vadd.f32 %v2147, %v2763
      %v2796 = vadd.f32 %v2148, %v2764
      %v2797 = vadd.f32 %v2149, %v2765
      %v2798 = vadd.f32 %v2150, %v2766
      %v2799 = vadd.f32 %v2151, %v2767
      %v2800 = vadd.f32 %v2152, %v2768
      %v2801 = vmax.f32 %v2769, 0.0
      %v2802 = vmax.f32 %v2770, 0.0
      %v2803 = vmax.f32 %v2771, 0.0
      %v2804 = vmax.f32 %v2772, 0.0
      %v2805 = vmax.f32 %v2773, 0.0
      %v2806 = vmax.f32 %v2774, 0.0
      %v2807 = vmax.f32 %v2775, 0.0
      %v2808 = vmax.f32 %v2776, 0.0
      %v2809 = vmax.f32 %v2777, 0.0
      %v2810 = vmax.f32 %v2778, 0.0
      %v2811 = vmax.f32 %v2779, 0.0
      %v2812 = vmax.f32 %v2780, 0.0
      %v2813 = vmax.f32 %v2781, 0.0
      %v2814 = vmax.f32 %v2782, 0.0
      %v2815 = vmax.f32 %v2783, 0.0
      %v2816 = vmax.f32 %v2784, 0.0
      %v2817 = vmax.f32 %v2785, 0.0
      %v2818 = vmax.f32 %v2786, 0.0
      %v2819 = vmax.f32 %v2787, 0.0
      %v2820 = vmax.f32 %v2788, 0.0
      %v2821 = vmax.f32 %v2789, 0.0
      %v2822 = vmax.f32 %v2790, 0.0
      %v2823 = vmax.f32 %v2791, 0.0
      %v2824 = vmax.f32 %v2792, 0.0
      %v2825 = vmax.f32 %v2793, 0.0
      %v2826 = vmax.f32 %v2794, 0.0
      %v2827 = vmax.f32 %v2795, 0.0
      %v2828 = vmax.f32 %v2796, 0.0
      %v2829 = vmax.f32 %v2797, 0.0
      %v2830 = vmax.f32 %v2798, 0.0
      %v2831 = vmax.f32 %v2799, 0.0
      %v2832 = vmax.f32 %v2800, 0.0
      %v2833 = vld [vmem:[%s3] sm:$0xff]
      %v2834 = vld [vmem:[%s3 + $0x8] sm:$0xff]
      %v2835 = vld [vmem:[%s3 + $0x10] sm:$0xff]
      %v2836 = vld [vmem:[%s3 + $0x18] sm:$0xff]
      %v2837 = vld [vmem:[%s3 + $0x20] sm:$0xff]
      %v2838 = vld [vmem:[%s3 + $0x28] sm:$0xff]
      %v2839 = vld [vmem:[%s3 + $0x30] sm:$0xff]
      %v2840 = vld [vmem:[%s3 + $0x38] sm:$0xff]
      %vm2841 = vcmask 523264
      %v2843 = vsel %vm2841, %v2801, 0
      %v2846 = vsel %vm2841, %v2802, 0
      %v2849 = vsel %vm2841, %v2803, 0
      %v2852 = vsel %vm2841, %v2804, 0
      %v2855 = vsel %vm2841, %v2805, 0
      %v2858 = vsel %vm2841, %v2806, 0
      %v2861 = vsel %vm2841, %v2807, 0
      %v2864 = vsel %vm2841, %v2808, 0
      %v2867 = vsel %vm2841, %v2809, 0
      %v2870 = vsel %vm2841, %v2810, 0
      %v2873 = vsel %vm2841, %v2811, 0
      %v2876 = vsel %vm2841, %v2812, 0
      %v2879 = vsel %vm2841, %v2813, 0
      %v2882 = vsel %vm2841, %v2814, 0
      %v2885 = vsel %vm2841, %v2815, 0
      %v2888 = vsel %vm2841, %v2816, 0
      %v2891 = vsel %vm2841, %v2817, 0
      %v2894 = vsel %vm2841, %v2818, 0
      %v2897 = vsel %vm2841, %v2819, 0
      %v2900 = vsel %vm2841, %v2820, 0
      %v2903 = vsel %vm2841, %v2821, 0
      %v2906 = vsel %vm2841, %v2822, 0
      %v2909 = vsel %vm2841, %v2823, 0
      %v2912 = vsel %vm2841, %v2824, 0
      %v2915 = vsel %vm2841, %v2825, 0
      %v2918 = vsel %vm2841, %v2826, 0
      %v2921 = vsel %vm2841, %v2827, 0
      %v2924 = vsel %vm2841, %v2828, 0
      %v2927 = vsel %vm2841, %v2829, 0
      %v2930 = vsel %vm2841, %v2830, 0
      %v2933 = vsel %vm2841, %v2831, 0
      %v2936 = vsel %vm2841, %v2832, 0
      %2938 = vmatpush.msra.mxu0 0.0
      %2939 = vmatpush.msra.mxu0 0.0
      %2940 = vmatpush.msra.mxu0 0.0
      %2941 = vmatpush.msra.mxu0 0.0
      %2942 = vmatpush.msra.mxu0 0.0
      %2943 = vmatpush.msra.mxu0 0.0
      %2944 = vmatpush.msra.mxu0 0.0
      %2945 = vmatpush.msra.mxu0 0.0
      %2946 = vmatpush.msra.mxu0 %v2840
      %2947 = vmatpush.msra.mxu0 %v2839
      %2948 = vmatpush.msra.mxu0 %v2838
      %2949 = vmatpush.msra.mxu0 %v2837
      %2950 = vmatpush.msra.mxu0 %v2836
      %2951 = vmatpush.msra.mxu0 %v2835
      %2952 = vmatpush.msra.mxu0 %v2834
      %2953 = vmatpush.msra.mxu0 %v2833
      %2954 = vmatmul.f32.gmra.mxu0 %v2843
      %v2955 = vpop.f32.mrf.mxu0
      %v2956 = vadd.f32 0.0, %v2955
      %2957 = vmatmul.f32.gmra.mxu0 %v2846
      %v2958 = vpop.f32.mrf.mxu0
      %v2959 = vadd.f32 0.0, %v2958
      %2960 = vmatmul.f32.gmra.mxu0 %v2849
      %v2961 = vpop.f32.mrf.mxu0
      %v2962 = vadd.f32 0.0, %v2961
      %2963 = vmatmul.f32.gmra.mxu0 %v2852
      %v2964 = vpop.f32.mrf.mxu0
      %v2965 = vadd.f32 0.0, %v2964
      %2966 = vmatmul.f32.gmra.mxu0 %v2855
      %v2967 = vpop.f32.mrf.mxu0
      %v2968 = vadd.f32 0.0, %v2967
      %2969 = vmatmul.f32.gmra.mxu0 %v2858
      %v2970 = vpop.f32.mrf.mxu0
      %v2971 = vadd.f32 0.0, %v2970
      %2972 = vmatmul.f32.gmra.mxu0 %v2861
      %v2973 = vpop.f32.mrf.mxu0
      %v2974 = vadd.f32 0.0, %v2973
      %2975 = vmatmul.f32.gmra.mxu0 %v2864
      %v2976 = vpop.f32.mrf.mxu0
      %v2977 = vadd.f32 0.0, %v2976
      %2978 = vmatmul.f32.gmra.mxu0 %v2867
      %v2979 = vpop.f32.mrf.mxu0
      %v2980 = vadd.f32 0.0, %v2979
      %2981 = vmatmul.f32.gmra.mxu0 %v2870
      %v2982 = vpop.f32.mrf.mxu0
      %v2983 = vadd.f32 0.0, %v2982
      %2984 = vmatmul.f32.gmra.mxu0 %v2873
      %v2985 = vpop.f32.mrf.mxu0
      %v2986 = vadd.f32 0.0, %v2985
      %2987 = vmatmul.f32.gmra.mxu0 %v2876
      %v2988 = vpop.f32.mrf.mxu0
      %v2989 = vadd.f32 0.0, %v2988
      %2990 = vmatmul.f32.gmra.mxu0 %v2879
      %v2991 = vpop.f32.mrf.mxu0
      %v2992 = vadd.f32 0.0, %v2991
      %2993 = vmatmul.f32.gmra.mxu0 %v2882
      %v2994 = vpop.f32.mrf.mxu0
      %v2995 = vadd.f32 0.0, %v2994
      %2996 = vmatmul.f32.gmra.mxu0 %v2885
      %v2997 = vpop.f32.mrf.mxu0
      %v2998 = vadd.f32 0.0, %v2997
      %2999 = vmatmul.f32.gmra.mxu0 %v2888
      %v3000 = vpop.f32.mrf.mxu0
      %v3001 = vadd.f32 0.0, %v3000
      %3002 = vmatmul.f32.gmra.mxu0 %v2891
      %v3003 = vpop.f32.mrf.mxu0
      %v3004 = vadd.f32 0.0, %v3003
      %3005 = vmatmul.f32.gmra.mxu0 %v2894
      %v3006 = vpop.f32.mrf.mxu0
      %v3007 = vadd.f32 0.0, %v3006
      %3008 = vmatmul.f32.gmra.mxu0 %v2897
      %v3009 = vpop.f32.mrf.mxu0
      %v3010 = vadd.f32 0.0, %v3009
      %3011 = vmatmul.f32.gmra.mxu0 %v2900
      %v3012 = vpop.f32.mrf.mxu0
      %v3013 = vadd.f32 0.0, %v3012
      %3014 = vmatmul.f32.gmra.mxu0 %v2903
      %v3015 = vpop.f32.mrf.mxu0
      %v3016 = vadd.f32 0.0, %v3015
      %3017 = vmatmul.f32.gmra.mxu0 %v2906
      %v3018 = vpop.f32.mrf.mxu0
      %v3019 = vadd.f32 0.0, %v3018
      %3020 = vmatmul.f32.gmra.mxu0 %v2909
      %v3021 = vpop.f32.mrf.mxu0
      %v3022 = vadd.f32 0.0, %v3021
      %3023 = vmatmul.f32.gmra.mxu0 %v2912
      %v3024 = vpop.f32.mrf.mxu0
      %v3025 = vadd.f32 0.0, %v3024
      %3026 = vmatmul.f32.gmra.mxu0 %v2915
      %v3027 = vpop.f32.mrf.mxu0
      %v3028 = vadd.f32 0.0, %v3027
      %3029 = vmatmul.f32.gmra.mxu0 %v2918
      %v3030 = vpop.f32.mrf.mxu0
      %v3031 = vadd.f32 0.0, %v3030
      %3032 = vmatmul.f32.gmra.mxu0 %v2921
      %v3033 = vpop.f32.mrf.mxu0
      %v3034 = vadd.f32 0.0, %v3033
      %3035 = vmatmul.f32.gmra.mxu0 %v2924
      %v3036 = vpop.f32.mrf.mxu0
      %v3037 = vadd.f32 0.0, %v3036
      %3038 = vmatmul.f32.gmra.mxu0 %v2927
      %v3039 = vpop.f32.mrf.mxu0
      %v3040 = vadd.f32 0.0, %v3039
      %3041 = vmatmul.f32.gmra.mxu0 %v2930
      %v3042 = vpop.f32.mrf.mxu0
      %v3043 = vadd.f32 0.0, %v3042
      %3044 = vmatmul.f32.gmra.mxu0 %v2933
      %v3045 = vpop.f32.mrf.mxu0
      %v3046 = vadd.f32 0.0, %v3045
      %3047 = vmatmul.f32.gmra.mxu0 %v2936
      %v3048 = vpop.f32.mrf.mxu0
      %v3049 = vadd.f32 0.0, %v3048
      %3050 = vdwg.mxu0
      %v3051 = vmax.f32 %v2956, 0.0
      %v3052 = vmax.f32 %v2959, 0.0
      %v3053 = vmax.f32 %v2962, 0.0
      %v3054 = vmax.f32 %v2965, 0.0
      %v3055 = vmax.f32 %v2968, 0.0
      %v3056 = vmax.f32 %v2971, 0.0
      %v3057 = vmax.f32 %v2974, 0.0
      %v3058 = vmax.f32 %v2977, 0.0
      %v3059 = vmax.f32 %v2980, 0.0
      %v3060 = vmax.f32 %v2983, 0.0
      %v3061 = vmax.f32 %v2986, 0.0
      %v3062 = vmax.f32 %v2989, 0.0
      %v3063 = vmax.f32 %v2992, 0.0
      %v3064 = vmax.f32 %v2995, 0.0
      %v3065 = vmax.f32 %v2998, 0.0
      %v3066 = vmax.f32 %v3001, 0.0
      %v3067 = vmax.f32 %v3004, 0.0
      %v3068 = vmax.f32 %v3007, 0.0
      %v3069 = vmax.f32 %v3010, 0.0
      %v3070 = vmax.f32 %v3013, 0.0
      %v3071 = vmax.f32 %v3016, 0.0
      %v3072 = vmax.f32 %v3019, 0.0
      %v3073 = vmax.f32 %v3022, 0.0
      %v3074 = vmax.f32 %v3025, 0.0
      %v3075 = vmax.f32 %v3028, 0.0
      %v3076 = vmax.f32 %v3031, 0.0
      %v3077 = vmax.f32 %v3034, 0.0
      %v3078 = vmax.f32 %v3037, 0.0
      %v3079 = vmax.f32 %v3040, 0.0
      %v3080 = vmax.f32 %v3043, 0.0
      %v3081 = vmax.f32 %v3046, 0.0
      %v3082 = vmax.f32 %v3049, 0.0
      %v3083 = vld [vmem:[%s4] sm:$0xff]
      %v3084 = vld [vmem:[%s4 + $0x8] sm:$0xff]
      %v3085 = vld [vmem:[%s4 + $0x10] sm:$0xff]
      %v3086 = vld [vmem:[%s4 + $0x18] sm:$0xff]
      %v3087 = vld [vmem:[%s4 + $0x20] sm:$0xff]
      %v3088 = vld [vmem:[%s4 + $0x28] sm:$0xff]
      %v3089 = vld [vmem:[%s4 + $0x30] sm:$0xff]
      %v3090 = vld [vmem:[%s4 + $0x38] sm:$0xff]
      %v3091 = vld [vmem:[%s5] sm:$0xff]
      %v3092 = vld [vmem:[%s5 + $0x8] sm:$0xff]
      %v3093 = vld [vmem:[%s5 + $0x10] sm:$0xff]
      %v3094 = vld [vmem:[%s5 + $0x18] sm:$0xff]
      %vm3095 = vcmask 261120
      %v3097 = vsel %vm3095, %v3051, 0
      %v3100 = vsel %vm3095, %v3052, 0
      %v3103 = vsel %vm3095, %v3053, 0
      %v3106 = vsel %vm3095, %v3054, 0
      %v3109 = vsel %vm3095, %v3055, 0
      %v3112 = vsel %vm3095, %v3056, 0
      %v3115 = vsel %vm3095, %v3057, 0
      %v3118 = vsel %vm3095, %v3058, 0
      %v3121 = vsel %vm3095, %v3059, 0
      %v3124 = vsel %vm3095, %v3060, 0
      %v3127 = vsel %vm3095, %v3061, 0
      %v3130 = vsel %vm3095, %v3062, 0
      %v3133 = vsel %vm3095, %v3063, 0
      %v3136 = vsel %vm3095, %v3064, 0
      %v3139 = vsel %vm3095, %v3065, 0
      %v3142 = vsel %vm3095, %v3066, 0
      %v3145 = vsel %vm3095, %v3067, 0
      %v3148 = vsel %vm3095, %v3068, 0
      %v3151 = vsel %vm3095, %v3069, 0
      %v3154 = vsel %vm3095, %v3070, 0
      %v3157 = vsel %vm3095, %v3071, 0
      %v3160 = vsel %vm3095, %v3072, 0
      %v3163 = vsel %vm3095, %v3073, 0
      %v3166 = vsel %vm3095, %v3074, 0
      %v3169 = vsel %vm3095, %v3075, 0
      %v3172 = vsel %vm3095, %v3076, 0
      %v3175 = vsel %vm3095, %v3077, 0
      %v3178 = vsel %vm3095, %v3078, 0
      %v3181 = vsel %vm3095, %v3079, 0
      %v3184 = vsel %vm3095, %v3080, 0
      %v3187 = vsel %vm3095, %v3081, 0
      %v3190 = vsel %vm3095, %v3082, 0
      %3192 = vmatpush.msra.mxu0 0.0
      %3193 = vmatpush.msra.mxu0 0.0
      %3194 = vmatpush.msra.mxu0 0.0
      %3195 = vmatpush.msra.mxu0 0.0
      %3196 = vmatpush.msra.mxu0 0.0
      %3197 = vmatpush.msra.mxu0 0.0
      %3198 = vmatpush.msra.mxu0 0.0
      %3199 = vmatpush.msra.mxu0 0.0
      %3200 = vmatpush.msra.mxu0 0.0
      %3201 = vmatpush.msra.mxu0 0.0
      %3202 = vmatpush.msra.mxu0 0.0
      %3203 = vmatpush.msra.mxu0 0.0
      %3204 = vmatpush.msra.mxu0 %v3094
      %3205 = vmatpush.msra.mxu0 %v3093
      %3206 = vmatpush.msra.mxu0 %v3092
      %3207 = vmatpush.msra.mxu0 %v3091
      %3208 = vmatmul.f32.gmra.mxu0 %v3097
      %v3209 = vpop.f32.mrf.mxu0
      %v3210 = vadd.f32 0.0, %v3209
      %3211 = vmatmul.f32.gmra.mxu0 %v3100
      %v3212 = vpop.f32.mrf.mxu0
      %v3213 = vadd.f32 0.0, %v3212
      %3214 = vmatmul.f32.gmra.mxu0 %v3103
      %v3215 = vpop.f32.mrf.mxu0
      %v3216 = vadd.f32 0.0, %v3215
      %3217 = vmatmul.f32.gmra.mxu0 %v3106
      %v3218 = vpop.f32.mrf.mxu0
      %v3219 = vadd.f32 0.0, %v3218
      %3220 = vmatmul.f32.gmra.mxu0 %v3109
      %v3221 = vpop.f32.mrf.mxu0
      %v3222 = vadd.f32 0.0, %v3221
      %3223 = vmatmul.f32.gmra.mxu0 %v3112
      %v3224 = vpop.f32.mrf.mxu0
      %v3225 = vadd.f32 0.0, %v3224
      %3226 = vmatmul.f32.gmra.mxu0 %v3115
      %v3227 = vpop.f32.mrf.mxu0
      %v3228 = vadd.f32 0.0, %v3227
      %3229 = vmatmul.f32.gmra.mxu0 %v3118
      %v3230 = vpop.f32.mrf.mxu0
      %v3231 = vadd.f32 0.0, %v3230
      %3232 = vmatmul.f32.gmra.mxu0 %v3121
      %v3233 = vpop.f32.mrf.mxu0
      %v3234 = vadd.f32 0.0, %v3233
      %3235 = vmatmul.f32.gmra.mxu0 %v3124
      %v3236 = vpop.f32.mrf.mxu0
      %v3237 = vadd.f32 0.0, %v3236
      %3238 = vmatmul.f32.gmra.mxu0 %v3127
      %v3239 = vpop.f32.mrf.mxu0
      %v3240 = vadd.f32 0.0, %v3239
      %3241 = vmatmul.f32.gmra.mxu0 %v3130
      %v3242 = vpop.f32.mrf.mxu0
      %v3243 = vadd.f32 0.0, %v3242
      %3244 = vmatmul.f32.gmra.mxu0 %v3133
      %v3245 = vpop.f32.mrf.mxu0
      %v3246 = vadd.f32 0.0, %v3245
      %3247 = vmatmul.f32.gmra.mxu0 %v3136
      %v3248 = vpop.f32.mrf.mxu0
      %v3249 = vadd.f32 0.0, %v3248
      %3250 = vmatmul.f32.gmra.mxu0 %v3139
      %v3251 = vpop.f32.mrf.mxu0
      %v3252 = vadd.f32 0.0, %v3251
      %3253 = vmatmul.f32.gmra.mxu0 %v3142
      %v3254 = vpop.f32.mrf.mxu0
      %v3255 = vadd.f32 0.0, %v3254
      %3256 = vmatmul.f32.gmra.mxu0 %v3145
      %v3257 = vpop.f32.mrf.mxu0
      %v3258 = vadd.f32 0.0, %v3257
      %3259 = vmatmul.f32.gmra.mxu0 %v3148
      %v3260 = vpop.f32.mrf.mxu0
      %v3261 = vadd.f32 0.0, %v3260
      %3262 = vmatmul.f32.gmra.mxu0 %v3151
      %v3263 = vpop.f32.mrf.mxu0
      %v3264 = vadd.f32 0.0, %v3263
      %3265 = vmatmul.f32.gmra.mxu0 %v3154
      %v3266 = vpop.f32.mrf.mxu0
      %v3267 = vadd.f32 0.0, %v3266
      %3268 = vmatmul.f32.gmra.mxu0 %v3157
      %v3269 = vpop.f32.mrf.mxu0
      %v3270 = vadd.f32 0.0, %v3269
      %3271 = vmatmul.f32.gmra.mxu0 %v3160
      %v3272 = vpop.f32.mrf.mxu0
      %v3273 = vadd.f32 0.0, %v3272
      %3274 = vmatmul.f32.gmra.mxu0 %v3163
      %v3275 = vpop.f32.mrf.mxu0
      %v3276 = vadd.f32 0.0, %v3275
      %3277 = vmatmul.f32.gmra.mxu0 %v3166
      %v3278 = vpop.f32.mrf.mxu0
      %v3279 = vadd.f32 0.0, %v3278
      %3280 = vmatmul.f32.gmra.mxu0 %v3169
      %v3281 = vpop.f32.mrf.mxu0
      %v3282 = vadd.f32 0.0, %v3281
      %3283 = vmatmul.f32.gmra.mxu0 %v3172
      %v3284 = vpop.f32.mrf.mxu0
      %v3285 = vadd.f32 0.0, %v3284
      %3286 = vmatmul.f32.gmra.mxu0 %v3175
      %v3287 = vpop.f32.mrf.mxu0
      %v3288 = vadd.f32 0.0, %v3287
      %3289 = vmatmul.f32.gmra.mxu0 %v3178
      %v3290 = vpop.f32.mrf.mxu0
      %v3291 = vadd.f32 0.0, %v3290
      %3292 = vmatmul.f32.gmra.mxu0 %v3181
      %v3293 = vpop.f32.mrf.mxu0
      %v3294 = vadd.f32 0.0, %v3293
      %3295 = vmatmul.f32.gmra.mxu0 %v3184
      %v3296 = vpop.f32.mrf.mxu0
      %v3297 = vadd.f32 0.0, %v3296
      %3298 = vmatmul.f32.gmra.mxu0 %v3187
      %v3299 = vpop.f32.mrf.mxu0
      %v3300 = vadd.f32 0.0, %v3299
      %3301 = vmatmul.f32.gmra.mxu0 %v3190
      %v3302 = vpop.f32.mrf.mxu0
      %v3303 = vadd.f32 0.0, %v3302
      %3304 = vdwg.mxu0
      %3305 = vmatpush.msra.mxu0 0.0
      %3306 = vmatpush.msra.mxu0 0.0
      %3307 = vmatpush.msra.mxu0 0.0
      %3308 = vmatpush.msra.mxu0 0.0
      %3309 = vmatpush.msra.mxu0 0.0
      %3310 = vmatpush.msra.mxu0 0.0
      %3311 = vmatpush.msra.mxu0 0.0
      %3312 = vmatpush.msra.mxu0 0.0
      %3313 = vmatpush.msra.mxu0 %v3090
      %3314 = vmatpush.msra.mxu0 %v3089
      %3315 = vmatpush.msra.mxu0 %v3088
      %3316 = vmatpush.msra.mxu0 %v3087
      %3317 = vmatpush.msra.mxu0 %v3086
      %3318 = vmatpush.msra.mxu0 %v3085
      %3319 = vmatpush.msra.mxu0 %v3084
      %3320 = vmatpush.msra.mxu0 %v3083
      %3321 = vmatmul.f32.gmra.mxu0 %v2843
      %v3322 = vpop.f32.mrf.mxu0
      %v3323 = vadd.f32 %v3210, %v3322
      %3324 = vmatmul.f32.gmra.mxu0 %v2846
      %v3325 = vpop.f32.mrf.mxu0
      %v3326 = vadd.f32 %v3213, %v3325
      %3327 = vmatmul.f32.gmra.mxu0 %v2849
      %v3328 = vpop.f32.mrf.mxu0
      %v3329 = vadd.f32 %v3216, %v3328
      %3330 = vmatmul.f32.gmra.mxu0 %v2852
      %v3331 = vpop.f32.mrf.mxu0
      %v3332 = vadd.f32 %v3219, %v3331
      %3333 = vmatmul.f32.gmra.mxu0 %v2855
      %v3334 = vpop.f32.mrf.mxu0
      %v3335 = vadd.f32 %v3222, %v3334
      %3336 = vmatmul.f32.gmra.mxu0 %v2858
      %v3337 = vpop.f32.mrf.mxu0
      %v3338 = vadd.f32 %v3225, %v3337
      %3339 = vmatmul.f32.gmra.mxu0 %v2861
      %v3340 = vpop.f32.mrf.mxu0
      %v3341 = vadd.f32 %v3228, %v3340
      %3342 = vmatmul.f32.gmra.mxu0 %v2864
      %v3343 = vpop.f32.mrf.mxu0
      %v3344 = vadd.f32 %v3231, %v3343
      %3345 = vmatmul.f32.gmra.mxu0 %v2867
      %v3346 = vpop.f32.mrf.mxu0
      %v3347 = vadd.f32 %v3234, %v3346
      %3348 = vmatmul.f32.gmra.mxu0 %v2870
      %v3349 = vpop.f32.mrf.mxu0
      %v3350 = vadd.f32 %v3237, %v3349
      %3351 = vmatmul.f32.gmra.mxu0 %v2873
      %v3352 = vpop.f32.mrf.mxu0
      %v3353 = vadd.f32 %v3240, %v3352
      %3354 = vmatmul.f32.gmra.mxu0 %v2876
      %v3355 = vpop.f32.mrf.mxu0
      %v3356 = vadd.f32 %v3243, %v3355
      %3357 = vmatmul.f32.gmra.mxu0 %v2879
      %v3358 = vpop.f32.mrf.mxu0
      %v3359 = vadd.f32 %v3246, %v3358
      %3360 = vmatmul.f32.gmra.mxu0 %v2882
      %v3361 = vpop.f32.mrf.mxu0
      %v3362 = vadd.f32 %v3249, %v3361
      %3363 = vmatmul.f32.gmra.mxu0 %v2885
      %v3364 = vpop.f32.mrf.mxu0
      %v3365 = vadd.f32 %v3252, %v3364
      %3366 = vmatmul.f32.gmra.mxu0 %v2888
      %v3367 = vpop.f32.mrf.mxu0
      %v3368 = vadd.f32 %v3255, %v3367
      %3369 = vmatmul.f32.gmra.mxu0 %v2891
      %v3370 = vpop.f32.mrf.mxu0
      %v3371 = vadd.f32 %v3258, %v3370
      %3372 = vmatmul.f32.gmra.mxu0 %v2894
      %v3373 = vpop.f32.mrf.mxu0
      %v3374 = vadd.f32 %v3261, %v3373
      %3375 = vmatmul.f32.gmra.mxu0 %v2897
      %v3376 = vpop.f32.mrf.mxu0
      %v3377 = vadd.f32 %v3264, %v3376
      %3378 = vmatmul.f32.gmra.mxu0 %v2900
      %v3379 = vpop.f32.mrf.mxu0
      %v3380 = vadd.f32 %v3267, %v3379
      %3381 = vmatmul.f32.gmra.mxu0 %v2903
      %v3382 = vpop.f32.mrf.mxu0
      %v3383 = vadd.f32 %v3270, %v3382
      %3384 = vmatmul.f32.gmra.mxu0 %v2906
      %v3385 = vpop.f32.mrf.mxu0
      %v3386 = vadd.f32 %v3273, %v3385
      %3387 = vmatmul.f32.gmra.mxu0 %v2909
      %v3388 = vpop.f32.mrf.mxu0
      %v3389 = vadd.f32 %v3276, %v3388
      %3390 = vmatmul.f32.gmra.mxu0 %v2912
      %v3391 = vpop.f32.mrf.mxu0
      %v3392 = vadd.f32 %v3279, %v3391
      %3393 = vmatmul.f32.gmra.mxu0 %v2915
      %v3394 = vpop.f32.mrf.mxu0
      %v3395 = vadd.f32 %v3282, %v3394
      %3396 = vmatmul.f32.gmra.mxu0 %v2918
      %v3397 = vpop.f32.mrf.mxu0
      %v3398 = vadd.f32 %v3285, %v3397
      %3399 = vmatmul.f32.gmra.mxu0 %v2921
      %v3400 = vpop.f32.mrf.mxu0
      %v3401 = vadd.f32 %v3288, %v3400
      %3402 = vmatmul.f32.gmra.mxu0 %v2924
      %v3403 = vpop.f32.mrf.mxu0
      %v3404 = vadd.f32 %v3291, %v3403
      %3405 = vmatmul.f32.gmra.mxu0 %v2927
      %v3406 = vpop.f32.mrf.mxu0
      %v3407 = vadd.f32 %v3294, %v3406
      %3408 = vmatmul.f32.gmra.mxu0 %v2930
      %v3409 = vpop.f32.mrf.mxu0
      %v3410 = vadd.f32 %v3297, %v3409
      %3411 = vmatmul.f32.gmra.mxu0 %v2933
      %v3412 = vpop.f32.mrf.mxu0
      %v3413 = vadd.f32 %v3300, %v3412
      %3414 = vmatmul.f32.gmra.mxu0 %v2936
      %v3415 = vpop.f32.mrf.mxu0
      %v3416 = vadd.f32 %v3303, %v3415
      %3417 = vdwg.mxu0
      %v3418 = vmax.f32 %v3323, 0.0
      %v3419 = vmax.f32 %v3326, 0.0
      %v3420 = vmax.f32 %v3329, 0.0
      %v3421 = vmax.f32 %v3332, 0.0
      %v3422 = vmax.f32 %v3335, 0.0
      %v3423 = vmax.f32 %v3338, 0.0
      %v3424 = vmax.f32 %v3341, 0.0
      %v3425 = vmax.f32 %v3344, 0.0
      %v3426 = vmax.f32 %v3347, 0.0
      %v3427 = vmax.f32 %v3350, 0.0
      %v3428 = vmax.f32 %v3353, 0.0
      %v3429 = vmax.f32 %v3356, 0.0
      %v3430 = vmax.f32 %v3359, 0.0
      %v3431 = vmax.f32 %v3362, 0.0
      %v3432 = vmax.f32 %v3365, 0.0
      %v3433 = vmax.f32 %v3368, 0.0
      %v3434 = vmax.f32 %v3371, 0.0
      %v3435 = vmax.f32 %v3374, 0.0
      %v3436 = vmax.f32 %v3377, 0.0
      %v3437 = vmax.f32 %v3380, 0.0
      %v3438 = vmax.f32 %v3383, 0.0
      %v3439 = vmax.f32 %v3386, 0.0
      %v3440 = vmax.f32 %v3389, 0.0
      %v3441 = vmax.f32 %v3392, 0.0
      %v3442 = vmax.f32 %v3395, 0.0
      %v3443 = vmax.f32 %v3398, 0.0
      %v3444 = vmax.f32 %v3401, 0.0
      %v3445 = vmax.f32 %v3404, 0.0
      %v3446 = vmax.f32 %v3407, 0.0
      %v3447 = vmax.f32 %v3410, 0.0
      %v3448 = vmax.f32 %v3413, 0.0
      %v3449 = vmax.f32 %v3416, 0.0
      %3450 = vst.msk [vmem:[%s251] sm:$0xff] %vm3095, %v3418
      %3451 = vst.msk [vmem:[%s251 + $0x8] sm:$0xff] %vm3095, %v3419
      %3452 = vst.msk [vmem:[%s251 + $0x10] sm:$0xff] %vm3095, %v3420
      %3453 = vst.msk [vmem:[%s251 + $0x18] sm:$0xff] %vm3095, %v3421
      %3454 = vst.msk [vmem:[%s251 + $0x20] sm:$0xff] %vm3095, %v3422
      %3455 = vst.msk [vmem:[%s251 + $0x28] sm:$0xff] %vm3095, %v3423
      %3456 = vst.msk [vmem:[%s251 + $0x30] sm:$0xff] %vm3095, %v3424
      %3457 = vst.msk [vmem:[%s251 + $0x38] sm:$0xff] %vm3095, %v3425
      %3458 = vst.msk [vmem:[%s251 + $0x40] sm:$0xff] %vm3095, %v3426
      %3459 = vst.msk [vmem:[%s251 + $0x48] sm:$0xff] %vm3095, %v3427
      %3460 = vst.msk [vmem:[%s251 + $0x50] sm:$0xff] %vm3095, %v3428
      %3461 = vst.msk [vmem:[%s251 + $0x58] sm:$0xff] %vm3095, %v3429
      %3462 = vst.msk [vmem:[%s251 + $0x60] sm:$0xff] %vm3095, %v3430
      %3463 = vst.msk [vmem:[%s251 + $0x68] sm:$0xff] %vm3095, %v3431
      %3464 = vst.msk [vmem:[%s251 + $0x70] sm:$0xff] %vm3095, %v3432
      %3465 = vst.msk [vmem:[%s251 + $0x78] sm:$0xff] %vm3095, %v3433
      %3466 = vst.msk [vmem:[%s251 + $0x80] sm:$0xff] %vm3095, %v3434
      %3467 = vst.msk [vmem:[%s251 + $0x88] sm:$0xff] %vm3095, %v3435
      %3468 = vst.msk [vmem:[%s251 + $0x90] sm:$0xff] %vm3095, %v3436
      %3469 = vst.msk [vmem:[%s251 + $0x98] sm:$0xff] %vm3095, %v3437
      %3470 = vst.msk [vmem:[%s251 + $0xa0] sm:$0xff] %vm3095, %v3438
      %3471 = vst.msk [vmem:[%s251 + $0xa8] sm:$0xff] %vm3095, %v3439
      %3472 = vst.msk [vmem:[%s251 + $0xb0] sm:$0xff] %vm3095, %v3440
      %3473 = vst.msk [vmem:[%s251 + $0xb8] sm:$0xff] %vm3095, %v3441
      %3474 = vst.msk [vmem:[%s251 + $0xc0] sm:$0xff] %vm3095, %v3442
      %3475 = vst.msk [vmem:[%s251 + $0xc8] sm:$0xff] %vm3095, %v3443
      %3476 = vst.msk [vmem:[%s251 + $0xd0] sm:$0xff] %vm3095, %v3444
      %3477 = vst.msk [vmem:[%s251 + $0xd8] sm:$0xff] %vm3095, %v3445
      %3478 = vst.msk [vmem:[%s251 + $0xe0] sm:$0xff] %vm3095, %v3446
      %3479 = vst.msk [vmem:[%s251 + $0xe8] sm:$0xff] %vm3095, %v3447
      %3480 = vst.msk [vmem:[%s251 + $0xf0] sm:$0xff] %vm3095, %v3448
      %3481 = vst.msk [vmem:[%s251 + $0xf8] sm:$0xff] %vm3095, %v3449
      %p3482 = scmp.lt.s32.totalorder %s17, 1
      %s3483 = scalar_select %p3482, %s17, 1
      %s3484 = smul.addr %s3483, 32
      %s3485 = smul.addr %s3484, 8
      %s3486 = scalar_lea.vmem %s6, %s3485
      // Predicated region
      $region45: #{dfus_block_forward.1} parent=43 // pred_check
        %p3487 = pneg %p166
      $region46: #{dfus_block_forward.1} parent=43 // pred_check_branch
        %3489 = sbr.rel (%p3487) target = $region48
      $region47: #{dfus_block_forward.1} parent=43 // pred_region
        _
      $region48: #{dfus_block_forward.1} parent=43 // pred_fallthru
        _
    $region44: #{dfus_block_forward.1} parent=5 // pred_fallthru
      _
    %p3490 = scmp.le.s32.totalorder 2, %s12
    // Predicated region
    $region49: #{dfus_block_forward.1} parent=5 // pred_check
      %p3491 = pneg %p3490
    $region50: #{dfus_block_forward.1} parent=5 // pred_check_branch
      %3493 = sbr.rel (%p3491) target = $region52
    $region51: #{dfus_block_forward.1} parent=5 // pred_region
      %s3494 = ssub.s32 %s12, 2
      // Predicated region
      $region53: #{dfus_block_forward.1} parent=51 // pred_check
        %p3495 = pneg %p172
      $region54: #{dfus_block_forward.1} parent=51 // pred_check_branch
        %3497 = sbr.rel (%p3495) target = $region56
      $region55: #{dfus_block_forward.1} parent=51 // pred_region
        %p3498 = scmp.lt.s32.totalorder %s18, 1
        %s3499 = scalar_select %p3498, %s18, 1
        %s3500 = smul.addr %s3499, 32
        %s3501 = smul.addr %s3500, 8
        %s3502 = scalar_lea.vmem %s6, %s3501
      $region56: #{dfus_block_forward.1} parent=51 // pred_fallthru
        _
    $region52: #{dfus_block_forward.1} parent=5 // pred_fallthru
      _
  $region6: #{dfus_block_forward.1} parent=0 // loop_footer
    %s16 = sadd.s32 1, %s12
  $region7: #{dfus_block_forward.1} parent=0 // loop_footer_branch
    %11 = sbr.rel target = $region3
  $region8: #{dfus_block_forward.1} parent=0 // loop_exit
    _

</llo_original>
